<compile_context>
chip_gen: v5e
topology: v5e:2x2
jax: 0.10.0
libtpu: 0.0.40
codegen_flags: <defaults>
</compile_context>

<pallas_src>
import functools

import numpy as np
import jax
import jax.numpy as jnp
from jax import lax
from jax.experimental import pallas as pl
from jax.experimental.pallas import tpu as pltpu

KERNEL_MUL = 2.0
KERNEL_NUM = 5
_BIG = 1e30        # pushed into masked-out distance entries -> exp() == 0
_BW_EPS = 1e-12    # guard against degenerate (all-identical / empty) pairs


def _round_up(v, m):
    return ((v + m - 1) // m) * m


# --------------------------------------------------------------------------
# Pallas kernel: PB class-pairs per grid step.
# Batch distance matrix once per step, per-pair gather + masked Gaussian MMD.
# --------------------------------------------------------------------------
def _mmd_pairs_kernel(counts_ref, xidx_ref, yidx_ref, sample_ref, out_ref, *, pb):
    """counts_ref : SMEM (P_pad, 2) int32      valid (n, m) rows per pair
       xidx_ref   : VMEM (PB, MAXN, 1) int32   row indices into sample (class a)
       yidx_ref   : VMEM (PB, MAXN, 1) int32   row indices into sample (class b)
       sample_ref : VMEM (B_pad, D_pad) f32    whole padded batch (resident block)
       out_ref    : VMEM (PB, 1, 128) f32      per-pair MMD, lane-broadcast
    """
    g = pl.program_id(0)
    sample = sample_ref[...]                                  # (B_pad, D_pad)
    b_pad = sample.shape[0]
    maxn = xidx_ref.shape[1]

    dn_nt = (((1,), (1,)), ((), ()))   # contract last dims of both (a @ b.T, no transpose op)

    # --- full-batch pairwise squared L2 distances, ONCE per grid step --------
    # (one MXU gram of the resident sample block; every pair below only
    #  gathers (MAXN, MAXN) windows of this matrix, independent of D_pad)
    sq = jnp.sum(sample * sample, axis=-1, keepdims=True)     # (B_pad, 1)
    gram = lax.dot_general(sample, sample, dn_nt,
                           preferred_element_type=jnp.float32)  # (B_pad, B_pad)
    dist = jnp.maximum(sq + sq.T - 2.0 * gram, 0.0)           # clamp fp cancellation

    # iotas shared by every pair in this grid step (VPU work only)
    gcol = lax.broadcasted_iota(jnp.int32, (maxn, b_pad), 1)  # gather columns
    rows = lax.broadcasted_iota(jnp.int32, (maxn, maxn), 0)
    cols = lax.broadcasted_iota(jnp.int32, (maxn, maxn), 1)
    rvec = lax.broadcasted_iota(jnp.int32, (maxn, 1), 0)

    for j in range(pb):                # static unroll over the pair batch
        pair = g * pb + j
        n = counts_ref[pair, 0]
        m = counts_ref[pair, 1]
        nf = jnp.maximum(n.astype(jnp.float32), 1.0)
        mf = jnp.maximum(m.astype(jnp.float32), 1.0)

        # --- gather (MAXN,MAXN) distance sub-matrices with one-hot matmuls ---
        vx = (rvec < n).astype(jnp.float32)                   # (MAXN, 1)
        vy = (rvec < m).astype(jnp.float32)
        ohx = jnp.where(gcol == xidx_ref[j], vx, 0.0)         # (MAXN, B_pad)
        ohy = jnp.where(gcol == yidx_ref[j], vy, 0.0)
        rx = jnp.dot(ohx, dist, preferred_element_type=jnp.float32)   # (MAXN, B_pad)
        ry = jnp.dot(ohy, dist, preferred_element_type=jnp.float32)
        dxx = lax.dot_general(rx, ohx, dn_nt, preferred_element_type=jnp.float32)
        dyy = lax.dot_general(ry, ohy, dn_nt, preferred_element_type=jnp.float32)
        dxy = lax.dot_general(rx, ohy, dn_nt, preferred_element_type=jnp.float32)

        vxx = (rows < n) & (cols < n)
        vyy = (rows < m) & (cols < m)
        vxy = (rows < n) & (cols < m)

        # --- bandwidth: mean pairwise distance over concat([x, y]) -----------
        nn = nf + mf
        sum_l2 = (jnp.sum(jnp.where(vxx, dxx, 0.0))
                  + jnp.sum(jnp.where(vyy, dyy, 0.0))
                  + 2.0 * jnp.sum(jnp.where(vxy, dxy, 0.0)))
        denom = jnp.maximum(nn * nn - nn, 1.0)
        bw0 = jnp.maximum(sum_l2 / denom / (KERNEL_MUL ** (KERNEL_NUM // 2)), _BW_EPS)
        # single scalar reciprocal of the LARGEST bandwidth; remaining kernels
        # are exact powers of the first exp (repeated squaring; KERNEL_MUL==2),
        # so no per-element divides and only ONE EUP exp per distance matrix.
        inv_bw_max = 1.0 / (bw0 * (KERNEL_MUL ** (KERNEL_NUM - 1)))

        # push masked-out entries to +BIG so exp() kills them for every bandwidth
        dxx = jnp.where(vxx, dxx, _BIG)
        dyy = jnp.where(vyy, dyy, _BIG)
        dxy = jnp.where(vxy, dxy, _BIG)

        def ksum(d):
            # exp(-d/(bw0*2^4)) once on the EUP; then e^2 -> bw0*2^3, ... on the
            # VPU.  Each term is reduced to a scalar immediately (no kernel
            # matrices kept live across bandwidths).
            e = jnp.exp(-d * inv_bw_max)
            s = jnp.sum(e)
            for _ in range(KERNEL_NUM - 1):
                e = e * e
                s = s + jnp.sum(e)
            return s

        mean_xx = ksum(dxx) / (nf * nf)
        mean_yy = ksum(dyy) / (mf * mf)
        mean_xy = ksum(dxy) / (nf * mf)
        pair_mmd = mean_xx + mean_yy - 2.0 * mean_xy   # == XX.mean()+YY.mean()-XY.mean()-YX.mean()

        out_ref[j] = jnp.full((1, 128), pair_mmd, dtype=jnp.float32)


def sparse_mmd_pallas(sample_pad, x_idx, y_idx, counts, pairs_per_step):
    """sample_pad (B_pad, D_pad) f32; x_idx/y_idx (P_pad, MAXN, 1) i32;
       counts (P_pad, 2) i32  ->  (P_pad,) per-pair MMD values."""
    b_pad, d_pad = sample_pad.shape
    p_pad, maxn, _ = x_idx.shape
    pb = pairs_per_step
    steps = p_pad // pb
    grid = (steps,)

    flops = int(steps * 2 * b_pad * b_pad * d_pad               # per-step full gram
                + p_pad * (2 * 2 * maxn * b_pad * b_pad         # one-hot row gathers of dist
                           + 3 * 2 * maxn * maxn * b_pad))      # sub-matrix extraction
    transcendentals = int(p_pad * 3 * maxn * maxn)              # one exp per matrix
    bytes_accessed = int(4 * (b_pad * d_pad + 2 * p_pad * maxn + p_pad * 128))

    out = pl.pallas_call(
        functools.partial(_mmd_pairs_kernel, pb=pb),
        out_shape=jax.ShapeDtypeStruct((p_pad, 1, 128), jnp.float32),
        grid_spec=pltpu.PrefetchScalarGridSpec(
            num_scalar_prefetch=1,
            grid=grid,
            in_specs=[
                pl.BlockSpec((pb, maxn, 1), lambda g, c: (g, 0, 0)),   # x row indices
                pl.BlockSpec((pb, maxn, 1), lambda g, c: (g, 0, 0)),   # y row indices
                pl.BlockSpec((b_pad, d_pad), lambda g, c: (0, 0)),     # resident sample block
            ],
            out_specs=pl.BlockSpec((pb, 1, 128), lambda g, c: (g, 0, 0)),
        ),
        compiler_params=pltpu.CompilerParams(
            dimension_semantics=("parallel",),        # pair axis is independent -> v7x megacore
            vmem_limit_bytes=32 * 1024 * 1024,        # explicit, safe on v5e/v6e/v7x
        ),
        cost_estimate=pl.CostEstimate(
            flops=flops, transcendentals=transcendentals, bytes_accessed=bytes_accessed),
    )(counts, x_idx, y_idx, sample_pad)
    return out[:, 0, 0]


# --------------------------------------------------------------------------
# Host-side SparseMMD module (glue: pair selection, class grouping, indexing)
# --------------------------------------------------------------------------
class SparseMMDPallas:
    def __init__(self, num_class, num_corr_clas_needed=20, pairs_per_step=4):
        self.num_class = num_class
        self.k_corr = num_corr_clas_needed
        self.k_corr_sample_size = (num_class * num_corr_clas_needed
                                   + num_corr_clas_needed * (num_corr_clas_needed - 1) / 2.0)
        self.pairs_of_mmd = []
        self.pairs_per_step = pairs_per_step

    def get_hcc(self, y_gt, scores):
        # "Highly confused classes": rank class pairs (a<b) by symmetric mean
        # confusion taken from the score matrix, keep the top budget of pairs.
        y = np.asarray(y_gt)
        s = np.asarray(scores)
        C = self.num_class
        conf = np.zeros((C, C), dtype=np.float64)
        for a in range(C):
            idx = np.where(y == a)[0]
            if idx.size:
                conf[a] = s[idx].mean(axis=0)
        sym = conf + conf.T
        pairs = [(a, b) for a in range(C) for b in range(a + 1, C)]
        pairs.sort(key=lambda p: -sym[p[0], p[1]])
        budget = int(min(len(pairs), self.k_corr_sample_size))
        return pairs[:budget]

    def data_seperated_to_classes(self, y_gt, epoch):
        idx_data_per_class = {}
        for i, y in enumerate(np.asarray(y_gt)):
            idx_data_per_class.setdefault(int(y), []).append(i)
        return idx_data_per_class

    def forward(self, sample_data, y_gt, scores, epoch=0):
        if epoch % 5 == 0:
            self.pairs_of_mmd = self.get_hcc(y_gt, scores)

        data_per_class = self.data_seperated_to_classes(y_gt, epoch)
        avail = [(a, b) for (a, b) in self.pairs_of_mmd
                 if a in data_per_class and b in data_per_class]
        if not avail:
            return jnp.float32(0.0)

        sample_data = jnp.asarray(sample_data, dtype=jnp.float32)
        B, D = sample_data.shape
        B_pad = _round_up(B, 8)
        D_pad = _round_up(D, 128)           # lane-align the hidden/contraction dim
        sample_pad = jnp.pad(sample_data, ((0, B_pad - B), (0, D_pad - D)))

        max_cnt = max(max(len(data_per_class[a]), len(data_per_class[b])) for a, b in avail)
        MAXN = _round_up(max_cnt, 8)        # sublane-align; keep small (EUP work ~ MAXN^2)
        P = len(avail)
        PB = max(1, min(self.pairs_per_step, P))
        P_pad = _round_up(P, PB)

        # Tiny per-pair index tables (no padded data copies).
        x_idx = np.zeros((P_pad, MAXN, 1), np.int32)
        y_idx = np.zeros((P_pad, MAXN, 1), np.int32)
        counts = np.zeros((P_pad, 2), np.int32)
        for p, (a, b) in enumerate(avail):
            ia, ib = data_per_class[a], data_per_class[b]
            x_idx[p, :len(ia), 0] = ia
            y_idx[p, :len(ib), 0] = ib
            counts[p] = (len(ia), len(ib))

        per_pair = sparse_mmd_pallas(sample_pad,
                                     jnp.asarray(x_idx), jnp.asarray(y_idx),
                                     jnp.asarray(counts), PB)
        return jnp.sum(per_pair[:P]) / float(P)


# --------------------------------------------------------------------------
# Pure NumPy reference (mirrors the reconstructed ModMMD / compute_mmd)
# --------------------------------------------------------------------------
def _mmd_ref(x, y, kernel_mul=KERNEL_MUL, kernel_num=KERNEL_NUM):
    n, m = x.shape[0], y.shape[0]
    total = np.concatenate([x, y], axis=0).astype(np.float64)
    sq = (total ** 2).sum(-1, keepdims=True)
    l2 = sq + sq.T - 2.0 * total @ total.T
    N = n + m
    bw = l2.sum() / (N * N - N)
    bw /= kernel_mul ** (kernel_num // 2)
    k = sum(np.exp(-l2 / (bw * kernel_mul ** i)) for i in range(kernel_num))
    return (k[:n, :n].mean() + k[n:, n:].mean()
            - k[:n, n:].mean() - k[n:, :n].mean())


def _sparse_mmd_ref(module, sample_data, y_gt):
    data_per_class = module.data_seperated_to_classes(y_gt, 0)
    sd = np.asarray(sample_data, dtype=np.float32)
    tot, cnt = 0.0, 0
    for a, b in module.pairs_of_mmd:
        if a in data_per_class and b in data_per_class:
            tot += _mmd_ref(sd[data_per_class[a]], sd[data_per_class[b]])
            cnt += 1
    return tot / (cnt if cnt else 1)


if __name__ == "__main__":
    key = jax.random.PRNGKey(0)
    batch, hidden, num_class = 16, 32, 4
    k1, k2, k3 = jax.random.split(key, 3)

    sample_data = jax.random.normal(k1, (batch, hidden), dtype=jnp.float32)
    y_gt = jax.random.randint(k2, (batch,), 0, num_class, dtype=jnp.int32)
    scores = jax.nn.softmax(jax.random.normal(k3, (batch, num_class), dtype=jnp.float32), axis=-1)

    module = SparseMMDPallas(num_class=num_class, num_corr_clas_needed=2, pairs_per_step=4)
    loss = module.forward(sample_data, y_gt, scores, epoch=0)
    loss = jax.block_until_ready(loss)

    ref = _sparse_mmd_ref(module, sample_data, y_gt)
    assert np.isfinite(float(loss))
    assert np.allclose(float(loss), float(ref), rtol=1e-2, atol=1e-5), (float(loss), float(ref))
    print("KERNEL_OK")
</pallas_src>

<mosaic_0001>
module attributes {stable_mosaic.version = 11 : i64} {
  func.func @_mmd_pairs_kernel(%arg0: i32, %arg1: memref<8x2xi32, #tpu.memory_space<smem>>, %arg2: memref<4x8x1xi32, #tpu.memory_space<vmem>>, %arg3: memref<4x8x1xi32, #tpu.memory_space<vmem>>, %arg4: memref<16x128xf32, #tpu.memory_space<vmem>>, %arg5: memref<4x1x128xf32, #tpu.memory_space<vmem>>) attributes {dimension_semantics = [#tpu.dimension_semantics<parallel>], iteration_bounds = array<i64: 2>, scalar_prefetch = 1 : i64, scratch_operands = 0 : i64, tpu.core_type = #tpu.core_type<tc>, window_params = [{transform_indices = @transform_0, window_bounds = array<i64: 4, 8, 1>}, {transform_indices = @transform_1, window_bounds = array<i64: 4, 8, 1>}, {pipeline_mode = #tpu.pipeline_mode<synchronous>, transform_indices = @transform_2, window_bounds = array<i64: 16, 128>}, {transform_indices = @transform_3, window_bounds = array<i64: 4, 1, 128>}]} {
    %c0 = arith.constant 0 : index
    %c0_0 = arith.constant 0 : index
    %0 = vector.load %arg4[%c0, %c0_0] : memref<16x128xf32, #tpu.memory_space<vmem>>, vector<16x128xf32>
    %1 = arith.mulf %0, %0 : vector<16x128xf32>
    %cst = arith.constant dense<0.000000e+00> : vector<16xf32>
    %2 = vector.multi_reduction <add>, %1, %cst [1] : vector<16x128xf32> to vector<16xf32>
    %3 = vector.shape_cast %2 : vector<16xf32> to vector<16x1xf32>
    %cst_1 = arith.constant dense<0.000000e+00> : vector<16x16xf32>
    %4 = tpu.matmul %0, %0, %cst_1 {dimension_numbers = #tpu.dot_dimension_numbers<[1], [1], [0], [0], [0, 0, 1, 0], [], []>} : vector<16x128xf32>, vector<16x128xf32>, vector<16x16xf32> -> vector<16x16xf32>
    %5 = tpu.transpose %3, [1, 0] : vector<16x1xf32> -> vector<1x16xf32>
    %6 = vector.broadcast %3 : vector<16x1xf32> to vector<16x16xf32>
    %7 = vector.broadcast %5 : vector<1x16xf32> to vector<16x16xf32>
    %8 = arith.addf %6, %7 : vector<16x16xf32>
    %cst_2 = arith.constant 2.000000e+00 : f32
    %9 = vector.broadcast %cst_2 : f32 to vector<16x16xf32>
    %10 = arith.mulf %9, %4 : vector<16x16xf32>
    %11 = arith.subf %8, %10 : vector<16x16xf32>
    %cst_3 = arith.constant 0.000000e+00 : f32
    %12 = vector.broadcast %cst_3 : f32 to vector<16x16xf32>
    %13 = arith.maximumf %11, %12 : vector<16x16xf32>
    %14 = tpu.iota {dimensions = array<i32: 1>} : vector<8x16xi32>
    %15 = tpu.iota {dimensions = array<i32: 0>} : vector<8x8xi32>
    %16 = tpu.iota {dimensions = array<i32: 1>} : vector<8x8xi32>
    %17 = tpu.iota {dimensions = array<i32: 0>} : vector<8x1xi32>
    %c4_i32 = arith.constant 4 : i32
    %18 = arith.muli %arg0, %c4_i32 : i32
    %c0_i32 = arith.constant 0 : i32
    %19 = arith.addi %18, %c0_i32 : i32
    %20 = arith.index_cast %19 : i32 to index
    %c0_4 = arith.constant 0 : index
    %21 = memref.load %arg1[%20, %c0_4] : memref<8x2xi32, #tpu.memory_space<smem>>
    %22 = arith.index_cast %19 : i32 to index
    %c1 = arith.constant 1 : index
    %23 = memref.load %arg1[%22, %c1] : memref<8x2xi32, #tpu.memory_space<smem>>
    %24 = arith.sitofp %21 : i32 to f32
    %cst_5 = arith.constant 1.000000e+00 : f32
    %25 = arith.maximumf %24, %cst_5 : f32
    %26 = arith.sitofp %23 : i32 to f32
    %cst_6 = arith.constant 1.000000e+00 : f32
    %27 = arith.maximumf %26, %cst_6 : f32
    %28 = vector.broadcast %21 : i32 to vector<8x1xi32>
    %29 = arith.cmpi slt, %17, %28 : vector<8x1xi32>
    %30 = arith.extui %29 : vector<8x1xi1> to vector<8x1xi32>
    %31 = arith.sitofp %30 : vector<8x1xi32> to vector<8x1xf32>
    %32 = vector.broadcast %23 : i32 to vector<8x1xi32>
    %33 = arith.cmpi slt, %17, %32 : vector<8x1xi32>
    %34 = arith.extui %33 : vector<8x1xi1> to vector<8x1xi32>
    %35 = arith.sitofp %34 : vector<8x1xi32> to vector<8x1xf32>
    %c0_7 = arith.constant 0 : index
    %c0_8 = arith.constant 0 : index
    %c0_9 = arith.constant 0 : index
    %36 = vector.load %arg2[%c0_7, %c0_8, %c0_9] : memref<4x8x1xi32, #tpu.memory_space<vmem>>, vector<1x8x1xi32>
    %37 = vector.shape_cast %36 : vector<1x8x1xi32> to vector<8x1xi32>
    %38 = vector.broadcast %37 : vector<8x1xi32> to vector<8x16xi32>
    %39 = arith.cmpi eq, %14, %38 : vector<8x16xi32>
    %cst_10 = arith.constant 0.000000e+00 : f32
    %40 = vector.shape_cast %31 : vector<8x1xf32> to vector<8x1xf32>
    %41 = vector.broadcast %40 : vector<8x1xf32> to vector<8x16xf32>
    %42 = vector.broadcast %cst_10 : f32 to vector<8x16xf32>
    %43 = arith.select %39, %41, %42 : vector<8x16xi1>, vector<8x16xf32>
    %c0_11 = arith.constant 0 : index
    %c0_12 = arith.constant 0 : index
    %c0_13 = arith.constant 0 : index
    %44 = vector.load %arg3[%c0_11, %c0_12, %c0_13] : memref<4x8x1xi32, #tpu.memory_space<vmem>>, vector<1x8x1xi32>
    %45 = vector.shape_cast %44 : vector<1x8x1xi32> to vector<8x1xi32>
    %46 = vector.broadcast %45 : vector<8x1xi32> to vector<8x16xi32>
    %47 = arith.cmpi eq, %14, %46 : vector<8x16xi32>
    %cst_14 = arith.constant 0.000000e+00 : f32
    %48 = vector.shape_cast %35 : vector<8x1xf32> to vector<8x1xf32>
    %49 = vector.broadcast %48 : vector<8x1xf32> to vector<8x16xf32>
    %50 = vector.broadcast %cst_14 : f32 to vector<8x16xf32>
    %51 = arith.select %47, %49, %50 : vector<8x16xi1>, vector<8x16xf32>
    %cst_15 = arith.constant dense<0.000000e+00> : vector<8x16xf32>
    %52 = tpu.matmul %43, %13, %cst_15 {dimension_numbers = #tpu.dot_dimension_numbers<[1], [0], [0], [1], [0, 0, 1, 1], [], []>} : vector<8x16xf32>, vector<16x16xf32>, vector<8x16xf32> -> vector<8x16xf32>
    %cst_16 = arith.constant dense<0.000000e+00> : vector<8x16xf32>
    %53 = tpu.matmul %51, %13, %cst_16 {dimension_numbers = #tpu.dot_dimension_numbers<[1], [0], [0], [1], [0, 0, 1, 1], [], []>} : vector<8x16xf32>, vector<16x16xf32>, vector<8x16xf32> -> vector<8x16xf32>
    %cst_17 = arith.constant dense<0.000000e+00> : vector<8x8xf32>
    %54 = tpu.matmul %52, %43, %cst_17 {dimension_numbers = #tpu.dot_dimension_numbers<[1], [1], [0], [0], [0, 0, 1, 0], [], []>} : vector<8x16xf32>, vector<8x16xf32>, vector<8x8xf32> -> vector<8x8xf32>
    %cst_18 = arith.constant dense<0.000000e+00> : vector<8x8xf32>
    %55 = tpu.matmul %53, %51, %cst_18 {dimension_numbers = #tpu.dot_dimension_numbers<[1], [1], [0], [0], [0, 0, 1, 0], [], []>} : vector<8x16xf32>, vector<8x16xf32>, vector<8x8xf32> -> vector<8x8xf32>
    %cst_19 = arith.constant dense<0.000000e+00> : vector<8x8xf32>
    %56 = tpu.matmul %52, %51, %cst_19 {dimension_numbers = #tpu.dot_dimension_numbers<[1], [1], [0], [0], [0, 0, 1, 0], [], []>} : vector<8x16xf32>, vector<8x16xf32>, vector<8x8xf32> -> vector<8x8xf32>
    %57 = vector.broadcast %21 : i32 to vector<8x8xi32>
    %58 = arith.cmpi slt, %15, %57 : vector<8x8xi32>
    %59 = vector.broadcast %21 : i32 to vector<8x8xi32>
    %60 = arith.cmpi slt, %16, %59 : vector<8x8xi32>
    %61 = arith.andi %58, %60 : vector<8x8xi1>
    %62 = vector.broadcast %23 : i32 to vector<8x8xi32>
    %63 = arith.cmpi slt, %15, %62 : vector<8x8xi32>
    %64 = vector.broadcast %23 : i32 to vector<8x8xi32>
    %65 = arith.cmpi slt, %16, %64 : vector<8x8xi32>
    %66 = arith.andi %63, %65 : vector<8x8xi1>
    %67 = vector.broadcast %21 : i32 to vector<8x8xi32>
    %68 = arith.cmpi slt, %15, %67 : vector<8x8xi32>
    %69 = vector.broadcast %23 : i32 to vector<8x8xi32>
    %70 = arith.cmpi slt, %16, %69 : vector<8x8xi32>
    %71 = arith.andi %68, %70 : vector<8x8xi1>
    %72 = arith.addf %25, %27 : f32
    %cst_20 = arith.constant 0.000000e+00 : f32
    %73 = vector.broadcast %cst_20 : f32 to vector<8x8xf32>
    %74 = arith.select %61, %54, %73 : vector<8x8xi1>, vector<8x8xf32>
    %75 = vector.shape_cast %74 : vector<8x8xf32> to vector<1x8x8xf32>
    %cst_21 = arith.constant dense<0.000000e+00> : vector<1xf32>
    %76 = vector.multi_reduction <add>, %75, %cst_21 [1, 2] : vector<1x8x8xf32> to vector<1xf32>
    %77 = vector.shape_cast %76 : vector<1xf32> to vector<1x1x1xf32>
    %78 = vector.extract %77[0, 0, 0] : f32 from vector<1x1x1xf32>
    %cst_22 = arith.constant 0.000000e+00 : f32
    %79 = vector.broadcast %cst_22 : f32 to vector<8x8xf32>
    %80 = arith.select %66, %55, %79 : vector<8x8xi1>, vector<8x8xf32>
    %81 = vector.shape_cast %80 : vector<8x8xf32> to vector<1x8x8xf32>
    %cst_23 = arith.constant dense<0.000000e+00> : vector<1xf32>
    %82 = vector.multi_reduction <add>, %81, %cst_23 [1, 2] : vector<1x8x8xf32> to vector<1xf32>
    %83 = vector.shape_cast %82 : vector<1xf32> to vector<1x1x1xf32>
    %84 = vector.extract %83[0, 0, 0] : f32 from vector<1x1x1xf32>
    %85 = arith.addf %78, %84 : f32
    %cst_24 = arith.constant 0.000000e+00 : f32
    %86 = vector.broadcast %cst_24 : f32 to vector<8x8xf32>
    %87 = arith.select %71, %56, %86 : vector<8x8xi1>, vector<8x8xf32>
    %88 = vector.shape_cast %87 : vector<8x8xf32> to vector<1x8x8xf32>
    %cst_25 = arith.constant dense<0.000000e+00> : vector<1xf32>
    %89 = vector.multi_reduction <add>, %88, %cst_25 [1, 2] : vector<1x8x8xf32> to vector<1xf32>
    %90 = vector.shape_cast %89 : vector<1xf32> to vector<1x1x1xf32>
    %91 = vector.extract %90[0, 0, 0] : f32 from vector<1x1x1xf32>
    %cst_26 = arith.constant 2.000000e+00 : f32
    %92 = arith.mulf %cst_26, %91 : f32
    %93 = arith.addf %85, %92 : f32
    %94 = arith.mulf %72, %72 : f32
    %95 = arith.subf %94, %72 : f32
    %cst_27 = arith.constant 1.000000e+00 : f32
    %96 = arith.maximumf %95, %cst_27 : f32
    %97 = arith.divf %93, %96 : f32
    %cst_28 = arith.constant 4.000000e+00 : f32
    %98 = arith.divf %97, %cst_28 : f32
    %cst_29 = arith.constant 9.99999996E-13 : f32
    %99 = arith.maximumf %98, %cst_29 : f32
    %cst_30 = arith.constant 1.600000e+01 : f32
    %100 = arith.mulf %99, %cst_30 : f32
    %cst_31 = arith.constant 1.000000e+00 : f32
    %101 = arith.divf %cst_31, %100 : f32
    %cst_32 = arith.constant 1.000000e+30 : f32
    %102 = vector.broadcast %cst_32 : f32 to vector<8x8xf32>
    %103 = arith.select %61, %54, %102 : vector<8x8xi1>, vector<8x8xf32>
    %cst_33 = arith.constant 1.000000e+30 : f32
    %104 = vector.broadcast %cst_33 : f32 to vector<8x8xf32>
    %105 = arith.select %66, %55, %104 : vector<8x8xi1>, vector<8x8xf32>
    %cst_34 = arith.constant 1.000000e+30 : f32
    %106 = vector.broadcast %cst_34 : f32 to vector<8x8xf32>
    %107 = arith.select %71, %56, %106 : vector<8x8xi1>, vector<8x8xf32>
    %cst_35 = arith.constant 0.000000e+00 : f32
    %108 = vector.broadcast %cst_35 : f32 to vector<8x8xf32>
    %109 = arith.subf %108, %103 : vector<8x8xf32>
    %110 = vector.broadcast %101 : f32 to vector<8x8xf32>
    %111 = arith.mulf %109, %110 : vector<8x8xf32>
    %112 = math.exp %111 : vector<8x8xf32>
    %113 = vector.shape_cast %112 : vector<8x8xf32> to vector<1x8x8xf32>
    %cst_36 = arith.constant dense<0.000000e+00> : vector<1xf32>
    %114 = vector.multi_reduction <add>, %113, %cst_36 [1, 2] : vector<1x8x8xf32> to vector<1xf32>
    %115 = vector.shape_cast %114 : vector<1xf32> to vector<1x1x1xf32>
    %116 = vector.extract %115[0, 0, 0] : f32 from vector<1x1x1xf32>
    %117 = arith.mulf %112, %112 : vector<8x8xf32>
    %118 = vector.shape_cast %117 : vector<8x8xf32> to vector<1x8x8xf32>
    %cst_37 = arith.constant dense<0.000000e+00> : vector<1xf32>
    %119 = vector.multi_reduction <add>, %118, %cst_37 [1, 2] : vector<1x8x8xf32> to vector<1xf32>
    %120 = vector.shape_cast %119 : vector<1xf32> to vector<1x1x1xf32>
    %121 = vector.extract %120[0, 0, 0] : f32 from vector<1x1x1xf32>
    %122 = arith.addf %116, %121 : f32
    %123 = arith.mulf %117, %117 : vector<8x8xf32>
    %124 = vector.shape_cast %123 : vector<8x8xf32> to vector<1x8x8xf32>
    %cst_38 = arith.constant dense<0.000000e+00> : vector<1xf32>
    %125 = vector.multi_reduction <add>, %124, %cst_38 [1, 2] : vector<1x8x8xf32> to vector<1xf32>
    %126 = vector.shape_cast %125 : vector<1xf32> to vector<1x1x1xf32>
    %127 = vector.extract %126[0, 0, 0] : f32 from vector<1x1x1xf32>
    %128 = arith.addf %122, %127 : f32
    %129 = arith.mulf %123, %123 : vector<8x8xf32>
    %130 = vector.shape_cast %129 : vector<8x8xf32> to vector<1x8x8xf32>
    %cst_39 = arith.constant dense<0.000000e+00> : vector<1xf32>
    %131 = vector.multi_reduction <add>, %130, %cst_39 [1, 2] : vector<1x8x8xf32> to vector<1xf32>
    %132 = vector.shape_cast %131 : vector<1xf32> to vector<1x1x1xf32>
    %133 = vector.extract %132[0, 0, 0] : f32 from vector<1x1x1xf32>
    %134 = arith.addf %128, %133 : f32
    %135 = arith.mulf %129, %129 : vector<8x8xf32>
    %136 = vector.shape_cast %135 : vector<8x8xf32> to vector<1x8x8xf32>
    %cst_40 = arith.constant dense<0.000000e+00> : vector<1xf32>
    %137 = vector.multi_reduction <add>, %136, %cst_40 [1, 2] : vector<1x8x8xf32> to vector<1xf32>
    %138 = vector.shape_cast %137 : vector<1xf32> to vector<1x1x1xf32>
    %139 = vector.extract %138[0, 0, 0] : f32 from vector<1x1x1xf32>
    %140 = arith.addf %134, %139 : f32
    %141 = arith.mulf %25, %25 : f32
    %142 = arith.divf %140, %141 : f32
    %cst_41 = arith.constant 0.000000e+00 : f32
    %143 = vector.broadcast %cst_41 : f32 to vector<8x8xf32>
    %144 = arith.subf %143, %105 : vector<8x8xf32>
    %145 = vector.broadcast %101 : f32 to vector<8x8xf32>
    %146 = arith.mulf %144, %145 : vector<8x8xf32>
    %147 = math.exp %146 : vector<8x8xf32>
    %148 = vector.shape_cast %147 : vector<8x8xf32> to vector<1x8x8xf32>
    %cst_42 = arith.constant dense<0.000000e+00> : vector<1xf32>
    %149 = vector.multi_reduction <add>, %148, %cst_42 [1, 2] : vector<1x8x8xf32> to vector<1xf32>
    %150 = vector.shape_cast %149 : vector<1xf32> to vector<1x1x1xf32>
    %151 = vector.extract %150[0, 0, 0] : f32 from vector<1x1x1xf32>
    %152 = arith.mulf %147, %147 : vector<8x8xf32>
    %153 = vector.shape_cast %152 : vector<8x8xf32> to vector<1x8x8xf32>
    %cst_43 = arith.constant dense<0.000000e+00> : vector<1xf32>
    %154 = vector.multi_reduction <add>, %153, %cst_43 [1, 2] : vector<1x8x8xf32> to vector<1xf32>
    %155 = vector.shape_cast %154 : vector<1xf32> to vector<1x1x1xf32>
    %156 = vector.extract %155[0, 0, 0] : f32 from vector<1x1x1xf32>
    %157 = arith.addf %151, %156 : f32
    %158 = arith.mulf %152, %152 : vector<8x8xf32>
    %159 = vector.shape_cast %158 : vector<8x8xf32> to vector<1x8x8xf32>
    %cst_44 = arith.constant dense<0.000000e+00> : vector<1xf32>
    %160 = vector.multi_reduction <add>, %159, %cst_44 [1, 2] : vector<1x8x8xf32> to vector<1xf32>
    %161 = vector.shape_cast %160 : vector<1xf32> to vector<1x1x1xf32>
    %162 = vector.extract %161[0, 0, 0] : f32 from vector<1x1x1xf32>
    %163 = arith.addf %157, %162 : f32
    %164 = arith.mulf %158, %158 : vector<8x8xf32>
    %165 = vector.shape_cast %164 : vector<8x8xf32> to vector<1x8x8xf32>
    %cst_45 = arith.constant dense<0.000000e+00> : vector<1xf32>
    %166 = vector.multi_reduction <add>, %165, %cst_45 [1, 2] : vector<1x8x8xf32> to vector<1xf32>
    %167 = vector.shape_cast %166 : vector<1xf32> to vector<1x1x1xf32>
    %168 = vector.extract %167[0, 0, 0] : f32 from vector<1x1x1xf32>
    %169 = arith.addf %163, %168 : f32
    %170 = arith.mulf %164, %164 : vector<8x8xf32>
    %171 = vector.shape_cast %170 : vector<8x8xf32> to vector<1x8x8xf32>
    %cst_46 = arith.constant dense<0.000000e+00> : vector<1xf32>
    %172 = vector.multi_reduction <add>, %171, %cst_46 [1, 2] : vector<1x8x8xf32> to vector<1xf32>
    %173 = vector.shape_cast %172 : vector<1xf32> to vector<1x1x1xf32>
    %174 = vector.extract %173[0, 0, 0] : f32 from vector<1x1x1xf32>
    %175 = arith.addf %169, %174 : f32
    %176 = arith.mulf %27, %27 : f32
    %177 = arith.divf %175, %176 : f32
    %cst_47 = arith.constant 0.000000e+00 : f32
    %178 = vector.broadcast %cst_47 : f32 to vector<8x8xf32>
    %179 = arith.subf %178, %107 : vector<8x8xf32>
    %180 = vector.broadcast %101 : f32 to vector<8x8xf32>
    %181 = arith.mulf %179, %180 : vector<8x8xf32>
    %182 = math.exp %181 : vector<8x8xf32>
    %183 = vector.shape_cast %182 : vector<8x8xf32> to vector<1x8x8xf32>
    %cst_48 = arith.constant dense<0.000000e+00> : vector<1xf32>
    %184 = vector.multi_reduction <add>, %183, %cst_48 [1, 2] : vector<1x8x8xf32> to vector<1xf32>
    %185 = vector.shape_cast %184 : vector<1xf32> to vector<1x1x1xf32>
    %186 = vector.extract %185[0, 0, 0] : f32 from vector<1x1x1xf32>
    %187 = arith.mulf %182, %182 : vector<8x8xf32>
    %188 = vector.shape_cast %187 : vector<8x8xf32> to vector<1x8x8xf32>
    %cst_49 = arith.constant dense<0.000000e+00> : vector<1xf32>
    %189 = vector.multi_reduction <add>, %188, %cst_49 [1, 2] : vector<1x8x8xf32> to vector<1xf32>
    %190 = vector.shape_cast %189 : vector<1xf32> to vector<1x1x1xf32>
    %191 = vector.extract %190[0, 0, 0] : f32 from vector<1x1x1xf32>
    %192 = arith.addf %186, %191 : f32
    %193 = arith.mulf %187, %187 : vector<8x8xf32>
    %194 = vector.shape_cast %193 : vector<8x8xf32> to vector<1x8x8xf32>
    %cst_50 = arith.constant dense<0.000000e+00> : vector<1xf32>
    %195 = vector.multi_reduction <add>, %194, %cst_50 [1, 2] : vector<1x8x8xf32> to vector<1xf32>
    %196 = vector.shape_cast %195 : vector<1xf32> to vector<1x1x1xf32>
    %197 = vector.extract %196[0, 0, 0] : f32 from vector<1x1x1xf32>
    %198 = arith.addf %192, %197 : f32
    %199 = arith.mulf %193, %193 : vector<8x8xf32>
    %200 = vector.shape_cast %199 : vector<8x8xf32> to vector<1x8x8xf32>
    %cst_51 = arith.constant dense<0.000000e+00> : vector<1xf32>
    %201 = vector.multi_reduction <add>, %200, %cst_51 [1, 2] : vector<1x8x8xf32> to vector<1xf32>
    %202 = vector.shape_cast %201 : vector<1xf32> to vector<1x1x1xf32>
    %203 = vector.extract %202[0, 0, 0] : f32 from vector<1x1x1xf32>
    %204 = arith.addf %198, %203 : f32
    %205 = arith.mulf %199, %199 : vector<8x8xf32>
    %206 = vector.shape_cast %205 : vector<8x8xf32> to vector<1x8x8xf32>
    %cst_52 = arith.constant dense<0.000000e+00> : vector<1xf32>
    %207 = vector.multi_reduction <add>, %206, %cst_52 [1, 2] : vector<1x8x8xf32> to vector<1xf32>
    %208 = vector.shape_cast %207 : vector<1xf32> to vector<1x1x1xf32>
    %209 = vector.extract %208[0, 0, 0] : f32 from vector<1x1x1xf32>
    %210 = arith.addf %204, %209 : f32
    %211 = arith.mulf %25, %27 : f32
    %212 = arith.divf %210, %211 : f32
    %213 = arith.addf %142, %177 : f32
    %cst_53 = arith.constant 2.000000e+00 : f32
    %214 = arith.mulf %cst_53, %212 : f32
    %215 = arith.subf %213, %214 : f32
    %216 = vector.broadcast %215 : f32 to vector<1x128xf32>
    %c0_54 = arith.constant 0 : index
    %c0_55 = arith.constant 0 : index
    %c0_56 = arith.constant 0 : index
    %217 = vector.load %arg5[%c0_54, %c0_55, %c0_56] : memref<4x1x128xf32, #tpu.memory_space<vmem>>, vector<1x1x128xf32>
    %218 = vector.shape_cast %217 : vector<1x1x128xf32> to vector<1x128xf32>
    %219 = vector.shape_cast %216 : vector<1x128xf32> to vector<1x1x128xf32>
    tpu.vector_store %arg5[%c0_54, %c0_55, %c0_56], %219 {strides = array<i32>} : memref<4x1x128xf32, #tpu.memory_space<vmem>>, vector<1x1x128xf32>,
    %c4_i32_57 = arith.constant 4 : i32
    %220 = arith.muli %arg0, %c4_i32_57 : i32
    %c1_i32 = arith.constant 1 : i32
    %221 = arith.addi %220, %c1_i32 : i32
    %222 = arith.index_cast %221 : i32 to index
    %c0_58 = arith.constant 0 : index
    %223 = memref.load %arg1[%222, %c0_58] : memref<8x2xi32, #tpu.memory_space<smem>>
    %224 = arith.index_cast %221 : i32 to index
    %c1_59 = arith.constant 1 : index
    %225 = memref.load %arg1[%224, %c1_59] : memref<8x2xi32, #tpu.memory_space<smem>>
    %226 = arith.sitofp %223 : i32 to f32
    %cst_60 = arith.constant 1.000000e+00 : f32
    %227 = arith.maximumf %226, %cst_60 : f32
    %228 = arith.sitofp %225 : i32 to f32
    %cst_61 = arith.constant 1.000000e+00 : f32
    %229 = arith.maximumf %228, %cst_61 : f32
    %230 = vector.broadcast %223 : i32 to vector<8x1xi32>
    %231 = arith.cmpi slt, %17, %230 : vector<8x1xi32>
    %232 = arith.extui %231 : vector<8x1xi1> to vector<8x1xi32>
    %233 = arith.sitofp %232 : vector<8x1xi32> to vector<8x1xf32>
    %234 = vector.broadcast %225 : i32 to vector<8x1xi32>
    %235 = arith.cmpi slt, %17, %234 : vector<8x1xi32>
    %236 = arith.extui %235 : vector<8x1xi1> to vector<8x1xi32>
    %237 = arith.sitofp %236 : vector<8x1xi32> to vector<8x1xf32>
    %c1_62 = arith.constant 1 : index
    %c0_63 = arith.constant 0 : index
    %c0_64 = arith.constant 0 : index
    %238 = vector.load %arg2[%c1_62, %c0_63, %c0_64] : memref<4x8x1xi32, #tpu.memory_space<vmem>>, vector<1x8x1xi32>
    %239 = vector.shape_cast %238 : vector<1x8x1xi32> to vector<8x1xi32>
    %240 = vector.broadcast %239 : vector<8x1xi32> to vector<8x16xi32>
    %241 = arith.cmpi eq, %14, %240 : vector<8x16xi32>
    %cst_65 = arith.constant 0.000000e+00 : f32
    %242 = vector.shape_cast %233 : vector<8x1xf32> to vector<8x1xf32>
    %243 = vector.broadcast %242 : vector<8x1xf32> to vector<8x16xf32>
    %244 = vector.broadcast %cst_65 : f32 to vector<8x16xf32>
    %245 = arith.select %241, %243, %244 : vector<8x16xi1>, vector<8x16xf32>
    %c1_66 = arith.constant 1 : index
    %c0_67 = arith.constant 0 : index
    %c0_68 = arith.constant 0 : index
    %246 = vector.load %arg3[%c1_66, %c0_67, %c0_68] : memref<4x8x1xi32, #tpu.memory_space<vmem>>, vector<1x8x1xi32>
    %247 = vector.shape_cast %246 : vector<1x8x1xi32> to vector<8x1xi32>
    %248 = vector.broadcast %247 : vector<8x1xi32> to vector<8x16xi32>
    %249 = arith.cmpi eq, %14, %248 : vector<8x16xi32>
    %cst_69 = arith.constant 0.000000e+00 : f32
    %250 = vector.shape_cast %237 : vector<8x1xf32> to vector<8x1xf32>
    %251 = vector.broadcast %250 : vector<8x1xf32> to vector<8x16xf32>
    %252 = vector.broadcast %cst_69 : f32 to vector<8x16xf32>
    %253 = arith.select %249, %251, %252 : vector<8x16xi1>, vector<8x16xf32>
    %cst_70 = arith.constant dense<0.000000e+00> : vector<8x16xf32>
    %254 = tpu.matmul %245, %13, %cst_70 {dimension_numbers = #tpu.dot_dimension_numbers<[1], [0], [0], [1], [0, 0, 1, 1], [], []>} : vector<8x16xf32>, vector<16x16xf32>, vector<8x16xf32> -> vector<8x16xf32>
    %cst_71 = arith.constant dense<0.000000e+00> : vector<8x16xf32>
    %255 = tpu.matmul %253, %13, %cst_71 {dimension_numbers = #tpu.dot_dimension_numbers<[1], [0], [0], [1], [0, 0, 1, 1], [], []>} : vector<8x16xf32>, vector<16x16xf32>, vector<8x16xf32> -> vector<8x16xf32>
    %cst_72 = arith.constant dense<0.000000e+00> : vector<8x8xf32>
    %256 = tpu.matmul %254, %245, %cst_72 {dimension_numbers = #tpu.dot_dimension_numbers<[1], [1], [0], [0], [0, 0, 1, 0], [], []>} : vector<8x16xf32>, vector<8x16xf32>, vector<8x8xf32> -> vector<8x8xf32>
    %cst_73 = arith.constant dense<0.000000e+00> : vector<8x8xf32>
    %257 = tpu.matmul %255, %253, %cst_73 {dimension_numbers = #tpu.dot_dimension_numbers<[1], [1], [0], [0], [0, 0, 1, 0], [], []>} : vector<8x16xf32>, vector<8x16xf32>, vector<8x8xf32> -> vector<8x8xf32>
    %cst_74 = arith.constant dense<0.000000e+00> : vector<8x8xf32>
    %258 = tpu.matmul %254, %253, %cst_74 {dimension_numbers = #tpu.dot_dimension_numbers<[1], [1], [0], [0], [0, 0, 1, 0], [], []>} : vector<8x16xf32>, vector<8x16xf32>, vector<8x8xf32> -> vector<8x8xf32>
    %259 = vector.broadcast %223 : i32 to vector<8x8xi32>
    %260 = arith.cmpi slt, %15, %259 : vector<8x8xi32>
    %261 = vector.broadcast %223 : i32 to vector<8x8xi32>
    %262 = arith.cmpi slt, %16, %261 : vector<8x8xi32>
    %263 = arith.andi %260, %262 : vector<8x8xi1>
    %264 = vector.broadcast %225 : i32 to vector<8x8xi32>
    %265 = arith.cmpi slt, %15, %264 : vector<8x8xi32>
    %266 = vector.broadcast %225 : i32 to vector<8x8xi32>
    %267 = arith.cmpi slt, %16, %266 : vector<8x8xi32>
    %268 = arith.andi %265, %267 : vector<8x8xi1>
    %269 = vector.broadcast %223 : i32 to vector<8x8xi32>
    %270 = arith.cmpi slt, %15, %269 : vector<8x8xi32>
    %271 = vector.broadcast %225 : i32 to vector<8x8xi32>
    %272 = arith.cmpi slt, %16, %271 : vector<8x8xi32>
    %273 = arith.andi %270, %272 : vector<8x8xi1>
    %274 = arith.addf %227, %229 : f32
    %cst_75 = arith.constant 0.000000e+00 : f32
    %275 = vector.broadcast %cst_75 : f32 to vector<8x8xf32>
    %276 = arith.select %263, %256, %275 : vector<8x8xi1>, vector<8x8xf32>
    %277 = vector.shape_cast %276 : vector<8x8xf32> to vector<1x8x8xf32>
    %cst_76 = arith.constant dense<0.000000e+00> : vector<1xf32>
    %278 = vector.multi_reduction <add>, %277, %cst_76 [1, 2] : vector<1x8x8xf32> to vector<1xf32>
    %279 = vector.shape_cast %278 : vector<1xf32> to vector<1x1x1xf32>
    %280 = vector.extract %279[0, 0, 0] : f32 from vector<1x1x1xf32>
    %cst_77 = arith.constant 0.000000e+00 : f32
    %281 = vector.broadcast %cst_77 : f32 to vector<8x8xf32>
    %282 = arith.select %268, %257, %281 : vector<8x8xi1>, vector<8x8xf32>
    %283 = vector.shape_cast %282 : vector<8x8xf32> to vector<1x8x8xf32>
    %cst_78 = arith.constant dense<0.000000e+00> : vector<1xf32>
    %284 = vector.multi_reduction <add>, %283, %cst_78 [1, 2] : vector<1x8x8xf32> to vector<1xf32>
    %285 = vector.shape_cast %284 : vector<1xf32> to vector<1x1x1xf32>
    %286 = vector.extract %285[0, 0, 0] : f32 from vector<1x1x1xf32>
    %287 = arith.addf %280, %286 : f32
    %cst_79 = arith.constant 0.000000e+00 : f32
    %288 = vector.broadcast %cst_79 : f32 to vector<8x8xf32>
    %289 = arith.select %273, %258, %288 : vector<8x8xi1>, vector<8x8xf32>
    %290 = vector.shape_cast %289 : vector<8x8xf32> to vector<1x8x8xf32>
    %cst_80 = arith.constant dense<0.000000e+00> : vector<1xf32>
    %291 = vector.multi_reduction <add>, %290, %cst_80 [1, 2] : vector<1x8x8xf32> to vector<1xf32>
    %292 = vector.shape_cast %291 : vector<1xf32> to vector<1x1x1xf32>
    %293 = vector.extract %292[0, 0, 0] : f32 from vector<1x1x1xf32>
    %cst_81 = arith.constant 2.000000e+00 : f32
    %294 = arith.mulf %cst_81, %293 : f32
    %295 = arith.addf %287, %294 : f32
    %296 = arith.mulf %274, %274 : f32
    %297 = arith.subf %296, %274 : f32
    %cst_82 = arith.constant 1.000000e+00 : f32
    %298 = arith.maximumf %297, %cst_82 : f32
    %299 = arith.divf %295, %298 : f32
    %cst_83 = arith.constant 4.000000e+00 : f32
    %300 = arith.divf %299, %cst_83 : f32
    %cst_84 = arith.constant 9.99999996E-13 : f32
    %301 = arith.maximumf %300, %cst_84 : f32
    %cst_85 = arith.constant 1.600000e+01 : f32
    %302 = arith.mulf %301, %cst_85 : f32
    %cst_86 = arith.constant 1.000000e+00 : f32
    %303 = arith.divf %cst_86, %302 : f32
    %cst_87 = arith.constant 1.000000e+30 : f32
    %304 = vector.broadcast %cst_87 : f32 to vector<8x8xf32>
    %305 = arith.select %263, %256, %304 : vector<8x8xi1>, vector<8x8xf32>
    %cst_88 = arith.constant 1.000000e+30 : f32
    %306 = vector.broadcast %cst_88 : f32 to vector<8x8xf32>
    %307 = arith.select %268, %257, %306 : vector<8x8xi1>, vector<8x8xf32>
    %cst_89 = arith.constant 1.000000e+30 : f32
    %308 = vector.broadcast %cst_89 : f32 to vector<8x8xf32>
    %309 = arith.select %273, %258, %308 : vector<8x8xi1>, vector<8x8xf32>
    %cst_90 = arith.constant 0.000000e+00 : f32
    %310 = vector.broadcast %cst_90 : f32 to vector<8x8xf32>
    %311 = arith.subf %310, %305 : vector<8x8xf32>
    %312 = vector.broadcast %303 : f32 to vector<8x8xf32>
    %313 = arith.mulf %311, %312 : vector<8x8xf32>
    %314 = math.exp %313 : vector<8x8xf32>
    %315 = vector.shape_cast %314 : vector<8x8xf32> to vector<1x8x8xf32>
    %cst_91 = arith.constant dense<0.000000e+00> : vector<1xf32>
    %316 = vector.multi_reduction <add>, %315, %cst_91 [1, 2] : vector<1x8x8xf32> to vector<1xf32>
    %317 = vector.shape_cast %316 : vector<1xf32> to vector<1x1x1xf32>
    %318 = vector.extract %317[0, 0, 0] : f32 from vector<1x1x1xf32>
    %319 = arith.mulf %314, %314 : vector<8x8xf32>
    %320 = vector.shape_cast %319 : vector<8x8xf32> to vector<1x8x8xf32>
    %cst_92 = arith.constant dense<0.000000e+00> : vector<1xf32>
    %321 = vector.multi_reduction <add>, %320, %cst_92 [1, 2] : vector<1x8x8xf32> to vector<1xf32>
    %322 = vector.shape_cast %321 : vector<1xf32> to vector<1x1x1xf32>
    %323 = vector.extract %322[0, 0, 0] : f32 from vector<1x1x1xf32>
    %324 = arith.addf %318, %323 : f32
    %325 = arith.mulf %319, %319 : vector<8x8xf32>
    %326 = vector.shape_cast %325 : vector<8x8xf32> to vector<1x8x8xf32>
    %cst_93 = arith.constant dense<0.000000e+00> : vector<1xf32>
    %327 = vector.multi_reduction <add>, %326, %cst_93 [1, 2] : vector<1x8x8xf32> to vector<1xf32>
    %328 = vector.shape_cast %327 : vector<1xf32> to vector<1x1x1xf32>
    %329 = vector.extract %328[0, 0, 0] : f32 from vector<1x1x1xf32>
    %330 = arith.addf %324, %329 : f32
    %331 = arith.mulf %325, %325 : vector<8x8xf32>
    %332 = vector.shape_cast %331 : vector<8x8xf32> to vector<1x8x8xf32>
    %cst_94 = arith.constant dense<0.000000e+00> : vector<1xf32>
    %333 = vector.multi_reduction <add>, %332, %cst_94 [1, 2] : vector<1x8x8xf32> to vector<1xf32>
    %334 = vector.shape_cast %333 : vector<1xf32> to vector<1x1x1xf32>
    %335 = vector.extract %334[0, 0, 0] : f32 from vector<1x1x1xf32>
    %336 = arith.addf %330, %335 : f32
    %337 = arith.mulf %331, %331 : vector<8x8xf32>
    %338 = vector.shape_cast %337 : vector<8x8xf32> to vector<1x8x8xf32>
    %cst_95 = arith.constant dense<0.000000e+00> : vector<1xf32>
    %339 = vector.multi_reduction <add>, %338, %cst_95 [1, 2] : vector<1x8x8xf32> to vector<1xf32>
    %340 = vector.shape_cast %339 : vector<1xf32> to vector<1x1x1xf32>
    %341 = vector.extract %340[0, 0, 0] : f32 from vector<1x1x1xf32>
    %342 = arith.addf %336, %341 : f32
    %343 = arith.mulf %227, %227 : f32
    %344 = arith.divf %342, %343 : f32
    %cst_96 = arith.constant 0.000000e+00 : f32
    %345 = vector.broadcast %cst_96 : f32 to vector<8x8xf32>
    %346 = arith.subf %345, %307 : vector<8x8xf32>
    %347 = vector.broadcast %303 : f32 to vector<8x8xf32>
    %348 = arith.mulf %346, %347 : vector<8x8xf32>
    %349 = math.exp %348 : vector<8x8xf32>
    %350 = vector.shape_cast %349 : vector<8x8xf32> to vector<1x8x8xf32>
    %cst_97 = arith.constant dense<0.000000e+00> : vector<1xf32>
    %351 = vector.multi_reduction <add>, %350, %cst_97 [1, 2] : vector<1x8x8xf32> to vector<1xf32>
    %352 = vector.shape_cast %351 : vector<1xf32> to vector<1x1x1xf32>
    %353 = vector.extract %352[0, 0, 0] : f32 from vector<1x1x1xf32>
    %354 = arith.mulf %349, %349 : vector<8x8xf32>
    %355 = vector.shape_cast %354 : vector<8x8xf32> to vector<1x8x8xf32>
    %cst_98 = arith.constant dense<0.000000e+00> : vector<1xf32>
    %356 = vector.multi_reduction <add>, %355, %cst_98 [1, 2] : vector<1x8x8xf32> to vector<1xf32>
    %357 = vector.shape_cast %356 : vector<1xf32> to vector<1x1x1xf32>
    %358 = vector.extract %357[0, 0, 0] : f32 from vector<1x1x1xf32>
    %359 = arith.addf %353, %358 : f32
    %360 = arith.mulf %354, %354 : vector<8x8xf32>
    %361 = vector.shape_cast %360 : vector<8x8xf32> to vector<1x8x8xf32>
    %cst_99 = arith.constant dense<0.000000e+00> : vector<1xf32>
    %362 = vector.multi_reduction <add>, %361, %cst_99 [1, 2] : vector<1x8x8xf32> to vector<1xf32>
    %363 = vector.shape_cast %362 : vector<1xf32> to vector<1x1x1xf32>
    %364 = vector.extract %363[0, 0, 0] : f32 from vector<1x1x1xf32>
    %365 = arith.addf %359, %364 : f32
    %366 = arith.mulf %360, %360 : vector<8x8xf32>
    %367 = vector.shape_cast %366 : vector<8x8xf32> to vector<1x8x8xf32>
    %cst_100 = arith.constant dense<0.000000e+00> : vector<1xf32>
    %368 = vector.multi_reduction <add>, %367, %cst_100 [1, 2] : vector<1x8x8xf32> to vector<1xf32>
    %369 = vector.shape_cast %368 : vector<1xf32> to vector<1x1x1xf32>
    %370 = vector.extract %369[0, 0, 0] : f32 from vector<1x1x1xf32>
    %371 = arith.addf %365, %370 : f32
    %372 = arith.mulf %366, %366 : vector<8x8xf32>
    %373 = vector.shape_cast %372 : vector<8x8xf32> to vector<1x8x8xf32>
    %cst_101 = arith.constant dense<0.000000e+00> : vector<1xf32>
    %374 = vector.multi_reduction <add>, %373, %cst_101 [1, 2] : vector<1x8x8xf32> to vector<1xf32>
    %375 = vector.shape_cast %374 : vector<1xf32> to vector<1x1x1xf32>
    %376 = vector.extract %375[0, 0, 0] : f32 from vector<1x1x1xf32>
    %377 = arith.addf %371, %376 : f32
    %378 = arith.mulf %229, %229 : f32
    %379 = arith.divf %377, %378 : f32
    %cst_102 = arith.constant 0.000000e+00 : f32
    %380 = vector.broadcast %cst_102 : f32 to vector<8x8xf32>
    %381 = arith.subf %380, %309 : vector<8x8xf32>
    %382 = vector.broadcast %303 : f32 to vector<8x8xf32>
    %383 = arith.mulf %381, %382 : vector<8x8xf32>
    %384 = math.exp %383 : vector<8x8xf32>
    %385 = vector.shape_cast %384 : vector<8x8xf32> to vector<1x8x8xf32>
    %cst_103 = arith.constant dense<0.000000e+00> : vector<1xf32>
    %386 = vector.multi_reduction <add>, %385, %cst_103 [1, 2] : vector<1x8x8xf32> to vector<1xf32>
    %387 = vector.shape_cast %386 : vector<1xf32> to vector<1x1x1xf32>
    %388 = vector.extract %387[0, 0, 0] : f32 from vector<1x1x1xf32>
    %389 = arith.mulf %384, %384 : vector<8x8xf32>
    %390 = vector.shape_cast %389 : vector<8x8xf32> to vector<1x8x8xf32>
    %cst_104 = arith.constant dense<0.000000e+00> : vector<1xf32>
    %391 = vector.multi_reduction <add>, %390, %cst_104 [1, 2] : vector<1x8x8xf32> to vector<1xf32>
    %392 = vector.shape_cast %391 : vector<1xf32> to vector<1x1x1xf32>
    %393 = vector.extract %392[0, 0, 0] : f32 from vector<1x1x1xf32>
    %394 = arith.addf %388, %393 : f32
    %395 = arith.mulf %389, %389 : vector<8x8xf32>
    %396 = vector.shape_cast %395 : vector<8x8xf32> to vector<1x8x8xf32>
    %cst_105 = arith.constant dense<0.000000e+00> : vector<1xf32>
    %397 = vector.multi_reduction <add>, %396, %cst_105 [1, 2] : vector<1x8x8xf32> to vector<1xf32>
    %398 = vector.shape_cast %397 : vector<1xf32> to vector<1x1x1xf32>
    %399 = vector.extract %398[0, 0, 0] : f32 from vector<1x1x1xf32>
    %400 = arith.addf %394, %399 : f32
    %401 = arith.mulf %395, %395 : vector<8x8xf32>
    %402 = vector.shape_cast %401 : vector<8x8xf32> to vector<1x8x8xf32>
    %cst_106 = arith.constant dense<0.000000e+00> : vector<1xf32>
    %403 = vector.multi_reduction <add>, %402, %cst_106 [1, 2] : vector<1x8x8xf32> to vector<1xf32>
    %404 = vector.shape_cast %403 : vector<1xf32> to vector<1x1x1xf32>
    %405 = vector.extract %404[0, 0, 0] : f32 from vector<1x1x1xf32>
    %406 = arith.addf %400, %405 : f32
    %407 = arith.mulf %401, %401 : vector<8x8xf32>
    %408 = vector.shape_cast %407 : vector<8x8xf32> to vector<1x8x8xf32>
    %cst_107 = arith.constant dense<0.000000e+00> : vector<1xf32>
    %409 = vector.multi_reduction <add>, %408, %cst_107 [1, 2] : vector<1x8x8xf32> to vector<1xf32>
    %410 = vector.shape_cast %409 : vector<1xf32> to vector<1x1x1xf32>
    %411 = vector.extract %410[0, 0, 0] : f32 from vector<1x1x1xf32>
    %412 = arith.addf %406, %411 : f32
    %413 = arith.mulf %227, %229 : f32
    %414 = arith.divf %412, %413 : f32
    %415 = arith.addf %344, %379 : f32
    %cst_108 = arith.constant 2.000000e+00 : f32
    %416 = arith.mulf %cst_108, %414 : f32
    %417 = arith.subf %415, %416 : f32
    %418 = vector.broadcast %417 : f32 to vector<1x128xf32>
    %c1_109 = arith.constant 1 : index
    %c0_110 = arith.constant 0 : index
    %c0_111 = arith.constant 0 : index
    %419 = vector.load %arg5[%c1_109, %c0_110, %c0_111] : memref<4x1x128xf32, #tpu.memory_space<vmem>>, vector<1x1x128xf32>
    %420 = vector.shape_cast %419 : vector<1x1x128xf32> to vector<1x128xf32>
    %421 = vector.shape_cast %418 : vector<1x128xf32> to vector<1x1x128xf32>
    tpu.vector_store %arg5[%c1_109, %c0_110, %c0_111], %421 {strides = array<i32>} : memref<4x1x128xf32, #tpu.memory_space<vmem>>, vector<1x1x128xf32>,
    %c4_i32_112 = arith.constant 4 : i32
    %422 = arith.muli %arg0, %c4_i32_112 : i32
    %c2_i32 = arith.constant 2 : i32
    %423 = arith.addi %422, %c2_i32 : i32
    %424 = arith.index_cast %423 : i32 to index
    %c0_113 = arith.constant 0 : index
    %425 = memref.load %arg1[%424, %c0_113] : memref<8x2xi32, #tpu.memory_space<smem>>
    %426 = arith.index_cast %423 : i32 to index
    %c1_114 = arith.constant 1 : index
    %427 = memref.load %arg1[%426, %c1_114] : memref<8x2xi32, #tpu.memory_space<smem>>
    %428 = arith.sitofp %425 : i32 to f32
    %cst_115 = arith.constant 1.000000e+00 : f32
    %429 = arith.maximumf %428, %cst_115 : f32
    %430 = arith.sitofp %427 : i32 to f32
    %cst_116 = arith.constant 1.000000e+00 : f32
    %431 = arith.maximumf %430, %cst_116 : f32
    %432 = vector.broadcast %425 : i32 to vector<8x1xi32>
    %433 = arith.cmpi slt, %17, %432 : vector<8x1xi32>
    %434 = arith.extui %433 : vector<8x1xi1> to vector<8x1xi32>
    %435 = arith.sitofp %434 : vector<8x1xi32> to vector<8x1xf32>
    %436 = vector.broadcast %427 : i32 to vector<8x1xi32>
    %437 = arith.cmpi slt, %17, %436 : vector<8x1xi32>
    %438 = arith.extui %437 : vector<8x1xi1> to vector<8x1xi32>
    %439 = arith.sitofp %438 : vector<8x1xi32> to vector<8x1xf32>
    %c2 = arith.constant 2 : index
    %c0_117 = arith.constant 0 : index
    %c0_118 = arith.constant 0 : index
    %440 = vector.load %arg2[%c2, %c0_117, %c0_118] : memref<4x8x1xi32, #tpu.memory_space<vmem>>, vector<1x8x1xi32>
    %441 = vector.shape_cast %440 : vector<1x8x1xi32> to vector<8x1xi32>
    %442 = vector.broadcast %441 : vector<8x1xi32> to vector<8x16xi32>
    %443 = arith.cmpi eq, %14, %442 : vector<8x16xi32>
    %cst_119 = arith.constant 0.000000e+00 : f32
    %444 = vector.shape_cast %435 : vector<8x1xf32> to vector<8x1xf32>
    %445 = vector.broadcast %444 : vector<8x1xf32> to vector<8x16xf32>
    %446 = vector.broadcast %cst_119 : f32 to vector<8x16xf32>
    %447 = arith.select %443, %445, %446 : vector<8x16xi1>, vector<8x16xf32>
    %c2_120 = arith.constant 2 : index
    %c0_121 = arith.constant 0 : index
    %c0_122 = arith.constant 0 : index
    %448 = vector.load %arg3[%c2_120, %c0_121, %c0_122] : memref<4x8x1xi32, #tpu.memory_space<vmem>>, vector<1x8x1xi32>
    %449 = vector.shape_cast %448 : vector<1x8x1xi32> to vector<8x1xi32>
    %450 = vector.broadcast %449 : vector<8x1xi32> to vector<8x16xi32>
    %451 = arith.cmpi eq, %14, %450 : vector<8x16xi32>
    %cst_123 = arith.constant 0.000000e+00 : f32
    %452 = vector.shape_cast %439 : vector<8x1xf32> to vector<8x1xf32>
    %453 = vector.broadcast %452 : vector<8x1xf32> to vector<8x16xf32>
    %454 = vector.broadcast %cst_123 : f32 to vector<8x16xf32>
    %455 = arith.select %451, %453, %454 : vector<8x16xi1>, vector<8x16xf32>
    %cst_124 = arith.constant dense<0.000000e+00> : vector<8x16xf32>
    %456 = tpu.matmul %447, %13, %cst_124 {dimension_numbers = #tpu.dot_dimension_numbers<[1], [0], [0], [1], [0, 0, 1, 1], [], []>} : vector<8x16xf32>, vector<16x16xf32>, vector<8x16xf32> -> vector<8x16xf32>
    %cst_125 = arith.constant dense<0.000000e+00> : vector<8x16xf32>
    %457 = tpu.matmul %455, %13, %cst_125 {dimension_numbers = #tpu.dot_dimension_numbers<[1], [0], [0], [1], [0, 0, 1, 1], [], []>} : vector<8x16xf32>, vector<16x16xf32>, vector<8x16xf32> -> vector<8x16xf32>
    %cst_126 = arith.constant dense<0.000000e+00> : vector<8x8xf32>
    %458 = tpu.matmul %456, %447, %cst_126 {dimension_numbers = #tpu.dot_dimension_numbers<[1], [1], [0], [0], [0, 0, 1, 0], [], []>} : vector<8x16xf32>, vector<8x16xf32>, vector<8x8xf32> -> vector<8x8xf32>
    %cst_127 = arith.constant dense<0.000000e+00> : vector<8x8xf32>
    %459 = tpu.matmul %457, %455, %cst_127 {dimension_numbers = #tpu.dot_dimension_numbers<[1], [1], [0], [0], [0, 0, 1, 0], [], []>} : vector<8x16xf32>, vector<8x16xf32>, vector<8x8xf32> -> vector<8x8xf32>
    %cst_128 = arith.constant dense<0.000000e+00> : vector<8x8xf32>
    %460 = tpu.matmul %456, %455, %cst_128 {dimension_numbers = #tpu.dot_dimension_numbers<[1], [1], [0], [0], [0, 0, 1, 0], [], []>} : vector<8x16xf32>, vector<8x16xf32>, vector<8x8xf32> -> vector<8x8xf32>
    %461 = vector.broadcast %425 : i32 to vector<8x8xi32>
    %462 = arith.cmpi slt, %15, %461 : vector<8x8xi32>
    %463 = vector.broadcast %425 : i32 to vector<8x8xi32>
    %464 = arith.cmpi slt, %16, %463 : vector<8x8xi32>
    %465 = arith.andi %462, %464 : vector<8x8xi1>
    %466 = vector.broadcast %427 : i32 to vector<8x8xi32>
    %467 = arith.cmpi slt, %15, %466 : vector<8x8xi32>
    %468 = vector.broadcast %427 : i32 to vector<8x8xi32>
    %469 = arith.cmpi slt, %16, %468 : vector<8x8xi32>
    %470 = arith.andi %467, %469 : vector<8x8xi1>
    %471 = vector.broadcast %425 : i32 to vector<8x8xi32>
    %472 = arith.cmpi slt, %15, %471 : vector<8x8xi32>
    %473 = vector.broadcast %427 : i32 to vector<8x8xi32>
    %474 = arith.cmpi slt, %16, %473 : vector<8x8xi32>
    %475 = arith.andi %472, %474 : vector<8x8xi1>
    %476 = arith.addf %429, %431 : f32
    %cst_129 = arith.constant 0.000000e+00 : f32
    %477 = vector.broadcast %cst_129 : f32 to vector<8x8xf32>
    %478 = arith.select %465, %458, %477 : vector<8x8xi1>, vector<8x8xf32>
    %479 = vector.shape_cast %478 : vector<8x8xf32> to vector<1x8x8xf32>
    %cst_130 = arith.constant dense<0.000000e+00> : vector<1xf32>
    %480 = vector.multi_reduction <add>, %479, %cst_130 [1, 2] : vector<1x8x8xf32> to vector<1xf32>
    %481 = vector.shape_cast %480 : vector<1xf32> to vector<1x1x1xf32>
    %482 = vector.extract %481[0, 0, 0] : f32 from vector<1x1x1xf32>
    %cst_131 = arith.constant 0.000000e+00 : f32
    %483 = vector.broadcast %cst_131 : f32 to vector<8x8xf32>
    %484 = arith.select %470, %459, %483 : vector<8x8xi1>, vector<8x8xf32>
    %485 = vector.shape_cast %484 : vector<8x8xf32> to vector<1x8x8xf32>
    %cst_132 = arith.constant dense<0.000000e+00> : vector<1xf32>
    %486 = vector.multi_reduction <add>, %485, %cst_132 [1, 2] : vector<1x8x8xf32> to vector<1xf32>
    %487 = vector.shape_cast %486 : vector<1xf32> to vector<1x1x1xf32>
    %488 = vector.extract %487[0, 0, 0] : f32 from vector<1x1x1xf32>
    %489 = arith.addf %482, %488 : f32
    %cst_133 = arith.constant 0.000000e+00 : f32
    %490 = vector.broadcast %cst_133 : f32 to vector<8x8xf32>
    %491 = arith.select %475, %460, %490 : vector<8x8xi1>, vector<8x8xf32>
    %492 = vector.shape_cast %491 : vector<8x8xf32> to vector<1x8x8xf32>
    %cst_134 = arith.constant dense<0.000000e+00> : vector<1xf32>
    %493 = vector.multi_reduction <add>, %492, %cst_134 [1, 2] : vector<1x8x8xf32> to vector<1xf32>
    %494 = vector.shape_cast %493 : vector<1xf32> to vector<1x1x1xf32>
    %495 = vector.extract %494[0, 0, 0] : f32 from vector<1x1x1xf32>
    %cst_135 = arith.constant 2.000000e+00 : f32
    %496 = arith.mulf %cst_135, %495 : f32
    %497 = arith.addf %489, %496 : f32
    %498 = arith.mulf %476, %476 : f32
    %499 = arith.subf %498, %476 : f32
    %cst_136 = arith.constant 1.000000e+00 : f32
    %500 = arith.maximumf %499, %cst_136 : f32
    %501 = arith.divf %497, %500 : f32
    %cst_137 = arith.constant 4.000000e+00 : f32
    %502 = arith.divf %501, %cst_137 : f32
    %cst_138 = arith.constant 9.99999996E-13 : f32
    %503 = arith.maximumf %502, %cst_138 : f32
    %cst_139 = arith.constant 1.600000e+01 : f32
    %504 = arith.mulf %503, %cst_139 : f32
    %cst_140 = arith.constant 1.000000e+00 : f32
    %505 = arith.divf %cst_140, %504 : f32
    %cst_141 = arith.constant 1.000000e+30 : f32
    %506 = vector.broadcast %cst_141 : f32 to vector<8x8xf32>
    %507 = arith.select %465, %458, %506 : vector<8x8xi1>, vector<8x8xf32>
    %cst_142 = arith.constant 1.000000e+30 : f32
    %508 = vector.broadcast %cst_142 : f32 to vector<8x8xf32>
    %509 = arith.select %470, %459, %508 : vector<8x8xi1>, vector<8x8xf32>
    %cst_143 = arith.constant 1.000000e+30 : f32
    %510 = vector.broadcast %cst_143 : f32 to vector<8x8xf32>
    %511 = arith.select %475, %460, %510 : vector<8x8xi1>, vector<8x8xf32>
    %cst_144 = arith.constant 0.000000e+00 : f32
    %512 = vector.broadcast %cst_144 : f32 to vector<8x8xf32>
    %513 = arith.subf %512, %507 : vector<8x8xf32>
    %514 = vector.broadcast %505 : f32 to vector<8x8xf32>
    %515 = arith.mulf %513, %514 : vector<8x8xf32>
    %516 = math.exp %515 : vector<8x8xf32>
    %517 = vector.shape_cast %516 : vector<8x8xf32> to vector<1x8x8xf32>
    %cst_145 = arith.constant dense<0.000000e+00> : vector<1xf32>
    %518 = vector.multi_reduction <add>, %517, %cst_145 [1, 2] : vector<1x8x8xf32> to vector<1xf32>
    %519 = vector.shape_cast %518 : vector<1xf32> to vector<1x1x1xf32>
    %520 = vector.extract %519[0, 0, 0] : f32 from vector<1x1x1xf32>
    %521 = arith.mulf %516, %516 : vector<8x8xf32>
    %522 = vector.shape_cast %521 : vector<8x8xf32> to vector<1x8x8xf32>
    %cst_146 = arith.constant dense<0.000000e+00> : vector<1xf32>
    %523 = vector.multi_reduction <add>, %522, %cst_146 [1, 2] : vector<1x8x8xf32> to vector<1xf32>
    %524 = vector.shape_cast %523 : vector<1xf32> to vector<1x1x1xf32>
    %525 = vector.extract %524[0, 0, 0] : f32 from vector<1x1x1xf32>
    %526 = arith.addf %520, %525 : f32
    %527 = arith.mulf %521, %521 : vector<8x8xf32>
    %528 = vector.shape_cast %527 : vector<8x8xf32> to vector<1x8x8xf32>
    %cst_147 = arith.constant dense<0.000000e+00> : vector<1xf32>
    %529 = vector.multi_reduction <add>, %528, %cst_147 [1, 2] : vector<1x8x8xf32> to vector<1xf32>
    %530 = vector.shape_cast %529 : vector<1xf32> to vector<1x1x1xf32>
    %531 = vector.extract %530[0, 0, 0] : f32 from vector<1x1x1xf32>
    %532 = arith.addf %526, %531 : f32
    %533 = arith.mulf %527, %527 : vector<8x8xf32>
    %534 = vector.shape_cast %533 : vector<8x8xf32> to vector<1x8x8xf32>
    %cst_148 = arith.constant dense<0.000000e+00> : vector<1xf32>
    %535 = vector.multi_reduction <add>, %534, %cst_148 [1, 2] : vector<1x8x8xf32> to vector<1xf32>
    %536 = vector.shape_cast %535 : vector<1xf32> to vector<1x1x1xf32>
    %537 = vector.extract %536[0, 0, 0] : f32 from vector<1x1x1xf32>
    %538 = arith.addf %532, %537 : f32
    %539 = arith.mulf %533, %533 : vector<8x8xf32>
    %540 = vector.shape_cast %539 : vector<8x8xf32> to vector<1x8x8xf32>
    %cst_149 = arith.constant dense<0.000000e+00> : vector<1xf32>
    %541 = vector.multi_reduction <add>, %540, %cst_149 [1, 2] : vector<1x8x8xf32> to vector<1xf32>
    %542 = vector.shape_cast %541 : vector<1xf32> to vector<1x1x1xf32>
    %543 = vector.extract %542[0, 0, 0] : f32 from vector<1x1x1xf32>
    %544 = arith.addf %538, %543 : f32
    %545 = arith.mulf %429, %429 : f32
    %546 = arith.divf %544, %545 : f32
    %cst_150 = arith.constant 0.000000e+00 : f32
    %547 = vector.broadcast %cst_150 : f32 to vector<8x8xf32>
    %548 = arith.subf %547, %509 : vector<8x8xf32>
    %549 = vector.broadcast %505 : f32 to vector<8x8xf32>
    %550 = arith.mulf %548, %549 : vector<8x8xf32>
    %551 = math.exp %550 : vector<8x8xf32>
    %552 = vector.shape_cast %551 : vector<8x8xf32> to vector<1x8x8xf32>
    %cst_151 = arith.constant dense<0.000000e+00> : vector<1xf32>
    %553 = vector.multi_reduction <add>, %552, %cst_151 [1, 2] : vector<1x8x8xf32> to vector<1xf32>
    %554 = vector.shape_cast %553 : vector<1xf32> to vector<1x1x1xf32>
    %555 = vector.extract %554[0, 0, 0] : f32 from vector<1x1x1xf32>
    %556 = arith.mulf %551, %551 : vector<8x8xf32>
    %557 = vector.shape_cast %556 : vector<8x8xf32> to vector<1x8x8xf32>
    %cst_152 = arith.constant dense<0.000000e+00> : vector<1xf32>
    %558 = vector.multi_reduction <add>, %557, %cst_152 [1, 2] : vector<1x8x8xf32> to vector<1xf32>
    %559 = vector.shape_cast %558 : vector<1xf32> to vector<1x1x1xf32>
    %560 = vector.extract %559[0, 0, 0] : f32 from vector<1x1x1xf32>
    %561 = arith.addf %555, %560 : f32
    %562 = arith.mulf %556, %556 : vector<8x8xf32>
    %563 = vector.shape_cast %562 : vector<8x8xf32> to vector<1x8x8xf32>
    %cst_153 = arith.constant dense<0.000000e+00> : vector<1xf32>
    %564 = vector.multi_reduction <add>, %563, %cst_153 [1, 2] : vector<1x8x8xf32> to vector<1xf32>
    %565 = vector.shape_cast %564 : vector<1xf32> to vector<1x1x1xf32>
    %566 = vector.extract %565[0, 0, 0] : f32 from vector<1x1x1xf32>
    %567 = arith.addf %561, %566 : f32
    %568 = arith.mulf %562, %562 : vector<8x8xf32>
    %569 = vector.shape_cast %568 : vector<8x8xf32> to vector<1x8x8xf32>
    %cst_154 = arith.constant dense<0.000000e+00> : vector<1xf32>
    %570 = vector.multi_reduction <add>, %569, %cst_154 [1, 2] : vector<1x8x8xf32> to vector<1xf32>
    %571 = vector.shape_cast %570 : vector<1xf32> to vector<1x1x1xf32>
    %572 = vector.extract %571[0, 0, 0] : f32 from vector<1x1x1xf32>
    %573 = arith.addf %567, %572 : f32
    %574 = arith.mulf %568, %568 : vector<8x8xf32>
    %575 = vector.shape_cast %574 : vector<8x8xf32> to vector<1x8x8xf32>
    %cst_155 = arith.constant dense<0.000000e+00> : vector<1xf32>
    %576 = vector.multi_reduction <add>, %575, %cst_155 [1, 2] : vector<1x8x8xf32> to vector<1xf32>
    %577 = vector.shape_cast %576 : vector<1xf32> to vector<1x1x1xf32>
    %578 = vector.extract %577[0, 0, 0] : f32 from vector<1x1x1xf32>
    %579 = arith.addf %573, %578 : f32
    %580 = arith.mulf %431, %431 : f32
    %581 = arith.divf %579, %580 : f32
    %cst_156 = arith.constant 0.000000e+00 : f32
    %582 = vector.broadcast %cst_156 : f32 to vector<8x8xf32>
    %583 = arith.subf %582, %511 : vector<8x8xf32>
    %584 = vector.broadcast %505 : f32 to vector<8x8xf32>
    %585 = arith.mulf %583, %584 : vector<8x8xf32>
    %586 = math.exp %585 : vector<8x8xf32>
    %587 = vector.shape_cast %586 : vector<8x8xf32> to vector<1x8x8xf32>
    %cst_157 = arith.constant dense<0.000000e+00> : vector<1xf32>
    %588 = vector.multi_reduction <add>, %587, %cst_157 [1, 2] : vector<1x8x8xf32> to vector<1xf32>
    %589 = vector.shape_cast %588 : vector<1xf32> to vector<1x1x1xf32>
    %590 = vector.extract %589[0, 0, 0] : f32 from vector<1x1x1xf32>
    %591 = arith.mulf %586, %586 : vector<8x8xf32>
    %592 = vector.shape_cast %591 : vector<8x8xf32> to vector<1x8x8xf32>
    %cst_158 = arith.constant dense<0.000000e+00> : vector<1xf32>
    %593 = vector.multi_reduction <add>, %592, %cst_158 [1, 2] : vector<1x8x8xf32> to vector<1xf32>
    %594 = vector.shape_cast %593 : vector<1xf32> to vector<1x1x1xf32>
    %595 = vector.extract %594[0, 0, 0] : f32 from vector<1x1x1xf32>
    %596 = arith.addf %590, %595 : f32
    %597 = arith.mulf %591, %591 : vector<8x8xf32>
    %598 = vector.shape_cast %597 : vector<8x8xf32> to vector<1x8x8xf32>
    %cst_159 = arith.constant dense<0.000000e+00> : vector<1xf32>
    %599 = vector.multi_reduction <add>, %598, %cst_159 [1, 2] : vector<1x8x8xf32> to vector<1xf32>
    %600 = vector.shape_cast %599 : vector<1xf32> to vector<1x1x1xf32>
    %601 = vector.extract %600[0, 0, 0] : f32 from vector<1x1x1xf32>
    %602 = arith.addf %596, %601 : f32
    %603 = arith.mulf %597, %597 : vector<8x8xf32>
    %604 = vector.shape_cast %603 : vector<8x8xf32> to vector<1x8x8xf32>
    %cst_160 = arith.constant dense<0.000000e+00> : vector<1xf32>
    %605 = vector.multi_reduction <add>, %604, %cst_160 [1, 2] : vector<1x8x8xf32> to vector<1xf32>
    %606 = vector.shape_cast %605 : vector<1xf32> to vector<1x1x1xf32>
    %607 = vector.extract %606[0, 0, 0] : f32 from vector<1x1x1xf32>
    %608 = arith.addf %602, %607 : f32
    %609 = arith.mulf %603, %603 : vector<8x8xf32>
    %610 = vector.shape_cast %609 : vector<8x8xf32> to vector<1x8x8xf32>
    %cst_161 = arith.constant dense<0.000000e+00> : vector<1xf32>
    %611 = vector.multi_reduction <add>, %610, %cst_161 [1, 2] : vector<1x8x8xf32> to vector<1xf32>
    %612 = vector.shape_cast %611 : vector<1xf32> to vector<1x1x1xf32>
    %613 = vector.extract %612[0, 0, 0] : f32 from vector<1x1x1xf32>
    %614 = arith.addf %608, %613 : f32
    %615 = arith.mulf %429, %431 : f32
    %616 = arith.divf %614, %615 : f32
    %617 = arith.addf %546, %581 : f32
    %cst_162 = arith.constant 2.000000e+00 : f32
    %618 = arith.mulf %cst_162, %616 : f32
    %619 = arith.subf %617, %618 : f32
    %620 = vector.broadcast %619 : f32 to vector<1x128xf32>
    %c2_163 = arith.constant 2 : index
    %c0_164 = arith.constant 0 : index
    %c0_165 = arith.constant 0 : index
    %621 = vector.load %arg5[%c2_163, %c0_164, %c0_165] : memref<4x1x128xf32, #tpu.memory_space<vmem>>, vector<1x1x128xf32>
    %622 = vector.shape_cast %621 : vector<1x1x128xf32> to vector<1x128xf32>
    %623 = vector.shape_cast %620 : vector<1x128xf32> to vector<1x1x128xf32>
    tpu.vector_store %arg5[%c2_163, %c0_164, %c0_165], %623 {strides = array<i32>} : memref<4x1x128xf32, #tpu.memory_space<vmem>>, vector<1x1x128xf32>,
    %c4_i32_166 = arith.constant 4 : i32
    %624 = arith.muli %arg0, %c4_i32_166 : i32
    %c3_i32 = arith.constant 3 : i32
    %625 = arith.addi %624, %c3_i32 : i32
    %626 = arith.index_cast %625 : i32 to index
    %c0_167 = arith.constant 0 : index
    %627 = memref.load %arg1[%626, %c0_167] : memref<8x2xi32, #tpu.memory_space<smem>>
    %628 = arith.index_cast %625 : i32 to index
    %c1_168 = arith.constant 1 : index
    %629 = memref.load %arg1[%628, %c1_168] : memref<8x2xi32, #tpu.memory_space<smem>>
    %630 = arith.sitofp %627 : i32 to f32
    %cst_169 = arith.constant 1.000000e+00 : f32
    %631 = arith.maximumf %630, %cst_169 : f32
    %632 = arith.sitofp %629 : i32 to f32
    %cst_170 = arith.constant 1.000000e+00 : f32
    %633 = arith.maximumf %632, %cst_170 : f32
    %634 = vector.broadcast %627 : i32 to vector<8x1xi32>
    %635 = arith.cmpi slt, %17, %634 : vector<8x1xi32>
    %636 = arith.extui %635 : vector<8x1xi1> to vector<8x1xi32>
    %637 = arith.sitofp %636 : vector<8x1xi32> to vector<8x1xf32>
    %638 = vector.broadcast %629 : i32 to vector<8x1xi32>
    %639 = arith.cmpi slt, %17, %638 : vector<8x1xi32>
    %640 = arith.extui %639 : vector<8x1xi1> to vector<8x1xi32>
    %641 = arith.sitofp %640 : vector<8x1xi32> to vector<8x1xf32>
    %c3 = arith.constant 3 : index
    %c0_171 = arith.constant 0 : index
    %c0_172 = arith.constant 0 : index
    %642 = vector.load %arg2[%c3, %c0_171, %c0_172] : memref<4x8x1xi32, #tpu.memory_space<vmem>>, vector<1x8x1xi32>
    %643 = vector.shape_cast %642 : vector<1x8x1xi32> to vector<8x1xi32>
    %644 = vector.broadcast %643 : vector<8x1xi32> to vector<8x16xi32>
    %645 = arith.cmpi eq, %14, %644 : vector<8x16xi32>
    %cst_173 = arith.constant 0.000000e+00 : f32
    %646 = vector.shape_cast %637 : vector<8x1xf32> to vector<8x1xf32>
    %647 = vector.broadcast %646 : vector<8x1xf32> to vector<8x16xf32>
    %648 = vector.broadcast %cst_173 : f32 to vector<8x16xf32>
    %649 = arith.select %645, %647, %648 : vector<8x16xi1>, vector<8x16xf32>
    %c3_174 = arith.constant 3 : index
    %c0_175 = arith.constant 0 : index
    %c0_176 = arith.constant 0 : index
    %650 = vector.load %arg3[%c3_174, %c0_175, %c0_176] : memref<4x8x1xi32, #tpu.memory_space<vmem>>, vector<1x8x1xi32>
    %651 = vector.shape_cast %650 : vector<1x8x1xi32> to vector<8x1xi32>
    %652 = vector.broadcast %651 : vector<8x1xi32> to vector<8x16xi32>
    %653 = arith.cmpi eq, %14, %652 : vector<8x16xi32>
    %cst_177 = arith.constant 0.000000e+00 : f32
    %654 = vector.shape_cast %641 : vector<8x1xf32> to vector<8x1xf32>
    %655 = vector.broadcast %654 : vector<8x1xf32> to vector<8x16xf32>
    %656 = vector.broadcast %cst_177 : f32 to vector<8x16xf32>
    %657 = arith.select %653, %655, %656 : vector<8x16xi1>, vector<8x16xf32>
    %cst_178 = arith.constant dense<0.000000e+00> : vector<8x16xf32>
    %658 = tpu.matmul %649, %13, %cst_178 {dimension_numbers = #tpu.dot_dimension_numbers<[1], [0], [0], [1], [0, 0, 1, 1], [], []>} : vector<8x16xf32>, vector<16x16xf32>, vector<8x16xf32> -> vector<8x16xf32>
    %cst_179 = arith.constant dense<0.000000e+00> : vector<8x16xf32>
    %659 = tpu.matmul %657, %13, %cst_179 {dimension_numbers = #tpu.dot_dimension_numbers<[1], [0], [0], [1], [0, 0, 1, 1], [], []>} : vector<8x16xf32>, vector<16x16xf32>, vector<8x16xf32> -> vector<8x16xf32>
    %cst_180 = arith.constant dense<0.000000e+00> : vector<8x8xf32>
    %660 = tpu.matmul %658, %649, %cst_180 {dimension_numbers = #tpu.dot_dimension_numbers<[1], [1], [0], [0], [0, 0, 1, 0], [], []>} : vector<8x16xf32>, vector<8x16xf32>, vector<8x8xf32> -> vector<8x8xf32>
    %cst_181 = arith.constant dense<0.000000e+00> : vector<8x8xf32>
    %661 = tpu.matmul %659, %657, %cst_181 {dimension_numbers = #tpu.dot_dimension_numbers<[1], [1], [0], [0], [0, 0, 1, 0], [], []>} : vector<8x16xf32>, vector<8x16xf32>, vector<8x8xf32> -> vector<8x8xf32>
    %cst_182 = arith.constant dense<0.000000e+00> : vector<8x8xf32>
    %662 = tpu.matmul %658, %657, %cst_182 {dimension_numbers = #tpu.dot_dimension_numbers<[1], [1], [0], [0], [0, 0, 1, 0], [], []>} : vector<8x16xf32>, vector<8x16xf32>, vector<8x8xf32> -> vector<8x8xf32>
    %663 = vector.broadcast %627 : i32 to vector<8x8xi32>
    %664 = arith.cmpi slt, %15, %663 : vector<8x8xi32>
    %665 = vector.broadcast %627 : i32 to vector<8x8xi32>
    %666 = arith.cmpi slt, %16, %665 : vector<8x8xi32>
    %667 = arith.andi %664, %666 : vector<8x8xi1>
    %668 = vector.broadcast %629 : i32 to vector<8x8xi32>
    %669 = arith.cmpi slt, %15, %668 : vector<8x8xi32>
    %670 = vector.broadcast %629 : i32 to vector<8x8xi32>
    %671 = arith.cmpi slt, %16, %670 : vector<8x8xi32>
    %672 = arith.andi %669, %671 : vector<8x8xi1>
    %673 = vector.broadcast %627 : i32 to vector<8x8xi32>
    %674 = arith.cmpi slt, %15, %673 : vector<8x8xi32>
    %675 = vector.broadcast %629 : i32 to vector<8x8xi32>
    %676 = arith.cmpi slt, %16, %675 : vector<8x8xi32>
    %677 = arith.andi %674, %676 : vector<8x8xi1>
    %678 = arith.addf %631, %633 : f32
    %cst_183 = arith.constant 0.000000e+00 : f32
    %679 = vector.broadcast %cst_183 : f32 to vector<8x8xf32>
    %680 = arith.select %667, %660, %679 : vector<8x8xi1>, vector<8x8xf32>
    %681 = vector.shape_cast %680 : vector<8x8xf32> to vector<1x8x8xf32>
    %cst_184 = arith.constant dense<0.000000e+00> : vector<1xf32>
    %682 = vector.multi_reduction <add>, %681, %cst_184 [1, 2] : vector<1x8x8xf32> to vector<1xf32>
    %683 = vector.shape_cast %682 : vector<1xf32> to vector<1x1x1xf32>
    %684 = vector.extract %683[0, 0, 0] : f32 from vector<1x1x1xf32>
    %cst_185 = arith.constant 0.000000e+00 : f32
    %685 = vector.broadcast %cst_185 : f32 to vector<8x8xf32>
    %686 = arith.select %672, %661, %685 : vector<8x8xi1>, vector<8x8xf32>
    %687 = vector.shape_cast %686 : vector<8x8xf32> to vector<1x8x8xf32>
    %cst_186 = arith.constant dense<0.000000e+00> : vector<1xf32>
    %688 = vector.multi_reduction <add>, %687, %cst_186 [1, 2] : vector<1x8x8xf32> to vector<1xf32>
    %689 = vector.shape_cast %688 : vector<1xf32> to vector<1x1x1xf32>
    %690 = vector.extract %689[0, 0, 0] : f32 from vector<1x1x1xf32>
    %691 = arith.addf %684, %690 : f32
    %cst_187 = arith.constant 0.000000e+00 : f32
    %692 = vector.broadcast %cst_187 : f32 to vector<8x8xf32>
    %693 = arith.select %677, %662, %692 : vector<8x8xi1>, vector<8x8xf32>
    %694 = vector.shape_cast %693 : vector<8x8xf32> to vector<1x8x8xf32>
    %cst_188 = arith.constant dense<0.000000e+00> : vector<1xf32>
    %695 = vector.multi_reduction <add>, %694, %cst_188 [1, 2] : vector<1x8x8xf32> to vector<1xf32>
    %696 = vector.shape_cast %695 : vector<1xf32> to vector<1x1x1xf32>
    %697 = vector.extract %696[0, 0, 0] : f32 from vector<1x1x1xf32>
    %cst_189 = arith.constant 2.000000e+00 : f32
    %698 = arith.mulf %cst_189, %697 : f32
    %699 = arith.addf %691, %698 : f32
    %700 = arith.mulf %678, %678 : f32
    %701 = arith.subf %700, %678 : f32
    %cst_190 = arith.constant 1.000000e+00 : f32
    %702 = arith.maximumf %701, %cst_190 : f32
    %703 = arith.divf %699, %702 : f32
    %cst_191 = arith.constant 4.000000e+00 : f32
    %704 = arith.divf %703, %cst_191 : f32
    %cst_192 = arith.constant 9.99999996E-13 : f32
    %705 = arith.maximumf %704, %cst_192 : f32
    %cst_193 = arith.constant 1.600000e+01 : f32
    %706 = arith.mulf %705, %cst_193 : f32
    %cst_194 = arith.constant 1.000000e+00 : f32
    %707 = arith.divf %cst_194, %706 : f32
    %cst_195 = arith.constant 1.000000e+30 : f32
    %708 = vector.broadcast %cst_195 : f32 to vector<8x8xf32>
    %709 = arith.select %667, %660, %708 : vector<8x8xi1>, vector<8x8xf32>
    %cst_196 = arith.constant 1.000000e+30 : f32
    %710 = vector.broadcast %cst_196 : f32 to vector<8x8xf32>
    %711 = arith.select %672, %661, %710 : vector<8x8xi1>, vector<8x8xf32>
    %cst_197 = arith.constant 1.000000e+30 : f32
    %712 = vector.broadcast %cst_197 : f32 to vector<8x8xf32>
    %713 = arith.select %677, %662, %712 : vector<8x8xi1>, vector<8x8xf32>
    %cst_198 = arith.constant 0.000000e+00 : f32
    %714 = vector.broadcast %cst_198 : f32 to vector<8x8xf32>
    %715 = arith.subf %714, %709 : vector<8x8xf32>
    %716 = vector.broadcast %707 : f32 to vector<8x8xf32>
    %717 = arith.mulf %715, %716 : vector<8x8xf32>
    %718 = math.exp %717 : vector<8x8xf32>
    %719 = vector.shape_cast %718 : vector<8x8xf32> to vector<1x8x8xf32>
    %cst_199 = arith.constant dense<0.000000e+00> : vector<1xf32>
    %720 = vector.multi_reduction <add>, %719, %cst_199 [1, 2] : vector<1x8x8xf32> to vector<1xf32>
    %721 = vector.shape_cast %720 : vector<1xf32> to vector<1x1x1xf32>
    %722 = vector.extract %721[0, 0, 0] : f32 from vector<1x1x1xf32>
    %723 = arith.mulf %718, %718 : vector<8x8xf32>
    %724 = vector.shape_cast %723 : vector<8x8xf32> to vector<1x8x8xf32>
    %cst_200 = arith.constant dense<0.000000e+00> : vector<1xf32>
    %725 = vector.multi_reduction <add>, %724, %cst_200 [1, 2] : vector<1x8x8xf32> to vector<1xf32>
    %726 = vector.shape_cast %725 : vector<1xf32> to vector<1x1x1xf32>
    %727 = vector.extract %726[0, 0, 0] : f32 from vector<1x1x1xf32>
    %728 = arith.addf %722, %727 : f32
    %729 = arith.mulf %723, %723 : vector<8x8xf32>
    %730 = vector.shape_cast %729 : vector<8x8xf32> to vector<1x8x8xf32>
    %cst_201 = arith.constant dense<0.000000e+00> : vector<1xf32>
    %731 = vector.multi_reduction <add>, %730, %cst_201 [1, 2] : vector<1x8x8xf32> to vector<1xf32>
    %732 = vector.shape_cast %731 : vector<1xf32> to vector<1x1x1xf32>
    %733 = vector.extract %732[0, 0, 0] : f32 from vector<1x1x1xf32>
    %734 = arith.addf %728, %733 : f32
    %735 = arith.mulf %729, %729 : vector<8x8xf32>
    %736 = vector.shape_cast %735 : vector<8x8xf32> to vector<1x8x8xf32>
    %cst_202 = arith.constant dense<0.000000e+00> : vector<1xf32>
    %737 = vector.multi_reduction <add>, %736, %cst_202 [1, 2] : vector<1x8x8xf32> to vector<1xf32>
    %738 = vector.shape_cast %737 : vector<1xf32> to vector<1x1x1xf32>
    %739 = vector.extract %738[0, 0, 0] : f32 from vector<1x1x1xf32>
    %740 = arith.addf %734, %739 : f32
    %741 = arith.mulf %735, %735 : vector<8x8xf32>
    %742 = vector.shape_cast %741 : vector<8x8xf32> to vector<1x8x8xf32>
    %cst_203 = arith.constant dense<0.000000e+00> : vector<1xf32>
    %743 = vector.multi_reduction <add>, %742, %cst_203 [1, 2] : vector<1x8x8xf32> to vector<1xf32>
    %744 = vector.shape_cast %743 : vector<1xf32> to vector<1x1x1xf32>
    %745 = vector.extract %744[0, 0, 0] : f32 from vector<1x1x1xf32>
    %746 = arith.addf %740, %745 : f32
    %747 = arith.mulf %631, %631 : f32
    %748 = arith.divf %746, %747 : f32
    %cst_204 = arith.constant 0.000000e+00 : f32
    %749 = vector.broadcast %cst_204 : f32 to vector<8x8xf32>
    %750 = arith.subf %749, %711 : vector<8x8xf32>
    %751 = vector.broadcast %707 : f32 to vector<8x8xf32>
    %752 = arith.mulf %750, %751 : vector<8x8xf32>
    %753 = math.exp %752 : vector<8x8xf32>
    %754 = vector.shape_cast %753 : vector<8x8xf32> to vector<1x8x8xf32>
    %cst_205 = arith.constant dense<0.000000e+00> : vector<1xf32>
    %755 = vector.multi_reduction <add>, %754, %cst_205 [1, 2] : vector<1x8x8xf32> to vector<1xf32>
    %756 = vector.shape_cast %755 : vector<1xf32> to vector<1x1x1xf32>
    %757 = vector.extract %756[0, 0, 0] : f32 from vector<1x1x1xf32>
    %758 = arith.mulf %753, %753 : vector<8x8xf32>
    %759 = vector.shape_cast %758 : vector<8x8xf32> to vector<1x8x8xf32>
    %cst_206 = arith.constant dense<0.000000e+00> : vector<1xf32>
    %760 = vector.multi_reduction <add>, %759, %cst_206 [1, 2] : vector<1x8x8xf32> to vector<1xf32>
    %761 = vector.shape_cast %760 : vector<1xf32> to vector<1x1x1xf32>
    %762 = vector.extract %761[0, 0, 0] : f32 from vector<1x1x1xf32>
    %763 = arith.addf %757, %762 : f32
    %764 = arith.mulf %758, %758 : vector<8x8xf32>
    %765 = vector.shape_cast %764 : vector<8x8xf32> to vector<1x8x8xf32>
    %cst_207 = arith.constant dense<0.000000e+00> : vector<1xf32>
    %766 = vector.multi_reduction <add>, %765, %cst_207 [1, 2] : vector<1x8x8xf32> to vector<1xf32>
    %767 = vector.shape_cast %766 : vector<1xf32> to vector<1x1x1xf32>
    %768 = vector.extract %767[0, 0, 0] : f32 from vector<1x1x1xf32>
    %769 = arith.addf %763, %768 : f32
    %770 = arith.mulf %764, %764 : vector<8x8xf32>
    %771 = vector.shape_cast %770 : vector<8x8xf32> to vector<1x8x8xf32>
    %cst_208 = arith.constant dense<0.000000e+00> : vector<1xf32>
    %772 = vector.multi_reduction <add>, %771, %cst_208 [1, 2] : vector<1x8x8xf32> to vector<1xf32>
    %773 = vector.shape_cast %772 : vector<1xf32> to vector<1x1x1xf32>
    %774 = vector.extract %773[0, 0, 0] : f32 from vector<1x1x1xf32>
    %775 = arith.addf %769, %774 : f32
    %776 = arith.mulf %770, %770 : vector<8x8xf32>
    %777 = vector.shape_cast %776 : vector<8x8xf32> to vector<1x8x8xf32>
    %cst_209 = arith.constant dense<0.000000e+00> : vector<1xf32>
    %778 = vector.multi_reduction <add>, %777, %cst_209 [1, 2] : vector<1x8x8xf32> to vector<1xf32>
    %779 = vector.shape_cast %778 : vector<1xf32> to vector<1x1x1xf32>
    %780 = vector.extract %779[0, 0, 0] : f32 from vector<1x1x1xf32>
    %781 = arith.addf %775, %780 : f32
    %782 = arith.mulf %633, %633 : f32
    %783 = arith.divf %781, %782 : f32
    %cst_210 = arith.constant 0.000000e+00 : f32
    %784 = vector.broadcast %cst_210 : f32 to vector<8x8xf32>
    %785 = arith.subf %784, %713 : vector<8x8xf32>
    %786 = vector.broadcast %707 : f32 to vector<8x8xf32>
    %787 = arith.mulf %785, %786 : vector<8x8xf32>
    %788 = math.exp %787 : vector<8x8xf32>
    %789 = vector.shape_cast %788 : vector<8x8xf32> to vector<1x8x8xf32>
    %cst_211 = arith.constant dense<0.000000e+00> : vector<1xf32>
    %790 = vector.multi_reduction <add>, %789, %cst_211 [1, 2] : vector<1x8x8xf32> to vector<1xf32>
    %791 = vector.shape_cast %790 : vector<1xf32> to vector<1x1x1xf32>
    %792 = vector.extract %791[0, 0, 0] : f32 from vector<1x1x1xf32>
    %793 = arith.mulf %788, %788 : vector<8x8xf32>
    %794 = vector.shape_cast %793 : vector<8x8xf32> to vector<1x8x8xf32>
    %cst_212 = arith.constant dense<0.000000e+00> : vector<1xf32>
    %795 = vector.multi_reduction <add>, %794, %cst_212 [1, 2] : vector<1x8x8xf32> to vector<1xf32>
    %796 = vector.shape_cast %795 : vector<1xf32> to vector<1x1x1xf32>
    %797 = vector.extract %796[0, 0, 0] : f32 from vector<1x1x1xf32>
    %798 = arith.addf %792, %797 : f32
    %799 = arith.mulf %793, %793 : vector<8x8xf32>
    %800 = vector.shape_cast %799 : vector<8x8xf32> to vector<1x8x8xf32>
    %cst_213 = arith.constant dense<0.000000e+00> : vector<1xf32>
    %801 = vector.multi_reduction <add>, %800, %cst_213 [1, 2] : vector<1x8x8xf32> to vector<1xf32>
    %802 = vector.shape_cast %801 : vector<1xf32> to vector<1x1x1xf32>
    %803 = vector.extract %802[0, 0, 0] : f32 from vector<1x1x1xf32>
    %804 = arith.addf %798, %803 : f32
    %805 = arith.mulf %799, %799 : vector<8x8xf32>
    %806 = vector.shape_cast %805 : vector<8x8xf32> to vector<1x8x8xf32>
    %cst_214 = arith.constant dense<0.000000e+00> : vector<1xf32>
    %807 = vector.multi_reduction <add>, %806, %cst_214 [1, 2] : vector<1x8x8xf32> to vector<1xf32>
    %808 = vector.shape_cast %807 : vector<1xf32> to vector<1x1x1xf32>
    %809 = vector.extract %808[0, 0, 0] : f32 from vector<1x1x1xf32>
    %810 = arith.addf %804, %809 : f32
    %811 = arith.mulf %805, %805 : vector<8x8xf32>
    %812 = vector.shape_cast %811 : vector<8x8xf32> to vector<1x8x8xf32>
    %cst_215 = arith.constant dense<0.000000e+00> : vector<1xf32>
    %813 = vector.multi_reduction <add>, %812, %cst_215 [1, 2] : vector<1x8x8xf32> to vector<1xf32>
    %814 = vector.shape_cast %813 : vector<1xf32> to vector<1x1x1xf32>
    %815 = vector.extract %814[0, 0, 0] : f32 from vector<1x1x1xf32>
    %816 = arith.addf %810, %815 : f32
    %817 = arith.mulf %631, %633 : f32
    %818 = arith.divf %816, %817 : f32
    %819 = arith.addf %748, %783 : f32
    %cst_216 = arith.constant 2.000000e+00 : f32
    %820 = arith.mulf %cst_216, %818 : f32
    %821 = arith.subf %819, %820 : f32
    %822 = vector.broadcast %821 : f32 to vector<1x128xf32>
    %c3_217 = arith.constant 3 : index
    %c0_218 = arith.constant 0 : index
    %c0_219 = arith.constant 0 : index
    %823 = vector.load %arg5[%c3_217, %c0_218, %c0_219] : memref<4x1x128xf32, #tpu.memory_space<vmem>>, vector<1x1x128xf32>
    %824 = vector.shape_cast %823 : vector<1x1x128xf32> to vector<1x128xf32>
    %825 = vector.shape_cast %822 : vector<1x128xf32> to vector<1x1x128xf32>
    tpu.vector_store %arg5[%c3_217, %c0_218, %c0_219], %825 {strides = array<i32>} : memref<4x1x128xf32, #tpu.memory_space<vmem>>, vector<1x1x128xf32>,
    return
  }
  func.func @transform_0(%arg0: i32, %arg1: memref<8x2xi32, #tpu.memory_space<smem>>) -> (i32, i32, i32) {
    %c0_i32 = arith.constant 0 : i32
    %c0_i32_0 = arith.constant 0 : i32
    %c0_i32_1 = arith.constant 0 : i32
    return %arg0, %c0_i32, %c0_i32_0 : i32, i32, i32
  }
  func.func @transform_1(%arg0: i32, %arg1: memref<8x2xi32, #tpu.memory_space<smem>>) -> (i32, i32, i32) {
    %c0_i32 = arith.constant 0 : i32
    %c0_i32_0 = arith.constant 0 : i32
    %c0_i32_1 = arith.constant 0 : i32
    return %arg0, %c0_i32, %c0_i32_0 : i32, i32, i32
  }
  func.func @transform_2(%arg0: i32, %arg1: memref<8x2xi32, #tpu.memory_space<smem>>) -> (i32, i32) {
    %c0_i32 = arith.constant 0 : i32
    %c0_i32_0 = arith.constant 0 : i32
    %c0_i32_1 = arith.constant 0 : i32
    return %c0_i32, %c0_i32_0 : i32, i32
  }
  func.func @transform_3(%arg0: i32, %arg1: memref<8x2xi32, #tpu.memory_space<smem>>) -> (i32, i32, i32) {
    %c0_i32 = arith.constant 0 : i32
    %c0_i32_0 = arith.constant 0 : i32
    %c0_i32_1 = arith.constant 0 : i32
    return %arg0, %c0_i32, %c0_i32_0 : i32, i32, i32
  }
}

</mosaic_0001>

<llo_original>
// kernel: tpu_custom_call.1
$region0: #{tpu_custom_call.1}
  #allocation0 [shape = 'u32[]', space=smem, size = 0x4, offset = 0x4, fixed_abs, tag = 'smem constant byte address 0x4 - core index']
  #allocation1 [shape = 'u32[72,128]{1,0:T(1,128)}', space=vmem, size = 0x9000, scoped, tag = 'internal scratch']
  #allocation2 [shape = 's32[1]{0}', space=sflag, size = 0x4, scoped, tag = 'scoped memory for tpu_custom_call.1']
  #allocation3 [shape = 'u8[4096]{0}', space=smem, size = 0x1000, scoped, tag = 'prefetched SMEM operand 0']
  %s0 = inlined_call_operand.vmem [shape: s32[8,2], index: 0, kind: input, shape index: {}]
  %s1 = inlined_call_operand.vmem [shape: s32[8,8,1], index: 1, kind: input, shape index: {}]
  %s2 = inlined_call_operand.vmem [shape: s32[8,8,1], index: 2, kind: input, shape index: {}]
  %s3 = inlined_call_operand.vmem [shape: f32[16,128], index: 3, kind: input, shape index: {}]
  %s4 = inlined_call_operand.hbm [shape: f32[8,1,128], index: 4, kind: output, shape index: {}]
  %s5 = sld [smem:[#allocation0]]
  $region45: #{tpu_custom_call.1} parent=0
    _
  %s7 = ssub.s32 1, %s5
  %s8 = scalar_select 0, %s7, %s5
  %s10 = sshll.u32 %s0, 4
  %s11 = int_to_ptr.vmem [resolvable:$true] %s10
  %13 = dma.vmem_to_smem %s11, 128, [#allocation3], [#allocation2]
  %15 = dma.done [#allocation2], 128
  %16 = sfence
  $region1: #{tpu_custom_call.1} parent=0
    #allocation4 [shape = 'u8[4096]{0}', space=vmem, size = 0x1000, scoped, tag = 'output window, operand 0']
    #allocation5 [shape = 's32[2]{0}', space=sflag, size = 0x8, scoped, tag = 'scoped memory for tpu_custom_call.1']
    %17 = vsyncpa [#allocation5], 0
    %s18 = scalar_lea.sflag [#allocation5], 1
    %19 = vsyncpa %s18, 0
    loop: start=0, step=1, limit=4
    $region2: #{tpu_custom_call.1} parent=1 // loop_pre_header
      _
    $region3: #{tpu_custom_call.1} parent=1 // loop_header
      %s21 = sphi 0, %s25
      %p22 = scmp.ge.s32.totalorder %s21, 4
      %s31 = sphi 0, %s33
      %s34 = sphi 0, %s31
      %s35 = sphi 0, %s34
      %s51 = sphi 0, %s35
      %s57 = sphi 0, %s59
      %s60 = sphi 0, %s57
      %s61 = sphi 0, %s60
      %s77 = sphi 0, %s61
      %s81 = sphi 0, %s81
      %s83 = sphi 0, %s81
      %s84 = sphi 0, %s83
      %s98 = sphi 0, %s84
      %s104 = sphi 0, %s106
      %s107 = sphi 0, %s104
      %s108 = sphi 0, %s107
      %s124 = sphi 0, %s108
    $region4: #{tpu_custom_call.1} parent=1 // loop_header_branch
      %24 = sbr.rel (%p22) target = $region8
    $region5: #{tpu_custom_call.1} parent=1 // loop_body
      %s26 = ssub.s32 %s21, 1
      %s27 = ssub.s32 %s21, 2
      %s28 = sadd.s32 %s21, 1
      %s29 = ssub.s32 %s21, %s28
      %p30 = scmp.eq.s32.totalorder %s29, 0
      %s32 = sadd.s32 %s31, 1
      %s33 = scalar_select %p30, %s31, %s32
      %p36 = pneg %p30
      %p37 = scmp.eq.s32.totalorder %s21, 1
      %p38 = por %p36, %p37
      %p39 = scmp.ne.s32.totalorder %s31, %s34
      %p40 = scmp.eq.s32.totalorder %s21, 0
      %p41 = por %p39, %p40
      %p42 = scmp.ne.s32.totalorder %s31, %s34
      %p43 = scmp.eq.s32.totalorder %s26, 1
      %p44 = por %p42, %p43
      %p45 = scmp.ne.s32.totalorder %s34, %s35
      %p46 = scmp.eq.s32.totalorder %s26, 0
      %p47 = por %p45, %p46
      %p48 = scmp.ne.s32.totalorder %s34, %s35
      %p49 = scmp.eq.s32.totalorder %s27, 1
      %p50 = por %p48, %p49
      %p52 = scmp.ne.s32.totalorder %s35, %s51
      %p53 = scmp.eq.s32.totalorder %s27, 0
      %p54 = por %p52, %p53
      %s55 = ssub.s32 %s21, %s28
      %p56 = scmp.eq.s32.totalorder %s55, 0
      %s58 = sadd.s32 %s57, 1
      %s59 = scalar_select %p56, %s57, %s58
      %p62 = pneg %p56
      %p63 = scmp.eq.s32.totalorder %s21, 1
      %p64 = por %p62, %p63
      %p65 = scmp.ne.s32.totalorder %s57, %s60
      %p66 = scmp.eq.s32.totalorder %s21, 0
      %p67 = por %p65, %p66
      %p68 = scmp.ne.s32.totalorder %s57, %s60
      %p69 = scmp.eq.s32.totalorder %s26, 1
      %p70 = por %p68, %p69
      %p71 = scmp.ne.s32.totalorder %s60, %s61
      %p72 = scmp.eq.s32.totalorder %s26, 0
      %p73 = por %p71, %p72
      %p74 = scmp.ne.s32.totalorder %s60, %s61
      %p75 = scmp.eq.s32.totalorder %s27, 1
      %p76 = por %p74, %p75
      %p78 = scmp.ne.s32.totalorder %s61, %s77
      %p79 = scmp.eq.s32.totalorder %s27, 0
      %p80 = por %p78, %p79
      %s82 = sadd.s32 %s81, 1
      %p85 = scmp.eq.s32.totalorder %s21, 1
      %p86 = scmp.ne.s32.totalorder %s81, %s83
      %p87 = scmp.eq.s32.totalorder %s21, 0
      %p88 = por %p86, %p87
      %p89 = scmp.ne.s32.totalorder %s81, %s83
      %p90 = scmp.eq.s32.totalorder %s26, 1
      %p91 = por %p89, %p90
      %p92 = scmp.ne.s32.totalorder %s83, %s84
      %p93 = scmp.eq.s32.totalorder %s26, 0
      %p94 = por %p92, %p93
      %p95 = scmp.ne.s32.totalorder %s83, %s84
      %p96 = scmp.eq.s32.totalorder %s27, 1
      %p97 = por %p95, %p96
      %p99 = scmp.ne.s32.totalorder %s84, %s98
      %p100 = scmp.eq.s32.totalorder %s27, 0
      %p101 = por %p99, %p100
      %s102 = ssub.s32 %s21, %s28
      %p103 = scmp.eq.s32.totalorder %s102, 0
      %s105 = sadd.s32 %s104, 1
      %s106 = scalar_select %p103, %s104, %s105
      %p109 = pneg %p103
      %p110 = scmp.eq.s32.totalorder %s21, 1
      %p111 = por %p109, %p110
      %p112 = scmp.ne.s32.totalorder %s104, %s107
      %p113 = scmp.eq.s32.totalorder %s21, 0
      %p114 = por %p112, %p113
      %p115 = scmp.ne.s32.totalorder %s104, %s107
      %p116 = scmp.eq.s32.totalorder %s26, 1
      %p117 = por %p115, %p116
      %p118 = scmp.ne.s32.totalorder %s107, %s108
      %p119 = scmp.eq.s32.totalorder %s26, 0
      %p120 = por %p118, %p119
      %p121 = scmp.ne.s32.totalorder %s107, %s108
      %p122 = scmp.eq.s32.totalorder %s27, 1
      %p123 = por %p121, %p122
      %p125 = scmp.ne.s32.totalorder %s108, %s124
      %p126 = scmp.eq.s32.totalorder %s27, 0
      %p127 = por %p125, %p126
      %p128 = scmp.le.s32.totalorder 1, %s21
      %p129 = scmp.lt.s32.totalorder %s21, 3
      %p130 = pnand %p128, %p129
      %p131 = pneg %p130
      // Predicated region
      $region9: #{tpu_custom_call.1} parent=5 // pred_check
        _
      $region10: #{tpu_custom_call.1} parent=5 // pred_check_branch
        %133 = sbr.rel (%p130) target = $region12
      $region11: #{tpu_custom_call.1} parent=5 // pred_region
        %s134 = ssub.s32 %s21, 1
        // Predicated region
        $region13: #{tpu_custom_call.1} parent=11 // pred_check
          %p135 = pneg %p94
        $region14: #{tpu_custom_call.1} parent=11 // pred_check_branch
          %137 = sbr.rel (%p135) target = $region16
        $region15: #{tpu_custom_call.1} parent=11 // pred_region
          _
        $region16: #{tpu_custom_call.1} parent=11 // pred_fallthru
          _
      $region12: #{tpu_custom_call.1} parent=5 // pred_fallthru
        _
      %p138 = scmp.lt.s32.totalorder %s21, 2
      // Predicated region
      $region17: #{tpu_custom_call.1} parent=5 // pred_check
        %p139 = pneg %p138
      $region18: #{tpu_custom_call.1} parent=5 // pred_check_branch
        %141 = sbr.rel (%p139) target = $region20
      $region19: #{tpu_custom_call.1} parent=5 // pred_region
        // Predicated region
        $region21: #{tpu_custom_call.1} parent=19 // pred_check
          %p142 = pneg %p41
        $region22: #{tpu_custom_call.1} parent=19 // pred_check_branch
          %144 = sbr.rel (%p142) target = $region24
        $region23: #{tpu_custom_call.1} parent=19 // pred_region
          %s145 = smul.u32 4, %s21
          %p146 = scmp.lt.s32.totalorder %s145, 7
          %s147 = scalar_select %p146, %s145, 7
          %s148 = smul.addr %s147, 8
          %s149 = scalar_lea.vmem %s1, %s148
          %s150 = smul.u32 4, %s21
        $region24: #{tpu_custom_call.1} parent=19 // pred_fallthru
          _
        // Predicated region
        $region25: #{tpu_custom_call.1} parent=19 // pred_check
          %p151 = pneg %p67
        $region26: #{tpu_custom_call.1} parent=19 // pred_check_branch
          %153 = sbr.rel (%p151) target = $region28
        $region27: #{tpu_custom_call.1} parent=19 // pred_region
          %s154 = smul.u32 4, %s21
          %p155 = scmp.lt.s32.totalorder %s154, 7
          %s156 = scalar_select %p155, %s154, 7
          %s157 = smul.addr %s156, 8
          %s158 = scalar_lea.vmem %s2, %s157
          %s159 = smul.u32 4, %s21
        $region28: #{tpu_custom_call.1} parent=19 // pred_fallthru
          _
      $region20: #{tpu_custom_call.1} parent=5 // pred_fallthru
        _
      %p160 = scmp.le.s32.totalorder 1, %s21
      %p161 = scmp.lt.s32.totalorder %s21, 3
      %p162 = pnand %p160, %p161
      %p163 = pneg %p162
      // Predicated region
      $region29: #{tpu_custom_call.1} parent=5 // pred_check
        _
      $region30: #{tpu_custom_call.1} parent=5 // pred_check_branch
        %165 = sbr.rel (%p162) target = $region32
      $region31: #{tpu_custom_call.1} parent=5 // pred_region
        %s166 = ssub.s32 %s21, 1
        %s167 = smul.u32 4, %s26
        %p168 = scmp.lt.s32.totalorder %s167, 7
        %s169 = scalar_select %p168, %s167, 7
        %s170 = smul.addr %s169, 8
        %s171 = scalar_lea.vmem %s1, %s170
        %p172 = pneg %p47
        %p173 = pneg %p44
        %s174 = smul.u32 4, %s26
        %p175 = scmp.lt.s32.totalorder %s174, 7
        %s176 = scalar_select %p175, %s174, 7
        %s177 = smul.addr %s176, 8
        %s178 = scalar_lea.vmem %s2, %s177
        %p179 = pneg %p73
        %p180 = pneg %p70
        %p181 = pneg %p94
        %p182 = pneg %p91
        %p183 = pneg %p120
        %p184 = pneg %p117
        %s185 = sand.u32 %s107, 1
        %s186 = scalar_lea.sflag [#allocation5], %s185
        %s187 = sand.u32 %s107, 1
        %s188 = smul.addr %s187, 4
        %s189 = scalar_lea.vmem [#allocation4], %s188
        %s190 = smul.u32 4, %s26
        %p191 = scmp.lt.s32.totalorder %s190, 7
        %s192 = scalar_select %p191, %s190, 7
        %s193 = smul.addr %s192, 8
        %s194 = scalar_lea.vmem %s1, %s193
        %s195 = smul.u32 4, %s26
        %s196 = smul.u32 4, %s26
        %p197 = scmp.lt.s32.totalorder %s196, 7
        %s198 = scalar_select %p197, %s196, 7
        %s199 = smul.addr %s198, 8
        %s200 = scalar_lea.vmem %s2, %s199
        %s201 = smul.u32 4, %s26
        %s202 = smul.u32 4, %s26
        %v203 = vld [vmem:[%s3] sm:$0xff]
        %v204 = vld [vmem:[%s3 + $0x8] sm:$0xff]
        %v205 = vmul.f32 %v203, %v203
        %v206 = vmul.f32 %v204, %v204
        %207 = vadd.xlane.f32.xlu0 %v205
        %v208 = vpop.xlane.xlu0 %207
        %209 = vadd.xlane.f32.xlu0 %v206
        %v210 = vpop.xlane.xlu0 %209
        %211 = vmatpush.xpose.msra.mxu0 0.0
        %212 = vmatpush.xpose.msra.mxu0 0.0
        %213 = vmatpush.xpose.msra.mxu0 0.0
        %214 = vmatpush.xpose.msra.mxu0 0.0
        %215 = vmatpush.xpose.msra.mxu0 0.0
        %216 = vmatpush.xpose.msra.mxu0 0.0
        %217 = vmatpush.xpose.msra.mxu0 0.0
        %218 = vmatpush.xpose.msra.mxu0 0.0
        %219 = vmatpush.xpose.msra.mxu0 0.0
        %220 = vmatpush.xpose.msra.mxu0 0.0
        %221 = vmatpush.xpose.msra.mxu0 0.0
        %222 = vmatpush.xpose.msra.mxu0 0.0
        %223 = vmatpush.xpose.msra.mxu0 0.0
        %224 = vmatpush.xpose.msra.mxu0 0.0
        %225 = vmatpush.xpose.msra.mxu0 %v204
        %226 = vmatpush.xpose.msra.mxu0 %v203
        %227 = vmatmul.f32.gmra.mxu0 %v203
        %v228 = vpop.f32.mrf.mxu0
        %v229 = vadd.f32 0.0, %v228
        %230 = vmatmul.f32.gmra.mxu0 %v204
        %v231 = vpop.f32.mrf.mxu0
        %v232 = vadd.f32 0.0, %v231
        %233 = vdwg.mxu0
        %234 = vxpose.xlu0.b32.start [1/16] %v208, 128
        %235 = vxpose.xlu0.b32.cont [2/16] %v210, 128
        %236 = vxpose.xlu0.b32.cont [3/16] 0.0, 128
        %237 = vxpose.xlu0.b32.cont [4/16] 0.0, 128
        %238 = vxpose.xlu0.b32.cont [5/16] 0.0, 128
        %239 = vxpose.xlu0.b32.cont [6/16] 0.0, 128
        %240 = vxpose.xlu0.b32.cont [7/16] 0.0, 128
        %241 = vxpose.xlu0.b32.cont [8/16] 0.0, 128
        %242 = vxpose.xlu0.b32.cont [9/16] 0.0, 128
        %243 = vxpose.xlu0.b32.cont [10/16] 0.0, 128
        %244 = vxpose.xlu0.b32.cont [11/16] 0.0, 128
        %245 = vxpose.xlu0.b32.cont [12/16] 0.0, 128
        %246 = vxpose.xlu0.b32.cont [13/16] 0.0, 128
        %247 = vxpose.xlu0.b32.cont [14/16] 0.0, 128
        %248 = vxpose.xlu0.b32.cont [15/16] 0.0, 128
        %249 = vxpose.xlu0.b32.end [16/16] 0.0, 128
        %v250 = vpop.trf.xlu0
        %v251 = vpop.trf.xlu0
        %v252 = vpop.trf.xlu0
        %v253 = vpop.trf.xlu0
        %v254 = vpop.trf.xlu0
        %v255 = vpop.trf.xlu0
        %v256 = vpop.trf.xlu0
        %v257 = vpop.trf.xlu0
        %v258 = vpop.trf.xlu0
        %v259 = vpop.trf.xlu0
        %v260 = vpop.trf.xlu0
        %v261 = vpop.trf.xlu0
        %v262 = vpop.trf.xlu0
        %v263 = vpop.trf.xlu0
        %v264 = vpop.trf.xlu0
        %v265 = vpop.trf.xlu0
        %v266 = vperm.slane %v250, 0
        %v267 = vadd.f32 %v208, %v266
        %v268 = vadd.f32 %v210, %v266
        %v269 = vmul.f32 %v229, 2.0
        %v270 = vmul.f32 %v232, 2.0
        %v271 = vsub.f32 %v267, %v269
        %v272 = vsub.f32 %v268, %v270
        %v273 = vmax.f32 %v271, 0.0
        %v274 = vmax.f32 %v272, 0.0
        %v275 = vlaneseq
        %v276 = vand.u32 %v275, 127
        %v277 = vlaneseq
        %v278 = vshrl.u32 %v277, 7
        %s279 = smul.u32 %s26, 4
        %s280 = smul.u32 %s279, 128
        %s281 = sld [smem:[#allocation3 + %s280]]
        %s282 = sadd.s32 %s280, 1
        %s283 = sld [smem:[#allocation3 + %s282]]
        %s284 = scvt.s32.f32 %s281
        %s285 = smax.f32 %s284, 1.0
        %s286 = scvt.s32.f32 %s283
        %s287 = smax.f32 %s286, 1.0
        %v288 = vstv %s281
        %vm289 = vcmp.lt.s32.totalorder %v278, %v288
        %v290 = vsel %vm289, 1, 0
        %v291 = vcvt.s32.f32 %v290
        %v292 = vstv %s283
        %vm293 = vcmp.lt.s32.totalorder %v278, %v292
        %v294 = vsel %vm293, 1, 0
        %v295 = vcvt.s32.f32 %v294
        %v296 = vld [vmem:[%s194] sm:$0xff]
        %297 = vset.pattern.permute.xlu0 0
        %298 = vperm.xlu0 %297, %v296
        %v299 = vpop.permute.xlu0 %298
        %vm300 = vcmp.eq.s32.totalorder %v276, %v299
        %v301 = vsel %vm300, %v291, 0.0
        %v302 = vld [vmem:[%s200] sm:$0xff]
        %303 = vset.pattern.permute.xlu0 0
        %304 = vperm.xlu0 %303, %v302
        %v305 = vpop.permute.xlu0 %304
        %vm306 = vcmp.eq.s32.totalorder %v276, %v305
        %v307 = vsel %vm306, %v295, 0.0
        %vm308 = vcmask 130048
        %v310 = vsel %vm308, %v301, 0
        %312 = vmatpush.msra.mxu0 0.0
        %313 = vmatpush.msra.mxu0 0.0
        %314 = vmatpush.msra.mxu0 0.0
        %315 = vmatpush.msra.mxu0 0.0
        %316 = vmatpush.msra.mxu0 0.0
        %317 = vmatpush.msra.mxu0 0.0
        %318 = vmatpush.msra.mxu0 0.0
        %319 = vmatpush.msra.mxu0 0.0
        %320 = vmatpush.msra.mxu0 0.0
        %321 = vmatpush.msra.mxu0 0.0
        %322 = vmatpush.msra.mxu0 0.0
        %323 = vmatpush.msra.mxu0 0.0
        %324 = vmatpush.msra.mxu0 0.0
        %325 = vmatpush.msra.mxu0 0.0
        %326 = vmatpush.msra.mxu0 %v274
        %327 = vmatpush.msra.mxu0 %v273
        %328 = vmatmul.f32.gmra.mxu0 %v310
        %v329 = vpop.f32.mrf.mxu0
        %v330 = vadd.f32 0.0, %v329
        %331 = vdwg.mxu0
        %v333 = vsel %vm308, %v307, 0
        %335 = vmatpush.msra.mxu0 0.0
        %336 = vmatpush.msra.mxu0 0.0
        %337 = vmatpush.msra.mxu0 0.0
        %338 = vmatpush.msra.mxu0 0.0
        %339 = vmatpush.msra.mxu0 0.0
        %340 = vmatpush.msra.mxu0 0.0
        %341 = vmatpush.msra.mxu0 0.0
        %342 = vmatpush.msra.mxu0 0.0
        %343 = vmatpush.msra.mxu0 0.0
        %344 = vmatpush.msra.mxu0 0.0
        %345 = vmatpush.msra.mxu0 0.0
        %346 = vmatpush.msra.mxu0 0.0
        %347 = vmatpush.msra.mxu0 0.0
        %348 = vmatpush.msra.mxu0 0.0
        %349 = vmatpush.msra.mxu0 %v274
        %350 = vmatpush.msra.mxu0 %v273
        %351 = vmatmul.f32.gmra.mxu0 %v333
        %v352 = vpop.f32.mrf.mxu0
        %v353 = vadd.f32 0.0, %v352
        %354 = vdwg.mxu0
        %v356 = vsel %vm308, %v330, 0
        %358 = vmatpush.xpose.msra.mxu0 0.0
        %359 = vmatpush.xpose.msra.mxu0 0.0
        %360 = vmatpush.xpose.msra.mxu0 0.0
        %361 = vmatpush.xpose.msra.mxu0 0.0
        %362 = vmatpush.xpose.msra.mxu0 0.0
        %363 = vmatpush.xpose.msra.mxu0 0.0
        %364 = vmatpush.xpose.msra.mxu0 0.0
        %365 = vmatpush.xpose.msra.mxu0 0.0
        %366 = vmatpush.xpose.msra.mxu0 0.0
        %367 = vmatpush.xpose.msra.mxu0 0.0
        %368 = vmatpush.xpose.msra.mxu0 0.0
        %369 = vmatpush.xpose.msra.mxu0 0.0
        %370 = vmatpush.xpose.msra.mxu0 0.0
        %371 = vmatpush.xpose.msra.mxu0 0.0
        %372 = vmatpush.xpose.msra.mxu0 0.0
        %373 = vmatpush.xpose.msra.mxu0 %v310
        %374 = vmatmul.f32.gmra.mxu0 %v356
        %v375 = vpop.f32.mrf.mxu0
        %v376 = vadd.f32 0.0, %v375
        %377 = vdwg.mxu0
        %v379 = vsel %vm308, %v353, 0
        %381 = vmatpush.xpose.msra.mxu0 0.0
        %382 = vmatpush.xpose.msra.mxu0 0.0
        %383 = vmatpush.xpose.msra.mxu0 0.0
        %384 = vmatpush.xpose.msra.mxu0 0.0
        %385 = vmatpush.xpose.msra.mxu0 0.0
        %386 = vmatpush.xpose.msra.mxu0 0.0
        %387 = vmatpush.xpose.msra.mxu0 0.0
        %388 = vmatpush.xpose.msra.mxu0 0.0
        %389 = vmatpush.xpose.msra.mxu0 0.0
        %390 = vmatpush.xpose.msra.mxu0 0.0
        %391 = vmatpush.xpose.msra.mxu0 0.0
        %392 = vmatpush.xpose.msra.mxu0 0.0
        %393 = vmatpush.xpose.msra.mxu0 0.0
        %394 = vmatpush.xpose.msra.mxu0 0.0
        %395 = vmatpush.xpose.msra.mxu0 0.0
        %396 = vmatpush.xpose.msra.mxu0 %v333
        %397 = vmatmul.f32.gmra.mxu0 %v379
        %v398 = vpop.f32.mrf.mxu0
        %v399 = vadd.f32 0.0, %v398
        %400 = vdwg.mxu0
        %401 = vmatpush.xpose.msra.mxu0 0.0
        %402 = vmatpush.xpose.msra.mxu0 0.0
        %403 = vmatpush.xpose.msra.mxu0 0.0
        %404 = vmatpush.xpose.msra.mxu0 0.0
        %405 = vmatpush.xpose.msra.mxu0 0.0
        %406 = vmatpush.xpose.msra.mxu0 0.0
        %407 = vmatpush.xpose.msra.mxu0 0.0
        %408 = vmatpush.xpose.msra.mxu0 0.0
        %409 = vmatpush.xpose.msra.mxu0 0.0
        %410 = vmatpush.xpose.msra.mxu0 0.0
        %411 = vmatpush.xpose.msra.mxu0 0.0
        %412 = vmatpush.xpose.msra.mxu0 0.0
        %413 = vmatpush.xpose.msra.mxu0 0.0
        %414 = vmatpush.xpose.msra.mxu0 0.0
        %415 = vmatpush.xpose.msra.mxu0 0.0
        %416 = vmatpush.xpose.msra.mxu0 %v333
        %417 = vmatmul.f32.gmra.mxu0 %v356
        %v418 = vpop.f32.mrf.mxu0
        %v419 = vadd.f32 0.0, %v418
        %420 = vdwg.mxu0
        %vm421 = vcmp.lt.s32.totalorder %v276, %v288
        %vm422 = vmand %vm289, %vm421
        %vm423 = vcmp.lt.s32.totalorder %v276, %v292
        %vm424 = vmand %vm293, %vm423
        %vm425 = vmand %vm289, %vm423
        %s426 = sadd.f32 %s285, %s287
        %v427 = vsel %vm422, %v376, 0.0
        %vm428 = vcmask 64512
        %v429 = vsel %vm428, %v427, 0.0
        %430 = vadd.xlane.f32.xlu0 %v429
        %v431 = vpop.xlane.xlu0 %430
        %v432 = vrot.slane %v431, 4
        %v433 = vadd.f32 %v431, %v432
        %v434 = vrot.slane %v433, 2
        %v435 = vadd.f32 %v433, %v434
        %v436 = vrot.slane %v435, 1
        %v437 = vadd.f32 %v435, %v436
        %s438 = vtos %v437
        %v439 = vsel %vm424, %v399, 0.0
        %v440 = vsel %vm428, %v439, 0.0
        %441 = vadd.xlane.f32.xlu0 %v440
        %v442 = vpop.xlane.xlu0 %441
        %v443 = vrot.slane %v442, 4
        %v444 = vadd.f32 %v442, %v443
        %v445 = vrot.slane %v444, 2
        %v446 = vadd.f32 %v444, %v445
        %v447 = vrot.slane %v446, 1
        %v448 = vadd.f32 %v446, %v447
        %s449 = vtos %v448
        %s450 = sadd.f32 %s438, %s449
        %v451 = vsel %vm425, %v419, 0.0
        %v452 = vsel %vm428, %v451, 0.0
        %453 = vadd.xlane.f32.xlu0 %v452
        %v454 = vpop.xlane.xlu0 %453
        %v455 = vrot.slane %v454, 4
        %v456 = vadd.f32 %v454, %v455
        %v457 = vrot.slane %v456, 2
        %v458 = vadd.f32 %v456, %v457
        %v459 = vrot.slane %v458, 1
        %v460 = vadd.f32 %v458, %v459
        %s461 = vtos %v460
        %s462 = smul.f32 %s461, 2.0
        %s463 = sadd.f32 %s450, %s462
        %s464 = smul.f32 %s426, %s426
        %s465 = ssub.f32 %s464, %s426
        %s466 = smax.f32 %s465, 1.0
        %v467 = vstv %s466
        %v468 = vrcp.pop %v467
        %v469 = vmul.f32 %v467, %v468
        %v470 = vsub.f32 1.0, %v469
        %v471 = vmul.f32 %v468, %v470
        %v472 = vadd.f32 %v468, %v471
        %vm473 = vweird.f32 %v467
        %vm474 = vweird.f32 %v468
        %vm475 = vmor %vm473, %vm474
        %v476 = vsel %vm475, %v468, %v472
        %v477 = vand.u32 2147483647, %v467
        %vm478 = vcmp.eq.f32.partialorder %v477, 8.507059e+37
        %v479 = vand.u32 %v467, 2147483648
        %v480 = vor.u32 1.1754944e-38, %v479
        %v481 = vsel %vm478, %v480, %v476
        %s482 = vtos %v481
        %s483 = smul.f32 %s463, %s482
        %v484 = vrcp.pop 4.0
        %v485 = vmul.f32 4.0, %v484
        %v486 = vsub.f32 1.0, %v485
        %v487 = vmul.f32 %v484, %v486
        %v488 = vadd.f32 %v484, %v487
        %vm489 = vweird.f32 %v484
        %v490 = vsel %vm489, %v484, %v488
        %s491 = vtos %v490
        %s492 = smul.f32 %s483, %s491
        %s493 = smax.f32 %s492, 1e-12
        %s494 = smul.f32 %s493, 16.0
        %v495 = vstv %s494
        %v496 = vrcp.pop %v495
        %v497 = vmul.f32 %v495, %v496
        %v498 = vsub.f32 1.0, %v497
        %v499 = vmul.f32 %v496, %v498
        %v500 = vadd.f32 %v496, %v499
        %vm501 = vweird.f32 %v495
        %vm502 = vweird.f32 %v496
        %vm503 = vmor %vm501, %vm502
        %v504 = vsel %vm503, %v496, %v500
        %v505 = vand.u32 2147483647, %v495
        %vm506 = vcmp.eq.f32.partialorder %v505, 8.507059e+37
        %v507 = vand.u32 %v495, 2147483648
        %v508 = vor.u32 1.1754944e-38, %v507
        %v509 = vsel %vm506, %v508, %v504
        %s510 = vtos %v509
        %v511 = vsel %vm422, %v376, 1e+30
        %v512 = vsel %vm424, %v399, 1e+30
        %v513 = vsel %vm425, %v419, 1e+30
        %v514 = vsub.f32 0.0, %v511
        %v515 = vstv %s510
        %v516 = vmul.f32 %v514, %v515
        %v517 = vmul.f32 %v516, 1.442695
        %v518 = vpow.pop %v517
        %v519 = vsel %vm428, %v518, 0.0
        %520 = vadd.xlane.f32.xlu0 %v519
        %v521 = vpop.xlane.xlu0 %520
        %v522 = vrot.slane %v521, 4
        %v523 = vadd.f32 %v521, %v522
        %v524 = vrot.slane %v523, 2
        %v525 = vadd.f32 %v523, %v524
        %v526 = vrot.slane %v525, 1
        %v527 = vadd.f32 %v525, %v526
        %s528 = vtos %v527
        %v529 = vmul.f32 %v518, %v518
        %v530 = vsel %vm428, %v529, 0.0
        %531 = vadd.xlane.f32.xlu0 %v530
        %v532 = vpop.xlane.xlu0 %531
        %v533 = vrot.slane %v532, 4
        %v534 = vadd.f32 %v532, %v533
        %v535 = vrot.slane %v534, 2
        %v536 = vadd.f32 %v534, %v535
        %v537 = vrot.slane %v536, 1
        %v538 = vadd.f32 %v536, %v537
        %s539 = vtos %v538
        %s540 = sadd.f32 %s528, %s539
        %v541 = vmul.f32 %v529, %v529
        %v542 = vsel %vm428, %v541, 0.0
        %543 = vadd.xlane.f32.xlu0 %v542
        %v544 = vpop.xlane.xlu0 %543
        %v545 = vrot.slane %v544, 4
        %v546 = vadd.f32 %v544, %v545
        %v547 = vrot.slane %v546, 2
        %v548 = vadd.f32 %v546, %v547
        %v549 = vrot.slane %v548, 1
        %v550 = vadd.f32 %v548, %v549
        %s551 = vtos %v550
        %s552 = sadd.f32 %s540, %s551
        %v553 = vmul.f32 %v541, %v541
        %v554 = vsel %vm428, %v553, 0.0
        %555 = vadd.xlane.f32.xlu0 %v554
        %v556 = vpop.xlane.xlu0 %555
        %v557 = vrot.slane %v556, 4
        %v558 = vadd.f32 %v556, %v557
        %v559 = vrot.slane %v558, 2
        %v560 = vadd.f32 %v558, %v559
        %v561 = vrot.slane %v560, 1
        %v562 = vadd.f32 %v560, %v561
        %s563 = vtos %v562
        %s564 = sadd.f32 %s552, %s563
        %v565 = vmul.f32 %v553, %v553
        %v566 = vsel %vm428, %v565, 0.0
        %567 = vadd.xlane.f32.xlu0 %v566
        %v568 = vpop.xlane.xlu0 %567
        %v569 = vrot.slane %v568, 4
        %v570 = vadd.f32 %v568, %v569
        %v571 = vrot.slane %v570, 2
        %v572 = vadd.f32 %v570, %v571
        %v573 = vrot.slane %v572, 1
        %v574 = vadd.f32 %v572, %v573
        %s575 = vtos %v574
        %s576 = sadd.f32 %s564, %s575
        %s577 = smul.f32 %s285, %s285
        %v578 = vstv %s577
        %v579 = vrcp.pop %v578
        %v580 = vmul.f32 %v578, %v579
        %v581 = vsub.f32 1.0, %v580
        %v582 = vmul.f32 %v579, %v581
        %v583 = vadd.f32 %v579, %v582
        %vm584 = vweird.f32 %v578
        %vm585 = vweird.f32 %v579
        %vm586 = vmor %vm584, %vm585
        %v587 = vsel %vm586, %v579, %v583
        %v588 = vand.u32 2147483647, %v578
        %vm589 = vcmp.eq.f32.partialorder %v588, 8.507059e+37
        %v590 = vand.u32 %v578, 2147483648
        %v591 = vor.u32 1.1754944e-38, %v590
        %v592 = vsel %vm589, %v591, %v587
        %s593 = vtos %v592
        %s594 = smul.f32 %s576, %s593
        %v595 = vsub.f32 0.0, %v512
        %v596 = vmul.f32 %v595, %v515
        %v597 = vmul.f32 %v596, 1.442695
        %v598 = vpow.pop %v597
        %v599 = vsel %vm428, %v598, 0.0
        %600 = vadd.xlane.f32.xlu0 %v599
        %v601 = vpop.xlane.xlu0 %600
        %v602 = vrot.slane %v601, 4
        %v603 = vadd.f32 %v601, %v602
        %v604 = vrot.slane %v603, 2
        %v605 = vadd.f32 %v603, %v604
        %v606 = vrot.slane %v605, 1
        %v607 = vadd.f32 %v605, %v606
        %s608 = vtos %v607
        %v609 = vmul.f32 %v598, %v598
        %v610 = vsel %vm428, %v609, 0.0
        %611 = vadd.xlane.f32.xlu0 %v610
        %v612 = vpop.xlane.xlu0 %611
        %v613 = vrot.slane %v612, 4
        %v614 = vadd.f32 %v612, %v613
        %v615 = vrot.slane %v614, 2
        %v616 = vadd.f32 %v614, %v615
        %v617 = vrot.slane %v616, 1
        %v618 = vadd.f32 %v616, %v617
        %s619 = vtos %v618
        %s620 = sadd.f32 %s608, %s619
        %v621 = vmul.f32 %v609, %v609
        %v622 = vsel %vm428, %v621, 0.0
        %623 = vadd.xlane.f32.xlu0 %v622
        %v624 = vpop.xlane.xlu0 %623
        %v625 = vrot.slane %v624, 4
        %v626 = vadd.f32 %v624, %v625
        %v627 = vrot.slane %v626, 2
        %v628 = vadd.f32 %v626, %v627
        %v629 = vrot.slane %v628, 1
        %v630 = vadd.f32 %v628, %v629
        %s631 = vtos %v630
        %s632 = sadd.f32 %s620, %s631
        %v633 = vmul.f32 %v621, %v621
        %v634 = vsel %vm428, %v633, 0.0
        %635 = vadd.xlane.f32.xlu0 %v634
        %v636 = vpop.xlane.xlu0 %635
        %v637 = vrot.slane %v636, 4
        %v638 = vadd.f32 %v636, %v637
        %v639 = vrot.slane %v638, 2
        %v640 = vadd.f32 %v638, %v639
        %v641 = vrot.slane %v640, 1
        %v642 = vadd.f32 %v640, %v641
        %s643 = vtos %v642
        %s644 = sadd.f32 %s632, %s643
        %v645 = vmul.f32 %v633, %v633
        %v646 = vsel %vm428, %v645, 0.0
        %647 = vadd.xlane.f32.xlu0 %v646
        %v648 = vpop.xlane.xlu0 %647
        %v649 = vrot.slane %v648, 4
        %v650 = vadd.f32 %v648, %v649
        %v651 = vrot.slane %v650, 2
        %v652 = vadd.f32 %v650, %v651
        %v653 = vrot.slane %v652, 1
        %v654 = vadd.f32 %v652, %v653
        %s655 = vtos %v654
        %s656 = sadd.f32 %s644, %s655
        %s657 = smul.f32 %s287, %s287
        %v658 = vstv %s657
        %v659 = vrcp.pop %v658
        %v660 = vmul.f32 %v658, %v659
        %v661 = vsub.f32 1.0, %v660
        %v662 = vmul.f32 %v659, %v661
        %v663 = vadd.f32 %v659, %v662
        %vm664 = vweird.f32 %v658
        %vm665 = vweird.f32 %v659
        %vm666 = vmor %vm664, %vm665
        %v667 = vsel %vm666, %v659, %v663
        %v668 = vand.u32 2147483647, %v658
        %vm669 = vcmp.eq.f32.partialorder %v668, 8.507059e+37
        %v670 = vand.u32 %v658, 2147483648
        %v671 = vor.u32 1.1754944e-38, %v670
        %v672 = vsel %vm669, %v671, %v667
        %s673 = vtos %v672
        %s674 = smul.f32 %s656, %s673
        %v675 = vsub.f32 0.0, %v513
        %v676 = vmul.f32 %v675, %v515
        %v677 = vmul.f32 %v676, 1.442695
        %v678 = vpow.pop %v677
        %v679 = vsel %vm428, %v678, 0.0
        %680 = vadd.xlane.f32.xlu0 %v679
        %v681 = vpop.xlane.xlu0 %680
        %v682 = vrot.slane %v681, 4
        %v683 = vadd.f32 %v681, %v682
        %v684 = vrot.slane %v683, 2
        %v685 = vadd.f32 %v683, %v684
        %v686 = vrot.slane %v685, 1
        %v687 = vadd.f32 %v685, %v686
        %s688 = vtos %v687
        %v689 = vmul.f32 %v678, %v678
        %v690 = vsel %vm428, %v689, 0.0
        %691 = vadd.xlane.f32.xlu0 %v690
        %v692 = vpop.xlane.xlu0 %691
        %v693 = vrot.slane %v692, 4
        %v694 = vadd.f32 %v692, %v693
        %v695 = vrot.slane %v694, 2
        %v696 = vadd.f32 %v694, %v695
        %v697 = vrot.slane %v696, 1
        %v698 = vadd.f32 %v696, %v697
        %s699 = vtos %v698
        %s700 = sadd.f32 %s688, %s699
        %v701 = vmul.f32 %v689, %v689
        %v702 = vsel %vm428, %v701, 0.0
        %703 = vadd.xlane.f32.xlu0 %v702
        %v704 = vpop.xlane.xlu0 %703
        %v705 = vrot.slane %v704, 4
        %v706 = vadd.f32 %v704, %v705
        %v707 = vrot.slane %v706, 2
        %v708 = vadd.f32 %v706, %v707
        %v709 = vrot.slane %v708, 1
        %v710 = vadd.f32 %v708, %v709
        %s711 = vtos %v710
        %s712 = sadd.f32 %s700, %s711
        %v713 = vmul.f32 %v701, %v701
        %v714 = vsel %vm428, %v713, 0.0
        %715 = vadd.xlane.f32.xlu0 %v714
        %v716 = vpop.xlane.xlu0 %715
        %v717 = vrot.slane %v716, 4
        %v718 = vadd.f32 %v716, %v717
        %v719 = vrot.slane %v718, 2
        %v720 = vadd.f32 %v718, %v719
        %v721 = vrot.slane %v720, 1
        %v722 = vadd.f32 %v720, %v721
        %s723 = vtos %v722
        %s724 = sadd.f32 %s712, %s723
        %v725 = vmul.f32 %v713, %v713
        %v726 = vsel %vm428, %v725, 0.0
        %727 = vadd.xlane.f32.xlu0 %v726
        %v728 = vpop.xlane.xlu0 %727
        %v729 = vrot.slane %v728, 4
        %v730 = vadd.f32 %v728, %v729
        %v731 = vrot.slane %v730, 2
        %v732 = vadd.f32 %v730, %v731
        %v733 = vrot.slane %v732, 1
        %v734 = vadd.f32 %v732, %v733
        %s735 = vtos %v734
        %s736 = sadd.f32 %s724, %s735
        %s737 = smul.f32 %s285, %s287
        %v738 = vstv %s737
        %v739 = vrcp.pop %v738
        %v740 = vmul.f32 %v738, %v739
        %v741 = vsub.f32 1.0, %v740
        %v742 = vmul.f32 %v739, %v741
        %v743 = vadd.f32 %v739, %v742
        %vm744 = vweird.f32 %v738
        %vm745 = vweird.f32 %v739
        %vm746 = vmor %vm744, %vm745
        %v747 = vsel %vm746, %v739, %v743
        %v748 = vand.u32 2147483647, %v738
        %vm749 = vcmp.eq.f32.partialorder %v748, 8.507059e+37
        %v750 = vand.u32 %v738, 2147483648
        %v751 = vor.u32 1.1754944e-38, %v750
        %v752 = vsel %vm749, %v751, %v747
        %s753 = vtos %v752
        %s754 = smul.f32 %s736, %s753
        %s755 = sadd.f32 %s594, %s674
        %s756 = smul.f32 %s754, 2.0
        %s757 = ssub.f32 %s755, %s756
        %v758 = vstv %s757
        %759 = vst [vmem:[%s189] sm:$0x1] %v758
        %s760 = sadd.s32 %s279, 1
        %s761 = smul.u32 %s760, 128
        %s762 = sld [smem:[#allocation3 + %s761]]
        %s763 = sadd.s32 %s761, 1
        %s764 = sld [smem:[#allocation3 + %s763]]
        %s765 = scvt.s32.f32 %s762
        %s766 = smax.f32 %s765, 1.0
        %s767 = scvt.s32.f32 %s764
        %s768 = smax.f32 %s767, 1.0
        %v769 = vstv %s762
        %vm770 = vcmp.lt.s32.totalorder %v278, %v769
        %v771 = vsel %vm770, 1, 0
        %v772 = vcvt.s32.f32 %v771
        %v773 = vstv %s764
        %vm774 = vcmp.lt.s32.totalorder %v278, %v773
        %v775 = vsel %vm774, 1, 0
        %v776 = vcvt.s32.f32 %v775
        %s777 = scalar_lea.vmem %s194, 8
        %v778 = vld [vmem:[%s777] sm:$0xff]
        %779 = vset.pattern.permute.xlu0 0
        %780 = vperm.xlu0 %779, %v778
        %v781 = vpop.permute.xlu0 %780
        %vm782 = vcmp.eq.s32.totalorder %v276, %v781
        %v783 = vsel %vm782, %v772, 0.0
        %s784 = scalar_lea.vmem %s200, 8
        %v785 = vld [vmem:[%s784] sm:$0xff]
        %786 = vset.pattern.permute.xlu0 0
        %787 = vperm.xlu0 %786, %v785
        %v788 = vpop.permute.xlu0 %787
        %vm789 = vcmp.eq.s32.totalorder %v276, %v788
        %v790 = vsel %vm789, %v776, 0.0
        %v792 = vsel %vm308, %v783, 0
        %794 = vmatpush.msra.mxu0 0.0
        %795 = vmatpush.msra.mxu0 0.0
        %796 = vmatpush.msra.mxu0 0.0
        %797 = vmatpush.msra.mxu0 0.0
        %798 = vmatpush.msra.mxu0 0.0
        %799 = vmatpush.msra.mxu0 0.0
        %800 = vmatpush.msra.mxu0 0.0
        %801 = vmatpush.msra.mxu0 0.0
        %802 = vmatpush.msra.mxu0 0.0
        %803 = vmatpush.msra.mxu0 0.0
        %804 = vmatpush.msra.mxu0 0.0
        %805 = vmatpush.msra.mxu0 0.0
        %806 = vmatpush.msra.mxu0 0.0
        %807 = vmatpush.msra.mxu0 0.0
        %808 = vmatpush.msra.mxu0 %v274
        %809 = vmatpush.msra.mxu0 %v273
        %810 = vmatmul.f32.gmra.mxu0 %v792
        %v811 = vpop.f32.mrf.mxu0
        %v812 = vadd.f32 0.0, %v811
        %813 = vdwg.mxu0
        %v815 = vsel %vm308, %v790, 0
        %817 = vmatpush.msra.mxu0 0.0
        %818 = vmatpush.msra.mxu0 0.0
        %819 = vmatpush.msra.mxu0 0.0
        %820 = vmatpush.msra.mxu0 0.0
        %821 = vmatpush.msra.mxu0 0.0
        %822 = vmatpush.msra.mxu0 0.0
        %823 = vmatpush.msra.mxu0 0.0
        %824 = vmatpush.msra.mxu0 0.0
        %825 = vmatpush.msra.mxu0 0.0
        %826 = vmatpush.msra.mxu0 0.0
        %827 = vmatpush.msra.mxu0 0.0
        %828 = vmatpush.msra.mxu0 0.0
        %829 = vmatpush.msra.mxu0 0.0
        %830 = vmatpush.msra.mxu0 0.0
        %831 = vmatpush.msra.mxu0 %v274
        %832 = vmatpush.msra.mxu0 %v273
        %833 = vmatmul.f32.gmra.mxu0 %v815
        %v834 = vpop.f32.mrf.mxu0
        %v835 = vadd.f32 0.0, %v834
        %836 = vdwg.mxu0
        %v838 = vsel %vm308, %v812, 0
        %840 = vmatpush.xpose.msra.mxu0 0.0
        %841 = vmatpush.xpose.msra.mxu0 0.0
        %842 = vmatpush.xpose.msra.mxu0 0.0
        %843 = vmatpush.xpose.msra.mxu0 0.0
        %844 = vmatpush.xpose.msra.mxu0 0.0
        %845 = vmatpush.xpose.msra.mxu0 0.0
        %846 = vmatpush.xpose.msra.mxu0 0.0
        %847 = vmatpush.xpose.msra.mxu0 0.0
        %848 = vmatpush.xpose.msra.mxu0 0.0
        %849 = vmatpush.xpose.msra.mxu0 0.0
        %850 = vmatpush.xpose.msra.mxu0 0.0
        %851 = vmatpush.xpose.msra.mxu0 0.0
        %852 = vmatpush.xpose.msra.mxu0 0.0
        %853 = vmatpush.xpose.msra.mxu0 0.0
        %854 = vmatpush.xpose.msra.mxu0 0.0
        %855 = vmatpush.xpose.msra.mxu0 %v792
        %856 = vmatmul.f32.gmra.mxu0 %v838
        %v857 = vpop.f32.mrf.mxu0
        %v858 = vadd.f32 0.0, %v857
        %859 = vdwg.mxu0
        %v861 = vsel %vm308, %v835, 0
        %863 = vmatpush.xpose.msra.mxu0 0.0
        %864 = vmatpush.xpose.msra.mxu0 0.0
        %865 = vmatpush.xpose.msra.mxu0 0.0
        %866 = vmatpush.xpose.msra.mxu0 0.0
        %867 = vmatpush.xpose.msra.mxu0 0.0
        %868 = vmatpush.xpose.msra.mxu0 0.0
        %869 = vmatpush.xpose.msra.mxu0 0.0
        %870 = vmatpush.xpose.msra.mxu0 0.0
        %871 = vmatpush.xpose.msra.mxu0 0.0
        %872 = vmatpush.xpose.msra.mxu0 0.0
        %873 = vmatpush.xpose.msra.mxu0 0.0
        %874 = vmatpush.xpose.msra.mxu0 0.0
        %875 = vmatpush.xpose.msra.mxu0 0.0
        %876 = vmatpush.xpose.msra.mxu0 0.0
        %877 = vmatpush.xpose.msra.mxu0 0.0
        %878 = vmatpush.xpose.msra.mxu0 %v815
        %879 = vmatmul.f32.gmra.mxu0 %v861
        %v880 = vpop.f32.mrf.mxu0
        %v881 = vadd.f32 0.0, %v880
        %882 = vdwg.mxu0
        %883 = vmatpush.xpose.msra.mxu0 0.0
        %884 = vmatpush.xpose.msra.mxu0 0.0
        %885 = vmatpush.xpose.msra.mxu0 0.0
        %886 = vmatpush.xpose.msra.mxu0 0.0
        %887 = vmatpush.xpose.msra.mxu0 0.0
        %888 = vmatpush.xpose.msra.mxu0 0.0
        %889 = vmatpush.xpose.msra.mxu0 0.0
        %890 = vmatpush.xpose.msra.mxu0 0.0
        %891 = vmatpush.xpose.msra.mxu0 0.0
        %892 = vmatpush.xpose.msra.mxu0 0.0
        %893 = vmatpush.xpose.msra.mxu0 0.0
        %894 = vmatpush.xpose.msra.mxu0 0.0
        %895 = vmatpush.xpose.msra.mxu0 0.0
        %896 = vmatpush.xpose.msra.mxu0 0.0
        %897 = vmatpush.xpose.msra.mxu0 0.0
        %898 = vmatpush.xpose.msra.mxu0 %v815
        %899 = vmatmul.f32.gmra.mxu0 %v838
        %v900 = vpop.f32.mrf.mxu0
        %v901 = vadd.f32 0.0, %v900
        %902 = vdwg.mxu0
        %vm903 = vcmp.lt.s32.totalorder %v276, %v769
        %vm904 = vmand %vm770, %vm903
        %vm905 = vcmp.lt.s32.totalorder %v276, %v773
        %vm906 = vmand %vm774, %vm905
        %vm907 = vmand %vm770, %vm905
        %s908 = sadd.f32 %s766, %s768
        %v909 = vsel %vm904, %v858, 0.0
        %v910 = vsel %vm428, %v909, 0.0
        %911 = vadd.xlane.f32.xlu0 %v910
        %v912 = vpop.xlane.xlu0 %911
        %v913 = vrot.slane %v912, 4
        %v914 = vadd.f32 %v912, %v913
        %v915 = vrot.slane %v914, 2
        %v916 = vadd.f32 %v914, %v915
        %v917 = vrot.slane %v916, 1
        %v918 = vadd.f32 %v916, %v917
        %s919 = vtos %v918
        %v920 = vsel %vm906, %v881, 0.0
        %v921 = vsel %vm428, %v920, 0.0
        %922 = vadd.xlane.f32.xlu0 %v921
        %v923 = vpop.xlane.xlu0 %922
        %v924 = vrot.slane %v923, 4
        %v925 = vadd.f32 %v923, %v924
        %v926 = vrot.slane %v925, 2
        %v927 = vadd.f32 %v925, %v926
        %v928 = vrot.slane %v927, 1
        %v929 = vadd.f32 %v927, %v928
        %s930 = vtos %v929
        %s931 = sadd.f32 %s919, %s930
        %v932 = vsel %vm907, %v901, 0.0
        %v933 = vsel %vm428, %v932, 0.0
        %934 = vadd.xlane.f32.xlu0 %v933
        %v935 = vpop.xlane.xlu0 %934
        %v936 = vrot.slane %v935, 4
        %v937 = vadd.f32 %v935, %v936
        %v938 = vrot.slane %v937, 2
        %v939 = vadd.f32 %v937, %v938
        %v940 = vrot.slane %v939, 1
        %v941 = vadd.f32 %v939, %v940
        %s942 = vtos %v941
        %s943 = smul.f32 %s942, 2.0
        %s944 = sadd.f32 %s931, %s943
        %s945 = smul.f32 %s908, %s908
        %s946 = ssub.f32 %s945, %s908
        %s947 = smax.f32 %s946, 1.0
        %v948 = vstv %s947
        %v949 = vrcp.pop %v948
        %v950 = vmul.f32 %v948, %v949
        %v951 = vsub.f32 1.0, %v950
        %v952 = vmul.f32 %v949, %v951
        %v953 = vadd.f32 %v949, %v952
        %vm954 = vweird.f32 %v948
        %vm955 = vweird.f32 %v949
        %vm956 = vmor %vm954, %vm955
        %v957 = vsel %vm956, %v949, %v953
        %v958 = vand.u32 2147483647, %v948
        %vm959 = vcmp.eq.f32.partialorder %v958, 8.507059e+37
        %v960 = vand.u32 %v948, 2147483648
        %v961 = vor.u32 1.1754944e-38, %v960
        %v962 = vsel %vm959, %v961, %v957
        %s963 = vtos %v962
        %s964 = smul.f32 %s944, %s963
        %v965 = vrcp.pop 4.0
        %v966 = vmul.f32 4.0, %v965
        %v967 = vsub.f32 1.0, %v966
        %v968 = vmul.f32 %v965, %v967
        %v969 = vadd.f32 %v965, %v968
        %vm970 = vweird.f32 %v965
        %v971 = vsel %vm970, %v965, %v969
        %s972 = vtos %v971
        %s973 = smul.f32 %s964, %s972
        %s974 = smax.f32 %s973, 1e-12
        %s975 = smul.f32 %s974, 16.0
        %v976 = vstv %s975
        %v977 = vrcp.pop %v976
        %v978 = vmul.f32 %v976, %v977
        %v979 = vsub.f32 1.0, %v978
        %v980 = vmul.f32 %v977, %v979
        %v981 = vadd.f32 %v977, %v980
        %vm982 = vweird.f32 %v976
        %vm983 = vweird.f32 %v977
        %vm984 = vmor %vm982, %vm983
        %v985 = vsel %vm984, %v977, %v981
        %v986 = vand.u32 2147483647, %v976
        %vm987 = vcmp.eq.f32.partialorder %v986, 8.507059e+37
        %v988 = vand.u32 %v976, 2147483648
        %v989 = vor.u32 1.1754944e-38, %v988
        %v990 = vsel %vm987, %v989, %v985
        %s991 = vtos %v990
        %v992 = vsel %vm904, %v858, 1e+30
        %v993 = vsel %vm906, %v881, 1e+30
        %v994 = vsel %vm907, %v901, 1e+30
        %v995 = vsub.f32 0.0, %v992
        %v996 = vstv %s991
        %v997 = vmul.f32 %v995, %v996
        %v998 = vmul.f32 %v997, 1.442695
        %v999 = vpow.pop %v998
        %v1000 = vsel %vm428, %v999, 0.0
        %1001 = vadd.xlane.f32.xlu0 %v1000
        %v1002 = vpop.xlane.xlu0 %1001
        %v1003 = vrot.slane %v1002, 4
        %v1004 = vadd.f32 %v1002, %v1003
        %v1005 = vrot.slane %v1004, 2
        %v1006 = vadd.f32 %v1004, %v1005
        %v1007 = vrot.slane %v1006, 1
        %v1008 = vadd.f32 %v1006, %v1007
        %s1009 = vtos %v1008
        %v1010 = vmul.f32 %v999, %v999
        %v1011 = vsel %vm428, %v1010, 0.0
        %1012 = vadd.xlane.f32.xlu0 %v1011
        %v1013 = vpop.xlane.xlu0 %1012
        %v1014 = vrot.slane %v1013, 4
        %v1015 = vadd.f32 %v1013, %v1014
        %v1016 = vrot.slane %v1015, 2
        %v1017 = vadd.f32 %v1015, %v1016
        %v1018 = vrot.slane %v1017, 1
        %v1019 = vadd.f32 %v1017, %v1018
        %s1020 = vtos %v1019
        %s1021 = sadd.f32 %s1009, %s1020
        %v1022 = vmul.f32 %v1010, %v1010
        %v1023 = vsel %vm428, %v1022, 0.0
        %1024 = vadd.xlane.f32.xlu0 %v1023
        %v1025 = vpop.xlane.xlu0 %1024
        %v1026 = vrot.slane %v1025, 4
        %v1027 = vadd.f32 %v1025, %v1026
        %v1028 = vrot.slane %v1027, 2
        %v1029 = vadd.f32 %v1027, %v1028
        %v1030 = vrot.slane %v1029, 1
        %v1031 = vadd.f32 %v1029, %v1030
        %s1032 = vtos %v1031
        %s1033 = sadd.f32 %s1021, %s1032
        %v1034 = vmul.f32 %v1022, %v1022
        %v1035 = vsel %vm428, %v1034, 0.0
        %1036 = vadd.xlane.f32.xlu0 %v1035
        %v1037 = vpop.xlane.xlu0 %1036
        %v1038 = vrot.slane %v1037, 4
        %v1039 = vadd.f32 %v1037, %v1038
        %v1040 = vrot.slane %v1039, 2
        %v1041 = vadd.f32 %v1039, %v1040
        %v1042 = vrot.slane %v1041, 1
        %v1043 = vadd.f32 %v1041, %v1042
        %s1044 = vtos %v1043
        %s1045 = sadd.f32 %s1033, %s1044
        %v1046 = vmul.f32 %v1034, %v1034
        %v1047 = vsel %vm428, %v1046, 0.0
        %1048 = vadd.xlane.f32.xlu0 %v1047
        %v1049 = vpop.xlane.xlu0 %1048
        %v1050 = vrot.slane %v1049, 4
        %v1051 = vadd.f32 %v1049, %v1050
        %v1052 = vrot.slane %v1051, 2
        %v1053 = vadd.f32 %v1051, %v1052
        %v1054 = vrot.slane %v1053, 1
        %v1055 = vadd.f32 %v1053, %v1054
        %s1056 = vtos %v1055
        %s1057 = sadd.f32 %s1045, %s1056
        %s1058 = smul.f32 %s766, %s766
        %v1059 = vstv %s1058
        %v1060 = vrcp.pop %v1059
        %v1061 = vmul.f32 %v1059, %v1060
        %v1062 = vsub.f32 1.0, %v1061
        %v1063 = vmul.f32 %v1060, %v1062
        %v1064 = vadd.f32 %v1060, %v1063
        %vm1065 = vweird.f32 %v1059
        %vm1066 = vweird.f32 %v1060
        %vm1067 = vmor %vm1065, %vm1066
        %v1068 = vsel %vm1067, %v1060, %v1064
        %v1069 = vand.u32 2147483647, %v1059
        %vm1070 = vcmp.eq.f32.partialorder %v1069, 8.507059e+37
        %v1071 = vand.u32 %v1059, 2147483648
        %v1072 = vor.u32 1.1754944e-38, %v1071
        %v1073 = vsel %vm1070, %v1072, %v1068
        %s1074 = vtos %v1073
        %s1075 = smul.f32 %s1057, %s1074
        %v1076 = vsub.f32 0.0, %v993
        %v1077 = vmul.f32 %v1076, %v996
        %v1078 = vmul.f32 %v1077, 1.442695
        %v1079 = vpow.pop %v1078
        %v1080 = vsel %vm428, %v1079, 0.0
        %1081 = vadd.xlane.f32.xlu0 %v1080
        %v1082 = vpop.xlane.xlu0 %1081
        %v1083 = vrot.slane %v1082, 4
        %v1084 = vadd.f32 %v1082, %v1083
        %v1085 = vrot.slane %v1084, 2
        %v1086 = vadd.f32 %v1084, %v1085
        %v1087 = vrot.slane %v1086, 1
        %v1088 = vadd.f32 %v1086, %v1087
        %s1089 = vtos %v1088
        %v1090 = vmul.f32 %v1079, %v1079
        %v1091 = vsel %vm428, %v1090, 0.0
        %1092 = vadd.xlane.f32.xlu0 %v1091
        %v1093 = vpop.xlane.xlu0 %1092
        %v1094 = vrot.slane %v1093, 4
        %v1095 = vadd.f32 %v1093, %v1094
        %v1096 = vrot.slane %v1095, 2
        %v1097 = vadd.f32 %v1095, %v1096
        %v1098 = vrot.slane %v1097, 1
        %v1099 = vadd.f32 %v1097, %v1098
        %s1100 = vtos %v1099
        %s1101 = sadd.f32 %s1089, %s1100
        %v1102 = vmul.f32 %v1090, %v1090
        %v1103 = vsel %vm428, %v1102, 0.0
        %1104 = vadd.xlane.f32.xlu0 %v1103
        %v1105 = vpop.xlane.xlu0 %1104
        %v1106 = vrot.slane %v1105, 4
        %v1107 = vadd.f32 %v1105, %v1106
        %v1108 = vrot.slane %v1107, 2
        %v1109 = vadd.f32 %v1107, %v1108
        %v1110 = vrot.slane %v1109, 1
        %v1111 = vadd.f32 %v1109, %v1110
        %s1112 = vtos %v1111
        %s1113 = sadd.f32 %s1101, %s1112
        %v1114 = vmul.f32 %v1102, %v1102
        %v1115 = vsel %vm428, %v1114, 0.0
        %1116 = vadd.xlane.f32.xlu0 %v1115
        %v1117 = vpop.xlane.xlu0 %1116
        %v1118 = vrot.slane %v1117, 4
        %v1119 = vadd.f32 %v1117, %v1118
        %v1120 = vrot.slane %v1119, 2
        %v1121 = vadd.f32 %v1119, %v1120
        %v1122 = vrot.slane %v1121, 1
        %v1123 = vadd.f32 %v1121, %v1122
        %s1124 = vtos %v1123
        %s1125 = sadd.f32 %s1113, %s1124
        %v1126 = vmul.f32 %v1114, %v1114
        %v1127 = vsel %vm428, %v1126, 0.0
        %1128 = vadd.xlane.f32.xlu0 %v1127
        %v1129 = vpop.xlane.xlu0 %1128
        %v1130 = vrot.slane %v1129, 4
        %v1131 = vadd.f32 %v1129, %v1130
        %v1132 = vrot.slane %v1131, 2
        %v1133 = vadd.f32 %v1131, %v1132
        %v1134 = vrot.slane %v1133, 1
        %v1135 = vadd.f32 %v1133, %v1134
        %s1136 = vtos %v1135
        %s1137 = sadd.f32 %s1125, %s1136
        %s1138 = smul.f32 %s768, %s768
        %v1139 = vstv %s1138
        %v1140 = vrcp.pop %v1139
        %v1141 = vmul.f32 %v1139, %v1140
        %v1142 = vsub.f32 1.0, %v1141
        %v1143 = vmul.f32 %v1140, %v1142
        %v1144 = vadd.f32 %v1140, %v1143
        %vm1145 = vweird.f32 %v1139
        %vm1146 = vweird.f32 %v1140
        %vm1147 = vmor %vm1145, %vm1146
        %v1148 = vsel %vm1147, %v1140, %v1144
        %v1149 = vand.u32 2147483647, %v1139
        %vm1150 = vcmp.eq.f32.partialorder %v1149, 8.507059e+37
        %v1151 = vand.u32 %v1139, 2147483648
        %v1152 = vor.u32 1.1754944e-38, %v1151
        %v1153 = vsel %vm1150, %v1152, %v1148
        %s1154 = vtos %v1153
        %s1155 = smul.f32 %s1137, %s1154
        %v1156 = vsub.f32 0.0, %v994
        %v1157 = vmul.f32 %v1156, %v996
        %v1158 = vmul.f32 %v1157, 1.442695
        %v1159 = vpow.pop %v1158
        %v1160 = vsel %vm428, %v1159, 0.0
        %1161 = vadd.xlane.f32.xlu0 %v1160
        %v1162 = vpop.xlane.xlu0 %1161
        %v1163 = vrot.slane %v1162, 4
        %v1164 = vadd.f32 %v1162, %v1163
        %v1165 = vrot.slane %v1164, 2
        %v1166 = vadd.f32 %v1164, %v1165
        %v1167 = vrot.slane %v1166, 1
        %v1168 = vadd.f32 %v1166, %v1167
        %s1169 = vtos %v1168
        %v1170 = vmul.f32 %v1159, %v1159
        %v1171 = vsel %vm428, %v1170, 0.0
        %1172 = vadd.xlane.f32.xlu0 %v1171
        %v1173 = vpop.xlane.xlu0 %1172
        %v1174 = vrot.slane %v1173, 4
        %v1175 = vadd.f32 %v1173, %v1174
        %v1176 = vrot.slane %v1175, 2
        %v1177 = vadd.f32 %v1175, %v1176
        %v1178 = vrot.slane %v1177, 1
        %v1179 = vadd.f32 %v1177, %v1178
        %s1180 = vtos %v1179
        %s1181 = sadd.f32 %s1169, %s1180
        %v1182 = vmul.f32 %v1170, %v1170
        %v1183 = vsel %vm428, %v1182, 0.0
        %1184 = vadd.xlane.f32.xlu0 %v1183
        %v1185 = vpop.xlane.xlu0 %1184
        %v1186 = vrot.slane %v1185, 4
        %v1187 = vadd.f32 %v1185, %v1186
        %v1188 = vrot.slane %v1187, 2
        %v1189 = vadd.f32 %v1187, %v1188
        %v1190 = vrot.slane %v1189, 1
        %v1191 = vadd.f32 %v1189, %v1190
        %s1192 = vtos %v1191
        %s1193 = sadd.f32 %s1181, %s1192
        %v1194 = vmul.f32 %v1182, %v1182
        %v1195 = vsel %vm428, %v1194, 0.0
        %1196 = vadd.xlane.f32.xlu0 %v1195
        %v1197 = vpop.xlane.xlu0 %1196
        %v1198 = vrot.slane %v1197, 4
        %v1199 = vadd.f32 %v1197, %v1198
        %v1200 = vrot.slane %v1199, 2
        %v1201 = vadd.f32 %v1199, %v1200
        %v1202 = vrot.slane %v1201, 1
        %v1203 = vadd.f32 %v1201, %v1202
        %s1204 = vtos %v1203
        %s1205 = sadd.f32 %s1193, %s1204
        %v1206 = vmul.f32 %v1194, %v1194
        %v1207 = vsel %vm428, %v1206, 0.0
        %1208 = vadd.xlane.f32.xlu0 %v1207
        %v1209 = vpop.xlane.xlu0 %1208
        %v1210 = vrot.slane %v1209, 4
        %v1211 = vadd.f32 %v1209, %v1210
        %v1212 = vrot.slane %v1211, 2
        %v1213 = vadd.f32 %v1211, %v1212
        %v1214 = vrot.slane %v1213, 1
        %v1215 = vadd.f32 %v1213, %v1214
        %s1216 = vtos %v1215
        %s1217 = sadd.f32 %s1205, %s1216
        %s1218 = smul.f32 %s766, %s768
        %v1219 = vstv %s1218
        %v1220 = vrcp.pop %v1219
        %v1221 = vmul.f32 %v1219, %v1220
        %v1222 = vsub.f32 1.0, %v1221
        %v1223 = vmul.f32 %v1220, %v1222
        %v1224 = vadd.f32 %v1220, %v1223
        %vm1225 = vweird.f32 %v1219
        %vm1226 = vweird.f32 %v1220
        %vm1227 = vmor %vm1225, %vm1226
        %v1228 = vsel %vm1227, %v1220, %v1224
        %v1229 = vand.u32 2147483647, %v1219
        %vm1230 = vcmp.eq.f32.partialorder %v1229, 8.507059e+37
        %v1231 = vand.u32 %v1219, 2147483648
        %v1232 = vor.u32 1.1754944e-38, %v1231
        %v1233 = vsel %vm1230, %v1232, %v1228
        %s1234 = vtos %v1233
        %s1235 = smul.f32 %s1217, %s1234
        %s1236 = sadd.f32 %s1075, %s1155
        %s1237 = smul.f32 %s1235, 2.0
        %s1238 = ssub.f32 %s1236, %s1237
        %v1239 = vstv %s1238
        %s1240 = scalar_lea.vmem %s189, 1 [#allocation4]
        %1241 = vst [vmem:[%s1240] sm:$0x1] %v1239
        %s1242 = sadd.s32 %s279, 2
        %s1243 = smul.u32 %s1242, 128
        %s1244 = sld [smem:[#allocation3 + %s1243]]
        %s1245 = sadd.s32 %s1243, 1
        %s1246 = sld [smem:[#allocation3 + %s1245]]
        %s1247 = scvt.s32.f32 %s1244
        %s1248 = smax.f32 %s1247, 1.0
        %s1249 = scvt.s32.f32 %s1246
        %s1250 = smax.f32 %s1249, 1.0
        %v1251 = vstv %s1244
        %vm1252 = vcmp.lt.s32.totalorder %v278, %v1251
        %v1253 = vsel %vm1252, 1, 0
        %v1254 = vcvt.s32.f32 %v1253
        %v1255 = vstv %s1246
        %vm1256 = vcmp.lt.s32.totalorder %v278, %v1255
        %v1257 = vsel %vm1256, 1, 0
        %v1258 = vcvt.s32.f32 %v1257
        %s1259 = scalar_lea.vmem %s194, 16
        %v1260 = vld [vmem:[%s1259] sm:$0xff]
        %1261 = vset.pattern.permute.xlu0 0
        %1262 = vperm.xlu0 %1261, %v1260
        %v1263 = vpop.permute.xlu0 %1262
        %vm1264 = vcmp.eq.s32.totalorder %v276, %v1263
        %v1265 = vsel %vm1264, %v1254, 0.0
        %s1266 = scalar_lea.vmem %s200, 16
        %v1267 = vld [vmem:[%s1266] sm:$0xff]
        %1268 = vset.pattern.permute.xlu0 0
        %1269 = vperm.xlu0 %1268, %v1267
        %v1270 = vpop.permute.xlu0 %1269
        %vm1271 = vcmp.eq.s32.totalorder %v276, %v1270
        %v1272 = vsel %vm1271, %v1258, 0.0
        %v1274 = vsel %vm308, %v1265, 0
        %1276 = vmatpush.msra.mxu0 0.0
        %1277 = vmatpush.msra.mxu0 0.0
        %1278 = vmatpush.msra.mxu0 0.0
        %1279 = vmatpush.msra.mxu0 0.0
        %1280 = vmatpush.msra.mxu0 0.0
        %1281 = vmatpush.msra.mxu0 0.0
        %1282 = vmatpush.msra.mxu0 0.0
        %1283 = vmatpush.msra.mxu0 0.0
        %1284 = vmatpush.msra.mxu0 0.0
        %1285 = vmatpush.msra.mxu0 0.0
        %1286 = vmatpush.msra.mxu0 0.0
        %1287 = vmatpush.msra.mxu0 0.0
        %1288 = vmatpush.msra.mxu0 0.0
        %1289 = vmatpush.msra.mxu0 0.0
        %1290 = vmatpush.msra.mxu0 %v274
        %1291 = vmatpush.msra.mxu0 %v273
        %1292 = vmatmul.f32.gmra.mxu0 %v1274
        %v1293 = vpop.f32.mrf.mxu0
        %v1294 = vadd.f32 0.0, %v1293
        %1295 = vdwg.mxu0
        %v1297 = vsel %vm308, %v1272, 0
        %1299 = vmatpush.msra.mxu0 0.0
        %1300 = vmatpush.msra.mxu0 0.0
        %1301 = vmatpush.msra.mxu0 0.0
        %1302 = vmatpush.msra.mxu0 0.0
        %1303 = vmatpush.msra.mxu0 0.0
        %1304 = vmatpush.msra.mxu0 0.0
        %1305 = vmatpush.msra.mxu0 0.0
        %1306 = vmatpush.msra.mxu0 0.0
        %1307 = vmatpush.msra.mxu0 0.0
        %1308 = vmatpush.msra.mxu0 0.0
        %1309 = vmatpush.msra.mxu0 0.0
        %1310 = vmatpush.msra.mxu0 0.0
        %1311 = vmatpush.msra.mxu0 0.0
        %1312 = vmatpush.msra.mxu0 0.0
        %1313 = vmatpush.msra.mxu0 %v274
        %1314 = vmatpush.msra.mxu0 %v273
        %1315 = vmatmul.f32.gmra.mxu0 %v1297
        %v1316 = vpop.f32.mrf.mxu0
        %v1317 = vadd.f32 0.0, %v1316
        %1318 = vdwg.mxu0
        %v1320 = vsel %vm308, %v1294, 0
        %1322 = vmatpush.xpose.msra.mxu0 0.0
        %1323 = vmatpush.xpose.msra.mxu0 0.0
        %1324 = vmatpush.xpose.msra.mxu0 0.0
        %1325 = vmatpush.xpose.msra.mxu0 0.0
        %1326 = vmatpush.xpose.msra.mxu0 0.0
        %1327 = vmatpush.xpose.msra.mxu0 0.0
        %1328 = vmatpush.xpose.msra.mxu0 0.0
        %1329 = vmatpush.xpose.msra.mxu0 0.0
        %1330 = vmatpush.xpose.msra.mxu0 0.0
        %1331 = vmatpush.xpose.msra.mxu0 0.0
        %1332 = vmatpush.xpose.msra.mxu0 0.0
        %1333 = vmatpush.xpose.msra.mxu0 0.0
        %1334 = vmatpush.xpose.msra.mxu0 0.0
        %1335 = vmatpush.xpose.msra.mxu0 0.0
        %1336 = vmatpush.xpose.msra.mxu0 0.0
        %1337 = vmatpush.xpose.msra.mxu0 %v1274
        %1338 = vmatmul.f32.gmra.mxu0 %v1320
        %v1339 = vpop.f32.mrf.mxu0
        %v1340 = vadd.f32 0.0, %v1339
        %1341 = vdwg.mxu0
        %v1343 = vsel %vm308, %v1317, 0
        %1345 = vmatpush.xpose.msra.mxu0 0.0
        %1346 = vmatpush.xpose.msra.mxu0 0.0
        %1347 = vmatpush.xpose.msra.mxu0 0.0
        %1348 = vmatpush.xpose.msra.mxu0 0.0
        %1349 = vmatpush.xpose.msra.mxu0 0.0
        %1350 = vmatpush.xpose.msra.mxu0 0.0
        %1351 = vmatpush.xpose.msra.mxu0 0.0
        %1352 = vmatpush.xpose.msra.mxu0 0.0
        %1353 = vmatpush.xpose.msra.mxu0 0.0
        %1354 = vmatpush.xpose.msra.mxu0 0.0
        %1355 = vmatpush.xpose.msra.mxu0 0.0
        %1356 = vmatpush.xpose.msra.mxu0 0.0
        %1357 = vmatpush.xpose.msra.mxu0 0.0
        %1358 = vmatpush.xpose.msra.mxu0 0.0
        %1359 = vmatpush.xpose.msra.mxu0 0.0
        %1360 = vmatpush.xpose.msra.mxu0 %v1297
        %1361 = vmatmul.f32.gmra.mxu0 %v1343
        %v1362 = vpop.f32.mrf.mxu0
        %v1363 = vadd.f32 0.0, %v1362
        %1364 = vdwg.mxu0
        %1365 = vmatpush.xpose.msra.mxu0 0.0
        %1366 = vmatpush.xpose.msra.mxu0 0.0
        %1367 = vmatpush.xpose.msra.mxu0 0.0
        %1368 = vmatpush.xpose.msra.mxu0 0.0
        %1369 = vmatpush.xpose.msra.mxu0 0.0
        %1370 = vmatpush.xpose.msra.mxu0 0.0
        %1371 = vmatpush.xpose.msra.mxu0 0.0
        %1372 = vmatpush.xpose.msra.mxu0 0.0
        %1373 = vmatpush.xpose.msra.mxu0 0.0
        %1374 = vmatpush.xpose.msra.mxu0 0.0
        %1375 = vmatpush.xpose.msra.mxu0 0.0
        %1376 = vmatpush.xpose.msra.mxu0 0.0
        %1377 = vmatpush.xpose.msra.mxu0 0.0
        %1378 = vmatpush.xpose.msra.mxu0 0.0
        %1379 = vmatpush.xpose.msra.mxu0 0.0
        %1380 = vmatpush.xpose.msra.mxu0 %v1297
        %1381 = vmatmul.f32.gmra.mxu0 %v1320
        %v1382 = vpop.f32.mrf.mxu0
        %v1383 = vadd.f32 0.0, %v1382
        %1384 = vdwg.mxu0
        %vm1385 = vcmp.lt.s32.totalorder %v276, %v1251
        %vm1386 = vmand %vm1252, %vm1385
        %vm1387 = vcmp.lt.s32.totalorder %v276, %v1255
        %vm1388 = vmand %vm1256, %vm1387
        %vm1389 = vmand %vm1252, %vm1387
        %s1390 = sadd.f32 %s1248, %s1250
        %v1391 = vsel %vm1386, %v1340, 0.0
        %v1392 = vsel %vm428, %v1391, 0.0
        %1393 = vadd.xlane.f32.xlu0 %v1392
        %v1394 = vpop.xlane.xlu0 %1393
        %v1395 = vrot.slane %v1394, 4
        %v1396 = vadd.f32 %v1394, %v1395
        %v1397 = vrot.slane %v1396, 2
        %v1398 = vadd.f32 %v1396, %v1397
        %v1399 = vrot.slane %v1398, 1
        %v1400 = vadd.f32 %v1398, %v1399
        %s1401 = vtos %v1400
        %v1402 = vsel %vm1388, %v1363, 0.0
        %v1403 = vsel %vm428, %v1402, 0.0
        %1404 = vadd.xlane.f32.xlu0 %v1403
        %v1405 = vpop.xlane.xlu0 %1404
        %v1406 = vrot.slane %v1405, 4
        %v1407 = vadd.f32 %v1405, %v1406
        %v1408 = vrot.slane %v1407, 2
        %v1409 = vadd.f32 %v1407, %v1408
        %v1410 = vrot.slane %v1409, 1
        %v1411 = vadd.f32 %v1409, %v1410
        %s1412 = vtos %v1411
        %s1413 = sadd.f32 %s1401, %s1412
        %v1414 = vsel %vm1389, %v1383, 0.0
        %v1415 = vsel %vm428, %v1414, 0.0
        %1416 = vadd.xlane.f32.xlu0 %v1415
        %v1417 = vpop.xlane.xlu0 %1416
        %v1418 = vrot.slane %v1417, 4
        %v1419 = vadd.f32 %v1417, %v1418
        %v1420 = vrot.slane %v1419, 2
        %v1421 = vadd.f32 %v1419, %v1420
        %v1422 = vrot.slane %v1421, 1
        %v1423 = vadd.f32 %v1421, %v1422
        %s1424 = vtos %v1423
        %s1425 = smul.f32 %s1424, 2.0
        %s1426 = sadd.f32 %s1413, %s1425
        %s1427 = smul.f32 %s1390, %s1390
        %s1428 = ssub.f32 %s1427, %s1390
        %s1429 = smax.f32 %s1428, 1.0
        %v1430 = vstv %s1429
        %v1431 = vrcp.pop %v1430
        %v1432 = vmul.f32 %v1430, %v1431
        %v1433 = vsub.f32 1.0, %v1432
        %v1434 = vmul.f32 %v1431, %v1433
        %v1435 = vadd.f32 %v1431, %v1434
        %vm1436 = vweird.f32 %v1430
        %vm1437 = vweird.f32 %v1431
        %vm1438 = vmor %vm1436, %vm1437
        %v1439 = vsel %vm1438, %v1431, %v1435
        %v1440 = vand.u32 2147483647, %v1430
        %vm1441 = vcmp.eq.f32.partialorder %v1440, 8.507059e+37
        %v1442 = vand.u32 %v1430, 2147483648
        %v1443 = vor.u32 1.1754944e-38, %v1442
        %v1444 = vsel %vm1441, %v1443, %v1439
        %s1445 = vtos %v1444
        %s1446 = smul.f32 %s1426, %s1445
        %v1447 = vrcp.pop 4.0
        %v1448 = vmul.f32 4.0, %v1447
        %v1449 = vsub.f32 1.0, %v1448
        %v1450 = vmul.f32 %v1447, %v1449
        %v1451 = vadd.f32 %v1447, %v1450
        %vm1452 = vweird.f32 %v1447
        %v1453 = vsel %vm1452, %v1447, %v1451
        %s1454 = vtos %v1453
        %s1455 = smul.f32 %s1446, %s1454
        %s1456 = smax.f32 %s1455, 1e-12
        %s1457 = smul.f32 %s1456, 16.0
        %v1458 = vstv %s1457
        %v1459 = vrcp.pop %v1458
        %v1460 = vmul.f32 %v1458, %v1459
        %v1461 = vsub.f32 1.0, %v1460
        %v1462 = vmul.f32 %v1459, %v1461
        %v1463 = vadd.f32 %v1459, %v1462
        %vm1464 = vweird.f32 %v1458
        %vm1465 = vweird.f32 %v1459
        %vm1466 = vmor %vm1464, %vm1465
        %v1467 = vsel %vm1466, %v1459, %v1463
        %v1468 = vand.u32 2147483647, %v1458
        %vm1469 = vcmp.eq.f32.partialorder %v1468, 8.507059e+37
        %v1470 = vand.u32 %v1458, 2147483648
        %v1471 = vor.u32 1.1754944e-38, %v1470
        %v1472 = vsel %vm1469, %v1471, %v1467
        %s1473 = vtos %v1472
        %v1474 = vsel %vm1386, %v1340, 1e+30
        %v1475 = vsel %vm1388, %v1363, 1e+30
        %v1476 = vsel %vm1389, %v1383, 1e+30
        %v1477 = vsub.f32 0.0, %v1474
        %v1478 = vstv %s1473
        %v1479 = vmul.f32 %v1477, %v1478
        %v1480 = vmul.f32 %v1479, 1.442695
        %v1481 = vpow.pop %v1480
        %v1482 = vsel %vm428, %v1481, 0.0
        %1483 = vadd.xlane.f32.xlu0 %v1482
        %v1484 = vpop.xlane.xlu0 %1483
        %v1485 = vrot.slane %v1484, 4
        %v1486 = vadd.f32 %v1484, %v1485
        %v1487 = vrot.slane %v1486, 2
        %v1488 = vadd.f32 %v1486, %v1487
        %v1489 = vrot.slane %v1488, 1
        %v1490 = vadd.f32 %v1488, %v1489
        %s1491 = vtos %v1490
        %v1492 = vmul.f32 %v1481, %v1481
        %v1493 = vsel %vm428, %v1492, 0.0
        %1494 = vadd.xlane.f32.xlu0 %v1493
        %v1495 = vpop.xlane.xlu0 %1494
        %v1496 = vrot.slane %v1495, 4
        %v1497 = vadd.f32 %v1495, %v1496
        %v1498 = vrot.slane %v1497, 2
        %v1499 = vadd.f32 %v1497, %v1498
        %v1500 = vrot.slane %v1499, 1
        %v1501 = vadd.f32 %v1499, %v1500
        %s1502 = vtos %v1501
        %s1503 = sadd.f32 %s1491, %s1502
        %v1504 = vmul.f32 %v1492, %v1492
        %v1505 = vsel %vm428, %v1504, 0.0
        %1506 = vadd.xlane.f32.xlu0 %v1505
        %v1507 = vpop.xlane.xlu0 %1506
        %v1508 = vrot.slane %v1507, 4
        %v1509 = vadd.f32 %v1507, %v1508
        %v1510 = vrot.slane %v1509, 2
        %v1511 = vadd.f32 %v1509, %v1510
        %v1512 = vrot.slane %v1511, 1
        %v1513 = vadd.f32 %v1511, %v1512
        %s1514 = vtos %v1513
        %s1515 = sadd.f32 %s1503, %s1514
        %v1516 = vmul.f32 %v1504, %v1504
        %v1517 = vsel %vm428, %v1516, 0.0
        %1518 = vadd.xlane.f32.xlu0 %v1517
        %v1519 = vpop.xlane.xlu0 %1518
        %v1520 = vrot.slane %v1519, 4
        %v1521 = vadd.f32 %v1519, %v1520
        %v1522 = vrot.slane %v1521, 2
        %v1523 = vadd.f32 %v1521, %v1522
        %v1524 = vrot.slane %v1523, 1
        %v1525 = vadd.f32 %v1523, %v1524
        %s1526 = vtos %v1525
        %s1527 = sadd.f32 %s1515, %s1526
        %v1528 = vmul.f32 %v1516, %v1516
        %v1529 = vsel %vm428, %v1528, 0.0
        %1530 = vadd.xlane.f32.xlu0 %v1529
        %v1531 = vpop.xlane.xlu0 %1530
        %v1532 = vrot.slane %v1531, 4
        %v1533 = vadd.f32 %v1531, %v1532
        %v1534 = vrot.slane %v1533, 2
        %v1535 = vadd.f32 %v1533, %v1534
        %v1536 = vrot.slane %v1535, 1
        %v1537 = vadd.f32 %v1535, %v1536
        %s1538 = vtos %v1537
        %s1539 = sadd.f32 %s1527, %s1538
        %s1540 = smul.f32 %s1248, %s1248
        %v1541 = vstv %s1540
        %v1542 = vrcp.pop %v1541
        %v1543 = vmul.f32 %v1541, %v1542
        %v1544 = vsub.f32 1.0, %v1543
        %v1545 = vmul.f32 %v1542, %v1544
        %v1546 = vadd.f32 %v1542, %v1545
        %vm1547 = vweird.f32 %v1541
        %vm1548 = vweird.f32 %v1542
        %vm1549 = vmor %vm1547, %vm1548
        %v1550 = vsel %vm1549, %v1542, %v1546
        %v1551 = vand.u32 2147483647, %v1541
        %vm1552 = vcmp.eq.f32.partialorder %v1551, 8.507059e+37
        %v1553 = vand.u32 %v1541, 2147483648
        %v1554 = vor.u32 1.1754944e-38, %v1553
        %v1555 = vsel %vm1552, %v1554, %v1550
        %s1556 = vtos %v1555
        %s1557 = smul.f32 %s1539, %s1556
        %v1558 = vsub.f32 0.0, %v1475
        %v1559 = vmul.f32 %v1558, %v1478
        %v1560 = vmul.f32 %v1559, 1.442695
        %v1561 = vpow.pop %v1560
        %v1562 = vsel %vm428, %v1561, 0.0
        %1563 = vadd.xlane.f32.xlu0 %v1562
        %v1564 = vpop.xlane.xlu0 %1563
        %v1565 = vrot.slane %v1564, 4
        %v1566 = vadd.f32 %v1564, %v1565
        %v1567 = vrot.slane %v1566, 2
        %v1568 = vadd.f32 %v1566, %v1567
        %v1569 = vrot.slane %v1568, 1
        %v1570 = vadd.f32 %v1568, %v1569
        %s1571 = vtos %v1570
        %v1572 = vmul.f32 %v1561, %v1561
        %v1573 = vsel %vm428, %v1572, 0.0
        %1574 = vadd.xlane.f32.xlu0 %v1573
        %v1575 = vpop.xlane.xlu0 %1574
        %v1576 = vrot.slane %v1575, 4
        %v1577 = vadd.f32 %v1575, %v1576
        %v1578 = vrot.slane %v1577, 2
        %v1579 = vadd.f32 %v1577, %v1578
        %v1580 = vrot.slane %v1579, 1
        %v1581 = vadd.f32 %v1579, %v1580
        %s1582 = vtos %v1581
        %s1583 = sadd.f32 %s1571, %s1582
        %v1584 = vmul.f32 %v1572, %v1572
        %v1585 = vsel %vm428, %v1584, 0.0
        %1586 = vadd.xlane.f32.xlu0 %v1585
        %v1587 = vpop.xlane.xlu0 %1586
        %v1588 = vrot.slane %v1587, 4
        %v1589 = vadd.f32 %v1587, %v1588
        %v1590 = vrot.slane %v1589, 2
        %v1591 = vadd.f32 %v1589, %v1590
        %v1592 = vrot.slane %v1591, 1
        %v1593 = vadd.f32 %v1591, %v1592
        %s1594 = vtos %v1593
        %s1595 = sadd.f32 %s1583, %s1594
        %v1596 = vmul.f32 %v1584, %v1584
        %v1597 = vsel %vm428, %v1596, 0.0
        %1598 = vadd.xlane.f32.xlu0 %v1597
        %v1599 = vpop.xlane.xlu0 %1598
        %v1600 = vrot.slane %v1599, 4
        %v1601 = vadd.f32 %v1599, %v1600
        %v1602 = vrot.slane %v1601, 2
        %v1603 = vadd.f32 %v1601, %v1602
        %v1604 = vrot.slane %v1603, 1
        %v1605 = vadd.f32 %v1603, %v1604
        %s1606 = vtos %v1605
        %s1607 = sadd.f32 %s1595, %s1606
        %v1608 = vmul.f32 %v1596, %v1596
        %v1609 = vsel %vm428, %v1608, 0.0
        %1610 = vadd.xlane.f32.xlu0 %v1609
        %v1611 = vpop.xlane.xlu0 %1610
        %v1612 = vrot.slane %v1611, 4
        %v1613 = vadd.f32 %v1611, %v1612
        %v1614 = vrot.slane %v1613, 2
        %v1615 = vadd.f32 %v1613, %v1614
        %v1616 = vrot.slane %v1615, 1
        %v1617 = vadd.f32 %v1615, %v1616
        %s1618 = vtos %v1617
        %s1619 = sadd.f32 %s1607, %s1618
        %s1620 = smul.f32 %s1250, %s1250
        %v1621 = vstv %s1620
        %v1622 = vrcp.pop %v1621
        %v1623 = vmul.f32 %v1621, %v1622
        %v1624 = vsub.f32 1.0, %v1623
        %v1625 = vmul.f32 %v1622, %v1624
        %v1626 = vadd.f32 %v1622, %v1625
        %vm1627 = vweird.f32 %v1621
        %vm1628 = vweird.f32 %v1622
        %vm1629 = vmor %vm1627, %vm1628
        %v1630 = vsel %vm1629, %v1622, %v1626
        %v1631 = vand.u32 2147483647, %v1621
        %vm1632 = vcmp.eq.f32.partialorder %v1631, 8.507059e+37
        %v1633 = vand.u32 %v1621, 2147483648
        %v1634 = vor.u32 1.1754944e-38, %v1633
        %v1635 = vsel %vm1632, %v1634, %v1630
        %s1636 = vtos %v1635
        %s1637 = smul.f32 %s1619, %s1636
        %v1638 = vsub.f32 0.0, %v1476
        %v1639 = vmul.f32 %v1638, %v1478
        %v1640 = vmul.f32 %v1639, 1.442695
        %v1641 = vpow.pop %v1640
        %v1642 = vsel %vm428, %v1641, 0.0
        %1643 = vadd.xlane.f32.xlu0 %v1642
        %v1644 = vpop.xlane.xlu0 %1643
        %v1645 = vrot.slane %v1644, 4
        %v1646 = vadd.f32 %v1644, %v1645
        %v1647 = vrot.slane %v1646, 2
        %v1648 = vadd.f32 %v1646, %v1647
        %v1649 = vrot.slane %v1648, 1
        %v1650 = vadd.f32 %v1648, %v1649
        %s1651 = vtos %v1650
        %v1652 = vmul.f32 %v1641, %v1641
        %v1653 = vsel %vm428, %v1652, 0.0
        %1654 = vadd.xlane.f32.xlu0 %v1653
        %v1655 = vpop.xlane.xlu0 %1654
        %v1656 = vrot.slane %v1655, 4
        %v1657 = vadd.f32 %v1655, %v1656
        %v1658 = vrot.slane %v1657, 2
        %v1659 = vadd.f32 %v1657, %v1658
        %v1660 = vrot.slane %v1659, 1
        %v1661 = vadd.f32 %v1659, %v1660
        %s1662 = vtos %v1661
        %s1663 = sadd.f32 %s1651, %s1662
        %v1664 = vmul.f32 %v1652, %v1652
        %v1665 = vsel %vm428, %v1664, 0.0
        %1666 = vadd.xlane.f32.xlu0 %v1665
        %v1667 = vpop.xlane.xlu0 %1666
        %v1668 = vrot.slane %v1667, 4
        %v1669 = vadd.f32 %v1667, %v1668
        %v1670 = vrot.slane %v1669, 2
        %v1671 = vadd.f32 %v1669, %v1670
        %v1672 = vrot.slane %v1671, 1
        %v1673 = vadd.f32 %v1671, %v1672
        %s1674 = vtos %v1673
        %s1675 = sadd.f32 %s1663, %s1674
        %v1676 = vmul.f32 %v1664, %v1664
        %v1677 = vsel %vm428, %v1676, 0.0
        %1678 = vadd.xlane.f32.xlu0 %v1677
        %v1679 = vpop.xlane.xlu0 %1678
        %v1680 = vrot.slane %v1679, 4
        %v1681 = vadd.f32 %v1679, %v1680
        %v1682 = vrot.slane %v1681, 2
        %v1683 = vadd.f32 %v1681, %v1682
        %v1684 = vrot.slane %v1683, 1
        %v1685 = vadd.f32 %v1683, %v1684
        %s1686 = vtos %v1685
        %s1687 = sadd.f32 %s1675, %s1686
        %v1688 = vmul.f32 %v1676, %v1676
        %v1689 = vsel %vm428, %v1688, 0.0
        %1690 = vadd.xlane.f32.xlu0 %v1689
        %v1691 = vpop.xlane.xlu0 %1690
        %v1692 = vrot.slane %v1691, 4
        %v1693 = vadd.f32 %v1691, %v1692
        %v1694 = vrot.slane %v1693, 2
        %v1695 = vadd.f32 %v1693, %v1694
        %v1696 = vrot.slane %v1695, 1
        %v1697 = vadd.f32 %v1695, %v1696
        %s1698 = vtos %v1697
        %s1699 = sadd.f32 %s1687, %s1698
        %s1700 = smul.f32 %s1248, %s1250
        %v1701 = vstv %s1700
        %v1702 = vrcp.pop %v1701
        %v1703 = vmul.f32 %v1701, %v1702
        %v1704 = vsub.f32 1.0, %v1703
        %v1705 = vmul.f32 %v1702, %v1704
        %v1706 = vadd.f32 %v1702, %v1705
        %vm1707 = vweird.f32 %v1701
        %vm1708 = vweird.f32 %v1702
        %vm1709 = vmor %vm1707, %vm1708
        %v1710 = vsel %vm1709, %v1702, %v1706
        %v1711 = vand.u32 2147483647, %v1701
        %vm1712 = vcmp.eq.f32.partialorder %v1711, 8.507059e+37
        %v1713 = vand.u32 %v1701, 2147483648
        %v1714 = vor.u32 1.1754944e-38, %v1713
        %v1715 = vsel %vm1712, %v1714, %v1710
        %s1716 = vtos %v1715
        %s1717 = smul.f32 %s1699, %s1716
        %s1718 = sadd.f32 %s1557, %s1637
        %s1719 = smul.f32 %s1717, 2.0
        %s1720 = ssub.f32 %s1718, %s1719
        %v1721 = vstv %s1720
        %s1722 = scalar_lea.vmem %s189, 2 [#allocation4]
        %1723 = vst [vmem:[%s1722] sm:$0x1] %v1721
        %s1724 = sadd.s32 %s279, 3
        %s1725 = smul.u32 %s1724, 128
        %s1726 = sld [smem:[#allocation3 + %s1725]]
        %s1727 = sadd.s32 %s1725, 1
        %s1728 = sld [smem:[#allocation3 + %s1727]]
        %s1729 = scvt.s32.f32 %s1726
        %s1730 = smax.f32 %s1729, 1.0
        %s1731 = scvt.s32.f32 %s1728
        %s1732 = smax.f32 %s1731, 1.0
        %v1733 = vstv %s1726
        %vm1734 = vcmp.lt.s32.totalorder %v278, %v1733
        %v1735 = vsel %vm1734, 1, 0
        %v1736 = vcvt.s32.f32 %v1735
        %v1737 = vstv %s1728
        %vm1738 = vcmp.lt.s32.totalorder %v278, %v1737
        %v1739 = vsel %vm1738, 1, 0
        %v1740 = vcvt.s32.f32 %v1739
        %s1741 = scalar_lea.vmem %s194, 24
        %v1742 = vld [vmem:[%s1741] sm:$0xff]
        %1743 = vset.pattern.permute.xlu0 0
        %1744 = vperm.xlu0 %1743, %v1742
        %v1745 = vpop.permute.xlu0 %1744
        %vm1746 = vcmp.eq.s32.totalorder %v276, %v1745
        %v1747 = vsel %vm1746, %v1736, 0.0
        %s1748 = scalar_lea.vmem %s200, 24
        %v1749 = vld [vmem:[%s1748] sm:$0xff]
        %1750 = vset.pattern.permute.xlu0 0
        %1751 = vperm.xlu0 %1750, %v1749
        %v1752 = vpop.permute.xlu0 %1751
        %vm1753 = vcmp.eq.s32.totalorder %v276, %v1752
        %v1754 = vsel %vm1753, %v1740, 0.0
        %v1756 = vsel %vm308, %v1747, 0
        %1758 = vmatpush.msra.mxu0 0.0
        %1759 = vmatpush.msra.mxu0 0.0
        %1760 = vmatpush.msra.mxu0 0.0
        %1761 = vmatpush.msra.mxu0 0.0
        %1762 = vmatpush.msra.mxu0 0.0
        %1763 = vmatpush.msra.mxu0 0.0
        %1764 = vmatpush.msra.mxu0 0.0
        %1765 = vmatpush.msra.mxu0 0.0
        %1766 = vmatpush.msra.mxu0 0.0
        %1767 = vmatpush.msra.mxu0 0.0
        %1768 = vmatpush.msra.mxu0 0.0
        %1769 = vmatpush.msra.mxu0 0.0
        %1770 = vmatpush.msra.mxu0 0.0
        %1771 = vmatpush.msra.mxu0 0.0
        %1772 = vmatpush.msra.mxu0 %v274
        %1773 = vmatpush.msra.mxu0 %v273
        %1774 = vmatmul.f32.gmra.mxu0 %v1756
        %v1775 = vpop.f32.mrf.mxu0
        %v1776 = vadd.f32 0.0, %v1775
        %1777 = vdwg.mxu0
        %v1779 = vsel %vm308, %v1754, 0
        %1781 = vmatpush.msra.mxu0 0.0
        %1782 = vmatpush.msra.mxu0 0.0
        %1783 = vmatpush.msra.mxu0 0.0
        %1784 = vmatpush.msra.mxu0 0.0
        %1785 = vmatpush.msra.mxu0 0.0
        %1786 = vmatpush.msra.mxu0 0.0
        %1787 = vmatpush.msra.mxu0 0.0
        %1788 = vmatpush.msra.mxu0 0.0
        %1789 = vmatpush.msra.mxu0 0.0
        %1790 = vmatpush.msra.mxu0 0.0
        %1791 = vmatpush.msra.mxu0 0.0
        %1792 = vmatpush.msra.mxu0 0.0
        %1793 = vmatpush.msra.mxu0 0.0
        %1794 = vmatpush.msra.mxu0 0.0
        %1795 = vmatpush.msra.mxu0 %v274
        %1796 = vmatpush.msra.mxu0 %v273
        %1797 = vmatmul.f32.gmra.mxu0 %v1779
        %v1798 = vpop.f32.mrf.mxu0
        %v1799 = vadd.f32 0.0, %v1798
        %1800 = vdwg.mxu0
        %v1802 = vsel %vm308, %v1776, 0
        %1804 = vmatpush.xpose.msra.mxu0 0.0
        %1805 = vmatpush.xpose.msra.mxu0 0.0
        %1806 = vmatpush.xpose.msra.mxu0 0.0
        %1807 = vmatpush.xpose.msra.mxu0 0.0
        %1808 = vmatpush.xpose.msra.mxu0 0.0
        %1809 = vmatpush.xpose.msra.mxu0 0.0
        %1810 = vmatpush.xpose.msra.mxu0 0.0
        %1811 = vmatpush.xpose.msra.mxu0 0.0
        %1812 = vmatpush.xpose.msra.mxu0 0.0
        %1813 = vmatpush.xpose.msra.mxu0 0.0
        %1814 = vmatpush.xpose.msra.mxu0 0.0
        %1815 = vmatpush.xpose.msra.mxu0 0.0
        %1816 = vmatpush.xpose.msra.mxu0 0.0
        %1817 = vmatpush.xpose.msra.mxu0 0.0
        %1818 = vmatpush.xpose.msra.mxu0 0.0
        %1819 = vmatpush.xpose.msra.mxu0 %v1756
        %1820 = vmatmul.f32.gmra.mxu0 %v1802
        %v1821 = vpop.f32.mrf.mxu0
        %v1822 = vadd.f32 0.0, %v1821
        %1823 = vdwg.mxu0
        %v1825 = vsel %vm308, %v1799, 0
        %1827 = vmatpush.xpose.msra.mxu0 0.0
        %1828 = vmatpush.xpose.msra.mxu0 0.0
        %1829 = vmatpush.xpose.msra.mxu0 0.0
        %1830 = vmatpush.xpose.msra.mxu0 0.0
        %1831 = vmatpush.xpose.msra.mxu0 0.0
        %1832 = vmatpush.xpose.msra.mxu0 0.0
        %1833 = vmatpush.xpose.msra.mxu0 0.0
        %1834 = vmatpush.xpose.msra.mxu0 0.0
        %1835 = vmatpush.xpose.msra.mxu0 0.0
        %1836 = vmatpush.xpose.msra.mxu0 0.0
        %1837 = vmatpush.xpose.msra.mxu0 0.0
        %1838 = vmatpush.xpose.msra.mxu0 0.0
        %1839 = vmatpush.xpose.msra.mxu0 0.0
        %1840 = vmatpush.xpose.msra.mxu0 0.0
        %1841 = vmatpush.xpose.msra.mxu0 0.0
        %1842 = vmatpush.xpose.msra.mxu0 %v1779
        %1843 = vmatmul.f32.gmra.mxu0 %v1825
        %v1844 = vpop.f32.mrf.mxu0
        %v1845 = vadd.f32 0.0, %v1844
        %1846 = vdwg.mxu0
        %1847 = vmatpush.xpose.msra.mxu0 0.0
        %1848 = vmatpush.xpose.msra.mxu0 0.0
        %1849 = vmatpush.xpose.msra.mxu0 0.0
        %1850 = vmatpush.xpose.msra.mxu0 0.0
        %1851 = vmatpush.xpose.msra.mxu0 0.0
        %1852 = vmatpush.xpose.msra.mxu0 0.0
        %1853 = vmatpush.xpose.msra.mxu0 0.0
        %1854 = vmatpush.xpose.msra.mxu0 0.0
        %1855 = vmatpush.xpose.msra.mxu0 0.0
        %1856 = vmatpush.xpose.msra.mxu0 0.0
        %1857 = vmatpush.xpose.msra.mxu0 0.0
        %1858 = vmatpush.xpose.msra.mxu0 0.0
        %1859 = vmatpush.xpose.msra.mxu0 0.0
        %1860 = vmatpush.xpose.msra.mxu0 0.0
        %1861 = vmatpush.xpose.msra.mxu0 0.0
        %1862 = vmatpush.xpose.msra.mxu0 %v1779
        %1863 = vmatmul.f32.gmra.mxu0 %v1802
        %v1864 = vpop.f32.mrf.mxu0
        %v1865 = vadd.f32 0.0, %v1864
        %1866 = vdwg.mxu0
        %vm1867 = vcmp.lt.s32.totalorder %v276, %v1733
        %vm1868 = vmand %vm1734, %vm1867
        %vm1869 = vcmp.lt.s32.totalorder %v276, %v1737
        %vm1870 = vmand %vm1738, %vm1869
        %vm1871 = vmand %vm1734, %vm1869
        %s1872 = sadd.f32 %s1730, %s1732
        %v1873 = vsel %vm1868, %v1822, 0.0
        %v1874 = vsel %vm428, %v1873, 0.0
        %1875 = vadd.xlane.f32.xlu0 %v1874
        %v1876 = vpop.xlane.xlu0 %1875
        %v1877 = vrot.slane %v1876, 4
        %v1878 = vadd.f32 %v1876, %v1877
        %v1879 = vrot.slane %v1878, 2
        %v1880 = vadd.f32 %v1878, %v1879
        %v1881 = vrot.slane %v1880, 1
        %v1882 = vadd.f32 %v1880, %v1881
        %s1883 = vtos %v1882
        %v1884 = vsel %vm1870, %v1845, 0.0
        %v1885 = vsel %vm428, %v1884, 0.0
        %1886 = vadd.xlane.f32.xlu0 %v1885
        %v1887 = vpop.xlane.xlu0 %1886
        %v1888 = vrot.slane %v1887, 4
        %v1889 = vadd.f32 %v1887, %v1888
        %v1890 = vrot.slane %v1889, 2
        %v1891 = vadd.f32 %v1889, %v1890
        %v1892 = vrot.slane %v1891, 1
        %v1893 = vadd.f32 %v1891, %v1892
        %s1894 = vtos %v1893
        %s1895 = sadd.f32 %s1883, %s1894
        %v1896 = vsel %vm1871, %v1865, 0.0
        %v1897 = vsel %vm428, %v1896, 0.0
        %1898 = vadd.xlane.f32.xlu0 %v1897
        %v1899 = vpop.xlane.xlu0 %1898
        %v1900 = vrot.slane %v1899, 4
        %v1901 = vadd.f32 %v1899, %v1900
        %v1902 = vrot.slane %v1901, 2
        %v1903 = vadd.f32 %v1901, %v1902
        %v1904 = vrot.slane %v1903, 1
        %v1905 = vadd.f32 %v1903, %v1904
        %s1906 = vtos %v1905
        %s1907 = smul.f32 %s1906, 2.0
        %s1908 = sadd.f32 %s1895, %s1907
        %s1909 = smul.f32 %s1872, %s1872
        %s1910 = ssub.f32 %s1909, %s1872
        %s1911 = smax.f32 %s1910, 1.0
        %v1912 = vstv %s1911
        %v1913 = vrcp.pop %v1912
        %v1914 = vmul.f32 %v1912, %v1913
        %v1915 = vsub.f32 1.0, %v1914
        %v1916 = vmul.f32 %v1913, %v1915
        %v1917 = vadd.f32 %v1913, %v1916
        %vm1918 = vweird.f32 %v1912
        %vm1919 = vweird.f32 %v1913
        %vm1920 = vmor %vm1918, %vm1919
        %v1921 = vsel %vm1920, %v1913, %v1917
        %v1922 = vand.u32 2147483647, %v1912
        %vm1923 = vcmp.eq.f32.partialorder %v1922, 8.507059e+37
        %v1924 = vand.u32 %v1912, 2147483648
        %v1925 = vor.u32 1.1754944e-38, %v1924
        %v1926 = vsel %vm1923, %v1925, %v1921
        %s1927 = vtos %v1926
        %s1928 = smul.f32 %s1908, %s1927
        %v1929 = vrcp.pop 4.0
        %v1930 = vmul.f32 4.0, %v1929
        %v1931 = vsub.f32 1.0, %v1930
        %v1932 = vmul.f32 %v1929, %v1931
        %v1933 = vadd.f32 %v1929, %v1932
        %vm1934 = vweird.f32 %v1929
        %v1935 = vsel %vm1934, %v1929, %v1933
        %s1936 = vtos %v1935
        %s1937 = smul.f32 %s1928, %s1936
        %s1938 = smax.f32 %s1937, 1e-12
        %s1939 = smul.f32 %s1938, 16.0
        %v1940 = vstv %s1939
        %v1941 = vrcp.pop %v1940
        %v1942 = vmul.f32 %v1940, %v1941
        %v1943 = vsub.f32 1.0, %v1942
        %v1944 = vmul.f32 %v1941, %v1943
        %v1945 = vadd.f32 %v1941, %v1944
        %vm1946 = vweird.f32 %v1940
        %vm1947 = vweird.f32 %v1941
        %vm1948 = vmor %vm1946, %vm1947
        %v1949 = vsel %vm1948, %v1941, %v1945
        %v1950 = vand.u32 2147483647, %v1940
        %vm1951 = vcmp.eq.f32.partialorder %v1950, 8.507059e+37
        %v1952 = vand.u32 %v1940, 2147483648
        %v1953 = vor.u32 1.1754944e-38, %v1952
        %v1954 = vsel %vm1951, %v1953, %v1949
        %s1955 = vtos %v1954
        %v1956 = vsel %vm1868, %v1822, 1e+30
        %v1957 = vsel %vm1870, %v1845, 1e+30
        %v1958 = vsel %vm1871, %v1865, 1e+30
        %v1959 = vsub.f32 0.0, %v1956
        %v1960 = vstv %s1955
        %v1961 = vmul.f32 %v1959, %v1960
        %v1962 = vmul.f32 %v1961, 1.442695
        %v1963 = vpow.pop %v1962
        %v1964 = vsel %vm428, %v1963, 0.0
        %1965 = vadd.xlane.f32.xlu0 %v1964
        %v1966 = vpop.xlane.xlu0 %1965
        %v1967 = vrot.slane %v1966, 4
        %v1968 = vadd.f32 %v1966, %v1967
        %v1969 = vrot.slane %v1968, 2
        %v1970 = vadd.f32 %v1968, %v1969
        %v1971 = vrot.slane %v1970, 1
        %v1972 = vadd.f32 %v1970, %v1971
        %s1973 = vtos %v1972
        %v1974 = vmul.f32 %v1963, %v1963
        %v1975 = vsel %vm428, %v1974, 0.0
        %1976 = vadd.xlane.f32.xlu0 %v1975
        %v1977 = vpop.xlane.xlu0 %1976
        %v1978 = vrot.slane %v1977, 4
        %v1979 = vadd.f32 %v1977, %v1978
        %v1980 = vrot.slane %v1979, 2
        %v1981 = vadd.f32 %v1979, %v1980
        %v1982 = vrot.slane %v1981, 1
        %v1983 = vadd.f32 %v1981, %v1982
        %s1984 = vtos %v1983
        %s1985 = sadd.f32 %s1973, %s1984
        %v1986 = vmul.f32 %v1974, %v1974
        %v1987 = vsel %vm428, %v1986, 0.0
        %1988 = vadd.xlane.f32.xlu0 %v1987
        %v1989 = vpop.xlane.xlu0 %1988
        %v1990 = vrot.slane %v1989, 4
        %v1991 = vadd.f32 %v1989, %v1990
        %v1992 = vrot.slane %v1991, 2
        %v1993 = vadd.f32 %v1991, %v1992
        %v1994 = vrot.slane %v1993, 1
        %v1995 = vadd.f32 %v1993, %v1994
        %s1996 = vtos %v1995
        %s1997 = sadd.f32 %s1985, %s1996
        %v1998 = vmul.f32 %v1986, %v1986
        %v1999 = vsel %vm428, %v1998, 0.0
        %2000 = vadd.xlane.f32.xlu0 %v1999
        %v2001 = vpop.xlane.xlu0 %2000
        %v2002 = vrot.slane %v2001, 4
        %v2003 = vadd.f32 %v2001, %v2002
        %v2004 = vrot.slane %v2003, 2
        %v2005 = vadd.f32 %v2003, %v2004
        %v2006 = vrot.slane %v2005, 1
        %v2007 = vadd.f32 %v2005, %v2006
        %s2008 = vtos %v2007
        %s2009 = sadd.f32 %s1997, %s2008
        %v2010 = vmul.f32 %v1998, %v1998
        %v2011 = vsel %vm428, %v2010, 0.0
        %2012 = vadd.xlane.f32.xlu0 %v2011
        %v2013 = vpop.xlane.xlu0 %2012
        %v2014 = vrot.slane %v2013, 4
        %v2015 = vadd.f32 %v2013, %v2014
        %v2016 = vrot.slane %v2015, 2
        %v2017 = vadd.f32 %v2015, %v2016
        %v2018 = vrot.slane %v2017, 1
        %v2019 = vadd.f32 %v2017, %v2018
        %s2020 = vtos %v2019
        %s2021 = sadd.f32 %s2009, %s2020
        %s2022 = smul.f32 %s1730, %s1730
        %v2023 = vstv %s2022
        %v2024 = vrcp.pop %v2023
        %v2025 = vmul.f32 %v2023, %v2024
        %v2026 = vsub.f32 1.0, %v2025
        %v2027 = vmul.f32 %v2024, %v2026
        %v2028 = vadd.f32 %v2024, %v2027
        %vm2029 = vweird.f32 %v2023
        %vm2030 = vweird.f32 %v2024
        %vm2031 = vmor %vm2029, %vm2030
        %v2032 = vsel %vm2031, %v2024, %v2028
        %v2033 = vand.u32 2147483647, %v2023
        %vm2034 = vcmp.eq.f32.partialorder %v2033, 8.507059e+37
        %v2035 = vand.u32 %v2023, 2147483648
        %v2036 = vor.u32 1.1754944e-38, %v2035
        %v2037 = vsel %vm2034, %v2036, %v2032
        %s2038 = vtos %v2037
        %s2039 = smul.f32 %s2021, %s2038
        %v2040 = vsub.f32 0.0, %v1957
        %v2041 = vmul.f32 %v2040, %v1960
        %v2042 = vmul.f32 %v2041, 1.442695
        %v2043 = vpow.pop %v2042
        %v2044 = vsel %vm428, %v2043, 0.0
        %2045 = vadd.xlane.f32.xlu0 %v2044
        %v2046 = vpop.xlane.xlu0 %2045
        %v2047 = vrot.slane %v2046, 4
        %v2048 = vadd.f32 %v2046, %v2047
        %v2049 = vrot.slane %v2048, 2
        %v2050 = vadd.f32 %v2048, %v2049
        %v2051 = vrot.slane %v2050, 1
        %v2052 = vadd.f32 %v2050, %v2051
        %s2053 = vtos %v2052
        %v2054 = vmul.f32 %v2043, %v2043
        %v2055 = vsel %vm428, %v2054, 0.0
        %2056 = vadd.xlane.f32.xlu0 %v2055
        %v2057 = vpop.xlane.xlu0 %2056
        %v2058 = vrot.slane %v2057, 4
        %v2059 = vadd.f32 %v2057, %v2058
        %v2060 = vrot.slane %v2059, 2
        %v2061 = vadd.f32 %v2059, %v2060
        %v2062 = vrot.slane %v2061, 1
        %v2063 = vadd.f32 %v2061, %v2062
        %s2064 = vtos %v2063
        %s2065 = sadd.f32 %s2053, %s2064
        %v2066 = vmul.f32 %v2054, %v2054
        %v2067 = vsel %vm428, %v2066, 0.0
        %2068 = vadd.xlane.f32.xlu0 %v2067
        %v2069 = vpop.xlane.xlu0 %2068
        %v2070 = vrot.slane %v2069, 4
        %v2071 = vadd.f32 %v2069, %v2070
        %v2072 = vrot.slane %v2071, 2
        %v2073 = vadd.f32 %v2071, %v2072
        %v2074 = vrot.slane %v2073, 1
        %v2075 = vadd.f32 %v2073, %v2074
        %s2076 = vtos %v2075
        %s2077 = sadd.f32 %s2065, %s2076
        %v2078 = vmul.f32 %v2066, %v2066
        %v2079 = vsel %vm428, %v2078, 0.0
        %2080 = vadd.xlane.f32.xlu0 %v2079
        %v2081 = vpop.xlane.xlu0 %2080
        %v2082 = vrot.slane %v2081, 4
        %v2083 = vadd.f32 %v2081, %v2082
        %v2084 = vrot.slane %v2083, 2
        %v2085 = vadd.f32 %v2083, %v2084
        %v2086 = vrot.slane %v2085, 1
        %v2087 = vadd.f32 %v2085, %v2086
        %s2088 = vtos %v2087
        %s2089 = sadd.f32 %s2077, %s2088
        %v2090 = vmul.f32 %v2078, %v2078
        %v2091 = vsel %vm428, %v2090, 0.0
        %2092 = vadd.xlane.f32.xlu0 %v2091
        %v2093 = vpop.xlane.xlu0 %2092
        %v2094 = vrot.slane %v2093, 4
        %v2095 = vadd.f32 %v2093, %v2094
        %v2096 = vrot.slane %v2095, 2
        %v2097 = vadd.f32 %v2095, %v2096
        %v2098 = vrot.slane %v2097, 1
        %v2099 = vadd.f32 %v2097, %v2098
        %s2100 = vtos %v2099
        %s2101 = sadd.f32 %s2089, %s2100
        %s2102 = smul.f32 %s1732, %s1732
        %v2103 = vstv %s2102
        %v2104 = vrcp.pop %v2103
        %v2105 = vmul.f32 %v2103, %v2104
        %v2106 = vsub.f32 1.0, %v2105
        %v2107 = vmul.f32 %v2104, %v2106
        %v2108 = vadd.f32 %v2104, %v2107
        %vm2109 = vweird.f32 %v2103
        %vm2110 = vweird.f32 %v2104
        %vm2111 = vmor %vm2109, %vm2110
        %v2112 = vsel %vm2111, %v2104, %v2108
        %v2113 = vand.u32 2147483647, %v2103
        %vm2114 = vcmp.eq.f32.partialorder %v2113, 8.507059e+37
        %v2115 = vand.u32 %v2103, 2147483648
        %v2116 = vor.u32 1.1754944e-38, %v2115
        %v2117 = vsel %vm2114, %v2116, %v2112
        %s2118 = vtos %v2117
        %s2119 = smul.f32 %s2101, %s2118
        %v2120 = vsub.f32 0.0, %v1958
        %v2121 = vmul.f32 %v2120, %v1960
        %v2122 = vmul.f32 %v2121, 1.442695
        %v2123 = vpow.pop %v2122
        %v2124 = vsel %vm428, %v2123, 0.0
        %2125 = vadd.xlane.f32.xlu0 %v2124
        %v2126 = vpop.xlane.xlu0 %2125
        %v2127 = vrot.slane %v2126, 4
        %v2128 = vadd.f32 %v2126, %v2127
        %v2129 = vrot.slane %v2128, 2
        %v2130 = vadd.f32 %v2128, %v2129
        %v2131 = vrot.slane %v2130, 1
        %v2132 = vadd.f32 %v2130, %v2131
        %s2133 = vtos %v2132
        %v2134 = vmul.f32 %v2123, %v2123
        %v2135 = vsel %vm428, %v2134, 0.0
        %2136 = vadd.xlane.f32.xlu0 %v2135
        %v2137 = vpop.xlane.xlu0 %2136
        %v2138 = vrot.slane %v2137, 4
        %v2139 = vadd.f32 %v2137, %v2138
        %v2140 = vrot.slane %v2139, 2
        %v2141 = vadd.f32 %v2139, %v2140
        %v2142 = vrot.slane %v2141, 1
        %v2143 = vadd.f32 %v2141, %v2142
        %s2144 = vtos %v2143
        %s2145 = sadd.f32 %s2133, %s2144
        %v2146 = vmul.f32 %v2134, %v2134
        %v2147 = vsel %vm428, %v2146, 0.0
        %2148 = vadd.xlane.f32.xlu0 %v2147
        %v2149 = vpop.xlane.xlu0 %2148
        %v2150 = vrot.slane %v2149, 4
        %v2151 = vadd.f32 %v2149, %v2150
        %v2152 = vrot.slane %v2151, 2
        %v2153 = vadd.f32 %v2151, %v2152
        %v2154 = vrot.slane %v2153, 1
        %v2155 = vadd.f32 %v2153, %v2154
        %s2156 = vtos %v2155
        %s2157 = sadd.f32 %s2145, %s2156
        %v2158 = vmul.f32 %v2146, %v2146
        %v2159 = vsel %vm428, %v2158, 0.0
        %2160 = vadd.xlane.f32.xlu0 %v2159
        %v2161 = vpop.xlane.xlu0 %2160
        %v2162 = vrot.slane %v2161, 4
        %v2163 = vadd.f32 %v2161, %v2162
        %v2164 = vrot.slane %v2163, 2
        %v2165 = vadd.f32 %v2163, %v2164
        %v2166 = vrot.slane %v2165, 1
        %v2167 = vadd.f32 %v2165, %v2166
        %s2168 = vtos %v2167
        %s2169 = sadd.f32 %s2157, %s2168
        %v2170 = vmul.f32 %v2158, %v2158
        %v2171 = vsel %vm428, %v2170, 0.0
        %2172 = vadd.xlane.f32.xlu0 %v2171
        %v2173 = vpop.xlane.xlu0 %2172
        %v2174 = vrot.slane %v2173, 4
        %v2175 = vadd.f32 %v2173, %v2174
        %v2176 = vrot.slane %v2175, 2
        %v2177 = vadd.f32 %v2175, %v2176
        %v2178 = vrot.slane %v2177, 1
        %v2179 = vadd.f32 %v2177, %v2178
        %s2180 = vtos %v2179
        %s2181 = sadd.f32 %s2169, %s2180
        %s2182 = smul.f32 %s1730, %s1732
        %v2183 = vstv %s2182
        %v2184 = vrcp.pop %v2183
        %v2185 = vmul.f32 %v2183, %v2184
        %v2186 = vsub.f32 1.0, %v2185
        %v2187 = vmul.f32 %v2184, %v2186
        %v2188 = vadd.f32 %v2184, %v2187
        %vm2189 = vweird.f32 %v2183
        %vm2190 = vweird.f32 %v2184
        %vm2191 = vmor %vm2189, %vm2190
        %v2192 = vsel %vm2191, %v2184, %v2188
        %v2193 = vand.u32 2147483647, %v2183
        %vm2194 = vcmp.eq.f32.partialorder %v2193, 8.507059e+37
        %v2195 = vand.u32 %v2183, 2147483648
        %v2196 = vor.u32 1.1754944e-38, %v2195
        %v2197 = vsel %vm2194, %v2196, %v2192
        %s2198 = vtos %v2197
        %s2199 = smul.f32 %s2181, %s2198
        %s2200 = sadd.f32 %s2039, %s2119
        %s2201 = smul.f32 %s2199, 2.0
        %s2202 = ssub.f32 %s2200, %s2201
        %v2203 = vstv %s2202
        %s2204 = scalar_lea.vmem %s189, 3 [#allocation4]
        %2205 = vst [vmem:[%s2204] sm:$0x1] %v2203
        %s2206 = sand.u32 %s107, 1
        %s2207 = scalar_lea.sflag [#allocation5], %s2206
        %s2208 = sand.u32 %s107, 1
        %s2209 = smul.addr %s2208, 4
        %s2210 = scalar_lea.vmem [#allocation4], %s2209
        // Predicated region
        $region33: #{tpu_custom_call.1} parent=31 // pred_check
          %p2211 = pneg %p117
        $region34: #{tpu_custom_call.1} parent=31 // pred_check_branch
          %2213 = sbr.rel (%p2211) target = $region36
        $region35: #{tpu_custom_call.1} parent=31 // pred_region
          %s2214 = smul.u32 4, %s26
          %2216 = vsyncadd %s2207, 0
          %s2217 = scalar_lea.hbm %s4, %s2214
          %s2218 = sshll.u32 %s2210, 4
          %s2219 = int_to_ptr.vmem [resolvable:$true] %s2218
          %s2220 = sshll.u32 %s2217, 4
          %s2221 = int_to_ptr.hbm [resolvable:$true] %s2220
          %2226 = dma.vmem_to_hbm [thread:$0]  %s2219, 64, %s2221, %s2207, 16, 16, 1
        $region36: #{tpu_custom_call.1} parent=31 // pred_fallthru
          _
      $region32: #{tpu_custom_call.1} parent=5 // pred_fallthru
        _
      %p2227 = scmp.le.s32.totalorder 2, %s21
      // Predicated region
      $region37: #{tpu_custom_call.1} parent=5 // pred_check
        %p2228 = pneg %p2227
      $region38: #{tpu_custom_call.1} parent=5 // pred_check_branch
        %2230 = sbr.rel (%p2228) target = $region40
      $region39: #{tpu_custom_call.1} parent=5 // pred_region
        %s2231 = ssub.s32 %s21, 2
        // Predicated region
        $region41: #{tpu_custom_call.1} parent=39 // pred_check
          %p2232 = pneg %p123
        $region42: #{tpu_custom_call.1} parent=39 // pred_check_branch
          %2234 = sbr.rel (%p2232) target = $region44
        $region43: #{tpu_custom_call.1} parent=39 // pred_region
          %s2235 = sand.u32 %s108, 1
          %s2236 = scalar_lea.sflag [#allocation5], %s2235
          %s2237 = sand.u32 %s108, 1
          %s2238 = smul.addr %s2237, 4
          %s2239 = scalar_lea.vmem [#allocation4], %s2238
          %2241 = dma.done %s2236, 64
        $region44: #{tpu_custom_call.1} parent=39 // pred_fallthru
          _
      $region40: #{tpu_custom_call.1} parent=5 // pred_fallthru
        _
    $region6: #{tpu_custom_call.1} parent=1 // loop_footer
      %s25 = sadd.s32 1, %s21
    $region7: #{tpu_custom_call.1} parent=1 // loop_footer_branch
      %20 = sbr.rel target = $region3
    $region8: #{tpu_custom_call.1} parent=1 // loop_exit
      _
    %2242 = vsyncpa [#allocation5], 1
    %s2243 = scalar_lea.sflag [#allocation5], 1
    %2244 = vsyncpa %s2243, 1

</llo_original>
